<compile_context>
chip_gen: v6e
topology: v6e:2x2x1
jax: 0.10.0
libtpu: 0.0.40
codegen_flags: <defaults>
</compile_context>

<pallas_src>
import functools
import numpy as np
import jax
import jax.numpy as jnp
from jax.experimental import pallas as pl
from jax.experimental.pallas import tpu as pltpu

BN_EPS = 1e-5
LANE = 128


# ---------------------------------------------------------------- helpers
def _round_up(v, m):
    return ((v + m - 1) // m) * m


def _hswish(x):
    return x * jnp.clip(x + 3.0, 0.0, 6.0) / 6.0


def _hsigmoid_paddle(x):
    # HardSigmoid(type='paddle'): clip(1.2x + 3, 0, 6) / 6
    return jnp.clip(1.2 * x + 3.0, 0.0, 6.0) / 6.0


def _apply_act(y, act):
    if act == "relu":
        return jnp.maximum(y, 0.0)
    if act == "hard_swish":
        return _hswish(y)
    return y


def _bn_fold(gamma, beta, mean, var):
    scale = gamma / jnp.sqrt(var + BN_EPS)
    bias = beta - mean * scale
    return scale, bias


def _pad2(a, rows, cols):
    return jnp.pad(a, ((0, rows - a.shape[0]), (0, cols - a.shape[1])))


def _pad_row(a, cols):
    return jnp.pad(a, ((0, cols - a.shape[0]),)).reshape(1, cols)


# -------------------------------------------------------------- fused kernel
def residual_unit_forward(x_nchw, p, *, kernel_size, stride, act, use_se):
    N, Cin, H, W = x_nchw.shape
    k = kernel_size
    pad = (k - 1) // 2
    Cmid = p["w_expand"].shape[1]
    Cout = p["w_linear"].shape[1]
    add_res = (Cin == Cout) and (stride == 1)

    # lane-dense (padded) channel sizes
    Cin_p = _round_up(Cin, LANE)
    Cmid_p = _round_up(Cmid, LANE)
    Cout_p = _round_up(Cout, LANE)

    Hp, Wp = H + 2 * pad, W + 2 * pad
    Ho = (Hp - k) // stride + 1
    Wo = (Wp - k) // stride + 1

    # Left halo along W (the sublane axis of the (H, W, C) scratch) is kept
    # 8-aligned so the interior store is an aligned store; extra columns are zeros.
    Wl = _round_up(pad, 8) if pad > 0 else 0
    Wbuf = _round_up(Wl + W + pad, 8)

    # ---- host-side (trace-time) weight prep: fold BN scale into the weights, pad
    s1, b1 = _bn_fold(*p["bn_expand"])
    s2, b2 = _bn_fold(*p["bn_bottleneck"])
    s3, b3 = _bn_fold(*p["bn_linear"])
    we = _pad2(p["w_expand"] * s1[None, :], Cin_p, Cmid_p)
    be = _pad_row(b1, Cmid_p)
    wd = _pad2(p["w_dw"] * s2[None, :], k * k, Cmid_p)
    bd = _pad_row(b2, Cmid_p)
    wl = _pad2(p["w_linear"] * s3[None, :], Cmid_p, Cout_p)
    bl = _pad_row(b3, Cout_p)
    if use_se:
        Cse = p["se_w1"].shape[1]
        Cse_p = _round_up(Cse, LANE)
        sw1 = _pad2(p["se_w1"], Cmid_p, Cse_p)
        sb1 = _pad_row(p["se_b1"], Cse_p)
        sw2 = _pad2(p["se_w2"], Cse_p, Cmid_p)
        sb2 = _pad_row(p["se_b2"], Cmid_p)

    # NCHW -> NHWC, zero-pad channels to the lane width (tiny tensors: ~256 KB)
    x = jnp.transpose(x_nchw, (0, 2, 3, 1))
    x = jnp.pad(x, ((0, 0), (0, 0), (0, 0), (0, Cin_p - Cin)))

    def kernel(*refs):
        it = iter(refs)
        x_ref = next(it)
        we_ref = next(it); be_ref = next(it)
        wd_ref = next(it); bd_ref = next(it)
        if use_se:
            sw1_ref = next(it); sb1_ref = next(it)
            sw2_ref = next(it); sb2_ref = next(it)
        wl_ref = next(it); bl_ref = next(it)
        o_ref = next(it)
        ypad_ref = next(it)  # VMEM scratch: zero-padded expanded activation

        # ---- expand: 1x1 conv (+ folded BN) + act     (H*W, Cin_p) @ (Cin_p, Cmid_p)
        xv = x_ref[0].reshape(H * W, Cin_p)
        y = jnp.dot(xv, we_ref[...], preferred_element_type=jnp.float32)
        y = _apply_act(y + be_ref[...], act)

        # ---- stage into zero-padded VMEM scratch (halo for depthwise conv)
        ypad_ref[...] = jnp.zeros_like(ypad_ref)
        ypad_ref[pl.ds(pad, H), pl.ds(Wl, W), :] = y.reshape(H, W, Cmid_p)

        # ---- bottleneck: depthwise k x k conv (+ folded BN) + act
        acc = jnp.zeros((Ho, Wo, Cmid_p), jnp.float32)
        for i in range(k):
            for j in range(k):
                jj = j + Wl - pad
                if stride == 1:
                    patch = ypad_ref[pl.ds(i, Ho), pl.ds(jj, Wo), :]
                else:
                    patch = ypad_ref[pl.ds(i, Ho, stride), pl.ds(jj, Wo, stride), :]
                acc = acc + patch * wd_ref[i * k + j, :]
        yd = _apply_act(acc + bd_ref[0, :], act)

        # ---- squeeze-excite (kept in VMEM; padded channels of yd are exactly 0)
        if use_se:
            pooled = jnp.mean(yd.reshape(Ho * Wo, Cmid_p), axis=0, keepdims=True)
            a = jnp.dot(pooled, sw1_ref[...], preferred_element_type=jnp.float32)
            a = jnp.maximum(a + sb1_ref[...], 0.0)
            a = jnp.dot(a, sw2_ref[...], preferred_element_type=jnp.float32)
            a = _hsigmoid_paddle(a + sb2_ref[...])
            yd = yd * a[0, :]

        # ---- linear: 1x1 conv (+ folded BN), fused residual add
        yl = jnp.dot(yd.reshape(Ho * Wo, Cmid_p), wl_ref[...],
                     preferred_element_type=jnp.float32) + bl_ref[...]
        yl = yl.reshape(Ho, Wo, Cout_p)
        if add_res:
            yl = yl + x_ref[0]
        o_ref[0] = yl.astype(o_ref.dtype)

    in_specs = [
        pl.BlockSpec((1, H, W, Cin_p), lambda n: (n, 0, 0, 0)),
        pl.BlockSpec((Cin_p, Cmid_p), lambda n: (0, 0)),
        pl.BlockSpec((1, Cmid_p), lambda n: (0, 0)),
        pl.BlockSpec((k * k, Cmid_p), lambda n: (0, 0)),
        pl.BlockSpec((1, Cmid_p), lambda n: (0, 0)),
    ]
    args = [x, we, be, wd, bd]
    if use_se:
        in_specs += [
            pl.BlockSpec((Cmid_p, Cse_p), lambda n: (0, 0)),
            pl.BlockSpec((1, Cse_p), lambda n: (0, 0)),
            pl.BlockSpec((Cse_p, Cmid_p), lambda n: (0, 0)),
            pl.BlockSpec((1, Cmid_p), lambda n: (0, 0)),
        ]
        args += [sw1, sb1, sw2, sb2]
    in_specs += [
        pl.BlockSpec((Cmid_p, Cout_p), lambda n: (0, 0)),
        pl.BlockSpec((1, Cout_p), lambda n: (0, 0)),
    ]
    args += [wl, bl]

    out = pl.pallas_call(
        kernel,
        out_shape=jax.ShapeDtypeStruct((N, Ho, Wo, Cout_p), jnp.float32),
        grid=(N,),
        in_specs=in_specs,
        out_specs=pl.BlockSpec((1, Ho, Wo, Cout_p), lambda n: (n, 0, 0, 0)),
        scratch_shapes=[pltpu.VMEM((Hp, Wbuf, Cmid_p), jnp.float32)],
        compiler_params=pltpu.CompilerParams(dimension_semantics=("parallel",)),
    )(*args)

    out = out[..., :Cout]                       # drop channel padding
    return jnp.transpose(out, (0, 3, 1, 2))     # NHWC -> NCHW


# ------------------------------------------------------- pure-JAX reference
def residual_unit_reference(x_nchw, p, *, kernel_size, stride, act, use_se):
    N, Cin, H, W = x_nchw.shape
    padding = (kernel_size - 1) // 2
    Cout = p["w_linear"].shape[1]
    not_add = (Cin != Cout) or (stride != 1)
    x = jnp.transpose(x_nchw, (0, 2, 3, 1))

    s1, b1 = _bn_fold(*p["bn_expand"])
    y = _apply_act(jnp.einsum("nhwc,cd->nhwd", x, p["w_expand"]) * s1 + b1, act)

    yp = jnp.pad(y, ((0, 0), (padding, padding), (padding, padding), (0, 0)))
    Hp, Wp = H + 2 * padding, W + 2 * padding
    Ho = (Hp - kernel_size) // stride + 1
    Wo = (Wp - kernel_size) // stride + 1
    acc = jnp.zeros((N, Ho, Wo, y.shape[-1]), jnp.float32)
    for i in range(kernel_size):
        for j in range(kernel_size):
            patch = yp[:, i:i + stride * Ho:stride, j:j + stride * Wo:stride, :]
            acc = acc + patch * p["w_dw"][i * kernel_size + j]
    s2, b2 = _bn_fold(*p["bn_bottleneck"])
    y = _apply_act(acc * s2 + b2, act)

    if use_se:
        pooled = jnp.mean(y, axis=(1, 2))                                  # (N,C)
        a = jnp.maximum(pooled @ p["se_w1"] + p["se_b1"], 0.0)
        a = _hsigmoid_paddle(a @ p["se_w2"] + p["se_b2"])
        y = y * a[:, None, None, :]

    s3, b3 = _bn_fold(*p["bn_linear"])
    y = jnp.einsum("nhwc,cd->nhwd", y, p["w_linear"]) * s3 + b3
    if not not_add:
        y = y + x
    return jnp.transpose(y, (0, 3, 1, 2))


# -------------------------------------------------------------------- params
def init_params(key, c_in, c_mid, c_out, kernel_size):
    ks = jax.random.split(key, 12)
    c_se = c_mid // 4

    def bn(k, c):
        g = 1.0 + 0.1 * jax.random.normal(k, (c,), jnp.float32)
        b = 0.1 * jax.random.normal(jax.random.fold_in(k, 1), (c,), jnp.float32)
        m = 0.1 * jax.random.normal(jax.random.fold_in(k, 2), (c,), jnp.float32)
        v = 0.5 + jax.random.uniform(jax.random.fold_in(k, 3), (c,), jnp.float32)
        return (g, b, m, v)

    return {
        "w_expand": 0.1 * jax.random.normal(ks[0], (c_in, c_mid), jnp.float32),
        "bn_expand": bn(ks[1], c_mid),
        "w_dw": 0.1 * jax.random.normal(ks[2], (kernel_size * kernel_size, c_mid), jnp.float32),
        "bn_bottleneck": bn(ks[3], c_mid),
        "se_w1": 0.1 * jax.random.normal(ks[4], (c_mid, c_se), jnp.float32),
        "se_b1": 0.1 * jax.random.normal(ks[5], (c_se,), jnp.float32),
        "se_w2": 0.1 * jax.random.normal(ks[6], (c_se, c_mid), jnp.float32),
        "se_b2": 0.1 * jax.random.normal(ks[7], (c_mid,), jnp.float32),
        "w_linear": 0.1 * jax.random.normal(ks[8], (c_mid, c_out), jnp.float32),
        "bn_linear": bn(ks[9], c_out),
    }


if __name__ == "__main__":
    # ResidualUnit(num_in_filter=16, num_mid_filter=32, num_out_filter=16,
    #              stride=1, kernel_size=3, act='hard_swish', use_se=True)
    N, Cin, Cmid, Cout, H, W = 2, 16, 32, 16, 16, 16
    kernel_size, stride, act, use_se = 3, 1, "hard_swish", True

    key = jax.random.PRNGKey(0)
    kx, kp = jax.random.split(key)
    x = jax.random.normal(kx, (N, Cin, H, W), jnp.float32)     # NCHW, like PyTorch
    params = init_params(kp, Cin, Cmid, Cout, kernel_size)

    fwd = functools.partial(residual_unit_forward, kernel_size=kernel_size,
                            stride=stride, act=act, use_se=use_se)
    out = jax.block_until_ready(jax.jit(fwd)(x, params))

    ref = residual_unit_reference(x, params, kernel_size=kernel_size,
                                  stride=stride, act=act, use_se=use_se)
    np.testing.assert_allclose(np.asarray(out), np.asarray(ref), rtol=1e-3, atol=1e-3)

    print("KERNEL_OK")
</pallas_src>

<mosaic_0001>
module attributes {stable_mosaic.version = 11 : i64} {
  func.func @kernel(%arg0: i32, %arg1: memref<1x16x16x128xf32, #tpu.memory_space<vmem>>, %arg2: memref<128x128xf32, #tpu.memory_space<vmem>>, %arg3: memref<1x128xf32, #tpu.memory_space<vmem>>, %arg4: memref<9x128xf32, #tpu.memory_space<vmem>>, %arg5: memref<1x128xf32, #tpu.memory_space<vmem>>, %arg6: memref<128x128xf32, #tpu.memory_space<vmem>>, %arg7: memref<1x128xf32, #tpu.memory_space<vmem>>, %arg8: memref<128x128xf32, #tpu.memory_space<vmem>>, %arg9: memref<1x128xf32, #tpu.memory_space<vmem>>, %arg10: memref<128x128xf32, #tpu.memory_space<vmem>>, %arg11: memref<1x128xf32, #tpu.memory_space<vmem>>, %arg12: memref<1x16x16x128xf32, #tpu.memory_space<vmem>>, %arg13: memref<18x32x128xf32, #tpu.memory_space<vmem>>) attributes {dimension_semantics = [#tpu.dimension_semantics<parallel>], iteration_bounds = array<i64: 2>, scalar_prefetch = 0 : i64, scratch_operands = 1 : i64, tpu.core_type = #tpu.core_type<tc>, window_params = [{transform_indices = @transform_0, window_bounds = array<i64: 1, 16, 16, 128>}, {pipeline_mode = #tpu.pipeline_mode<synchronous>, transform_indices = @transform_1, window_bounds = array<i64: 128, 128>}, {pipeline_mode = #tpu.pipeline_mode<synchronous>, transform_indices = @transform_2, window_bounds = array<i64: 1, 128>}, {pipeline_mode = #tpu.pipeline_mode<synchronous>, transform_indices = @transform_3, window_bounds = array<i64: 9, 128>}, {pipeline_mode = #tpu.pipeline_mode<synchronous>, transform_indices = @transform_4, window_bounds = array<i64: 1, 128>}, {pipeline_mode = #tpu.pipeline_mode<synchronous>, transform_indices = @transform_5, window_bounds = array<i64: 128, 128>}, {pipeline_mode = #tpu.pipeline_mode<synchronous>, transform_indices = @transform_6, window_bounds = array<i64: 1, 128>}, {pipeline_mode = #tpu.pipeline_mode<synchronous>, transform_indices = @transform_7, window_bounds = array<i64: 128, 128>}, {pipeline_mode = #tpu.pipeline_mode<synchronous>, transform_indices = @transform_8, window_bounds = array<i64: 1, 128>}, {pipeline_mode = #tpu.pipeline_mode<synchronous>, transform_indices = @transform_9, window_bounds = array<i64: 128, 128>}, {pipeline_mode = #tpu.pipeline_mode<synchronous>, transform_indices = @transform_10, window_bounds = array<i64: 1, 128>}, {transform_indices = @transform_11, window_bounds = array<i64: 1, 16, 16, 128>}]} {
    %c0 = arith.constant 0 : index
    %c0_0 = arith.constant 0 : index
    %c0_1 = arith.constant 0 : index
    %c0_2 = arith.constant 0 : index
    %0 = vector.load %arg1[%c0, %c0_0, %c0_1, %c0_2] : memref<1x16x16x128xf32, #tpu.memory_space<vmem>>, vector<1x16x16x128xf32>
    %1 = vector.shape_cast %0 : vector<1x16x16x128xf32> to vector<16x16x128xf32>
    %2 = vector.shape_cast %1 : vector<16x16x128xf32> to vector<256x128xf32>
    %c0_3 = arith.constant 0 : index
    %c0_4 = arith.constant 0 : index
    %3 = vector.load %arg2[%c0_3, %c0_4] : memref<128x128xf32, #tpu.memory_space<vmem>>, vector<128x128xf32>
    %cst = arith.constant dense<0.000000e+00> : vector<256x128xf32>
    %4 = tpu.matmul %2, %3, %cst {dimension_numbers = #tpu.dot_dimension_numbers<[1], [0], [0], [1], [0, 0, 1, 1], [], []>} : vector<256x128xf32>, vector<128x128xf32>, vector<256x128xf32> -> vector<256x128xf32>
    %c0_5 = arith.constant 0 : index
    %c0_6 = arith.constant 0 : index
    %5 = vector.load %arg3[%c0_5, %c0_6] : memref<1x128xf32, #tpu.memory_space<vmem>>, vector<1x128xf32>
    %6 = vector.broadcast %5 : vector<1x128xf32> to vector<256x128xf32>
    %7 = arith.addf %4, %6 : vector<256x128xf32>
    %cst_7 = arith.constant 3.000000e+00 : f32
    %8 = vector.broadcast %cst_7 : f32 to vector<256x128xf32>
    %9 = arith.addf %7, %8 : vector<256x128xf32>
    %cst_8 = arith.constant 0.000000e+00 : f32
    %cst_9 = arith.constant 6.000000e+00 : f32
    %10 = vector.broadcast %cst_8 : f32 to vector<256x128xf32>
    %11 = arith.maximumf %10, %9 : vector<256x128xf32>
    %12 = vector.broadcast %cst_9 : f32 to vector<256x128xf32>
    %13 = arith.minimumf %12, %11 : vector<256x128xf32>
    %14 = arith.mulf %7, %13 : vector<256x128xf32>
    %cst_10 = arith.constant 6.000000e+00 : f32
    %15 = vector.broadcast %cst_10 : f32 to vector<256x128xf32>
    %16 = arith.divf %14, %15 : vector<256x128xf32>
    %cst_11 = arith.constant 0.000000e+00 : f32
    %17 = vector.broadcast %cst_11 : f32 to vector<18x32x128xf32>
    %c0_12 = arith.constant 0 : index
    %c0_13 = arith.constant 0 : index
    %c0_14 = arith.constant 0 : index
    %18 = vector.load %arg13[%c0_12, %c0_13, %c0_14] : memref<18x32x128xf32, #tpu.memory_space<vmem>>, vector<18x32x128xf32>
    tpu.vector_store %arg13[%c0_12, %c0_13, %c0_14], %17 {strides = array<i32>} : memref<18x32x128xf32, #tpu.memory_space<vmem>>, vector<18x32x128xf32>,
    %19 = vector.shape_cast %16 : vector<256x128xf32> to vector<16x16x128xf32>
    %c1 = arith.constant 1 : index
    %c8 = arith.constant 8 : index
    %c0_15 = arith.constant 0 : index
    %20 = vector.load %arg13[%c1, %c8, %c0_15] : memref<18x32x128xf32, #tpu.memory_space<vmem>>, vector<16x16x128xf32>
    tpu.vector_store %arg13[%c1, %c8, %c0_15], %19 {strides = array<i32>} : memref<18x32x128xf32, #tpu.memory_space<vmem>>, vector<16x16x128xf32>,
    %cst_16 = arith.constant 0.000000e+00 : f32
    %21 = vector.broadcast %cst_16 : f32 to vector<16x16x128xf32>
    %c0_17 = arith.constant 0 : index
    %c7 = arith.constant 7 : index
    %c0_18 = arith.constant 0 : index
    %22 = vector.load %arg13[%c0_17, %c7, %c0_18] : memref<18x32x128xf32, #tpu.memory_space<vmem>>, vector<16x16x128xf32>
    %c0_19 = arith.constant 0 : index
    %c0_20 = arith.constant 0 : index
    %23 = vector.load %arg4[%c0_19, %c0_20] : memref<9x128xf32, #tpu.memory_space<vmem>>, vector<1x128xf32>
    %24 = vector.shape_cast %23 : vector<1x128xf32> to vector<128xf32>
    %25 = vector.shape_cast %24 : vector<128xf32> to vector<1x1x128xf32>
    %26 = vector.broadcast %25 : vector<1x1x128xf32> to vector<16x16x128xf32>
    %27 = arith.mulf %22, %26 : vector<16x16x128xf32>
    %28 = arith.addf %21, %27 : vector<16x16x128xf32>
    %c0_21 = arith.constant 0 : index
    %c8_22 = arith.constant 8 : index
    %c0_23 = arith.constant 0 : index
    %29 = vector.load %arg13[%c0_21, %c8_22, %c0_23] : memref<18x32x128xf32, #tpu.memory_space<vmem>>, vector<16x16x128xf32>
    %c1_24 = arith.constant 1 : index
    %c0_25 = arith.constant 0 : index
    %30 = vector.load %arg4[%c1_24, %c0_25] : memref<9x128xf32, #tpu.memory_space<vmem>>, vector<1x128xf32>
    %31 = vector.shape_cast %30 : vector<1x128xf32> to vector<128xf32>
    %32 = vector.shape_cast %31 : vector<128xf32> to vector<1x1x128xf32>
    %33 = vector.broadcast %32 : vector<1x1x128xf32> to vector<16x16x128xf32>
    %34 = arith.mulf %29, %33 : vector<16x16x128xf32>
    %35 = arith.addf %28, %34 : vector<16x16x128xf32>
    %c0_26 = arith.constant 0 : index
    %c9 = arith.constant 9 : index
    %c0_27 = arith.constant 0 : index
    %36 = vector.load %arg13[%c0_26, %c9, %c0_27] : memref<18x32x128xf32, #tpu.memory_space<vmem>>, vector<16x16x128xf32>
    %c2 = arith.constant 2 : index
    %c0_28 = arith.constant 0 : index
    %37 = vector.load %arg4[%c2, %c0_28] : memref<9x128xf32, #tpu.memory_space<vmem>>, vector<1x128xf32>
    %38 = vector.shape_cast %37 : vector<1x128xf32> to vector<128xf32>
    %39 = vector.shape_cast %38 : vector<128xf32> to vector<1x1x128xf32>
    %40 = vector.broadcast %39 : vector<1x1x128xf32> to vector<16x16x128xf32>
    %41 = arith.mulf %36, %40 : vector<16x16x128xf32>
    %42 = arith.addf %35, %41 : vector<16x16x128xf32>
    %c1_29 = arith.constant 1 : index
    %c7_30 = arith.constant 7 : index
    %c0_31 = arith.constant 0 : index
    %43 = vector.load %arg13[%c1_29, %c7_30, %c0_31] : memref<18x32x128xf32, #tpu.memory_space<vmem>>, vector<16x16x128xf32>
    %c3 = arith.constant 3 : index
    %c0_32 = arith.constant 0 : index
    %44 = vector.load %arg4[%c3, %c0_32] : memref<9x128xf32, #tpu.memory_space<vmem>>, vector<1x128xf32>
    %45 = vector.shape_cast %44 : vector<1x128xf32> to vector<128xf32>
    %46 = vector.shape_cast %45 : vector<128xf32> to vector<1x1x128xf32>
    %47 = vector.broadcast %46 : vector<1x1x128xf32> to vector<16x16x128xf32>
    %48 = arith.mulf %43, %47 : vector<16x16x128xf32>
    %49 = arith.addf %42, %48 : vector<16x16x128xf32>
    %c1_33 = arith.constant 1 : index
    %c8_34 = arith.constant 8 : index
    %c0_35 = arith.constant 0 : index
    %50 = vector.load %arg13[%c1_33, %c8_34, %c0_35] : memref<18x32x128xf32, #tpu.memory_space<vmem>>, vector<16x16x128xf32>
    %c4 = arith.constant 4 : index
    %c0_36 = arith.constant 0 : index
    %51 = vector.load %arg4[%c4, %c0_36] : memref<9x128xf32, #tpu.memory_space<vmem>>, vector<1x128xf32>
    %52 = vector.shape_cast %51 : vector<1x128xf32> to vector<128xf32>
    %53 = vector.shape_cast %52 : vector<128xf32> to vector<1x1x128xf32>
    %54 = vector.broadcast %53 : vector<1x1x128xf32> to vector<16x16x128xf32>
    %55 = arith.mulf %50, %54 : vector<16x16x128xf32>
    %56 = arith.addf %49, %55 : vector<16x16x128xf32>
    %c1_37 = arith.constant 1 : index
    %c9_38 = arith.constant 9 : index
    %c0_39 = arith.constant 0 : index
    %57 = vector.load %arg13[%c1_37, %c9_38, %c0_39] : memref<18x32x128xf32, #tpu.memory_space<vmem>>, vector<16x16x128xf32>
    %c5 = arith.constant 5 : index
    %c0_40 = arith.constant 0 : index
    %58 = vector.load %arg4[%c5, %c0_40] : memref<9x128xf32, #tpu.memory_space<vmem>>, vector<1x128xf32>
    %59 = vector.shape_cast %58 : vector<1x128xf32> to vector<128xf32>
    %60 = vector.shape_cast %59 : vector<128xf32> to vector<1x1x128xf32>
    %61 = vector.broadcast %60 : vector<1x1x128xf32> to vector<16x16x128xf32>
    %62 = arith.mulf %57, %61 : vector<16x16x128xf32>
    %63 = arith.addf %56, %62 : vector<16x16x128xf32>
    %c2_41 = arith.constant 2 : index
    %c7_42 = arith.constant 7 : index
    %c0_43 = arith.constant 0 : index
    %64 = vector.load %arg13[%c2_41, %c7_42, %c0_43] : memref<18x32x128xf32, #tpu.memory_space<vmem>>, vector<16x16x128xf32>
    %c6 = arith.constant 6 : index
    %c0_44 = arith.constant 0 : index
    %65 = vector.load %arg4[%c6, %c0_44] : memref<9x128xf32, #tpu.memory_space<vmem>>, vector<1x128xf32>
    %66 = vector.shape_cast %65 : vector<1x128xf32> to vector<128xf32>
    %67 = vector.shape_cast %66 : vector<128xf32> to vector<1x1x128xf32>
    %68 = vector.broadcast %67 : vector<1x1x128xf32> to vector<16x16x128xf32>
    %69 = arith.mulf %64, %68 : vector<16x16x128xf32>
    %70 = arith.addf %63, %69 : vector<16x16x128xf32>
    %c2_45 = arith.constant 2 : index
    %c8_46 = arith.constant 8 : index
    %c0_47 = arith.constant 0 : index
    %71 = vector.load %arg13[%c2_45, %c8_46, %c0_47] : memref<18x32x128xf32, #tpu.memory_space<vmem>>, vector<16x16x128xf32>
    %c7_48 = arith.constant 7 : index
    %c0_49 = arith.constant 0 : index
    %72 = vector.load %arg4[%c7_48, %c0_49] : memref<9x128xf32, #tpu.memory_space<vmem>>, vector<1x128xf32>
    %73 = vector.shape_cast %72 : vector<1x128xf32> to vector<128xf32>
    %74 = vector.shape_cast %73 : vector<128xf32> to vector<1x1x128xf32>
    %75 = vector.broadcast %74 : vector<1x1x128xf32> to vector<16x16x128xf32>
    %76 = arith.mulf %71, %75 : vector<16x16x128xf32>
    %77 = arith.addf %70, %76 : vector<16x16x128xf32>
    %c2_50 = arith.constant 2 : index
    %c9_51 = arith.constant 9 : index
    %c0_52 = arith.constant 0 : index
    %78 = vector.load %arg13[%c2_50, %c9_51, %c0_52] : memref<18x32x128xf32, #tpu.memory_space<vmem>>, vector<16x16x128xf32>
    %c8_53 = arith.constant 8 : index
    %c0_54 = arith.constant 0 : index
    %79 = vector.load %arg4[%c8_53, %c0_54] : memref<9x128xf32, #tpu.memory_space<vmem>>, vector<1x128xf32>
    %80 = vector.shape_cast %79 : vector<1x128xf32> to vector<128xf32>
    %81 = vector.shape_cast %80 : vector<128xf32> to vector<1x1x128xf32>
    %82 = vector.broadcast %81 : vector<1x1x128xf32> to vector<16x16x128xf32>
    %83 = arith.mulf %78, %82 : vector<16x16x128xf32>
    %84 = arith.addf %77, %83 : vector<16x16x128xf32>
    %c0_55 = arith.constant 0 : index
    %c0_56 = arith.constant 0 : index
    %85 = vector.load %arg5[%c0_55, %c0_56] : memref<1x128xf32, #tpu.memory_space<vmem>>, vector<1x128xf32>
    %86 = vector.shape_cast %85 : vector<1x128xf32> to vector<128xf32>
    %87 = vector.shape_cast %86 : vector<128xf32> to vector<1x1x128xf32>
    %88 = vector.broadcast %87 : vector<1x1x128xf32> to vector<16x16x128xf32>
    %89 = arith.addf %84, %88 : vector<16x16x128xf32>
    %cst_57 = arith.constant 3.000000e+00 : f32
    %90 = vector.broadcast %cst_57 : f32 to vector<16x16x128xf32>
    %91 = arith.addf %89, %90 : vector<16x16x128xf32>
    %cst_58 = arith.constant 0.000000e+00 : f32
    %cst_59 = arith.constant 6.000000e+00 : f32
    %92 = vector.broadcast %cst_58 : f32 to vector<16x16x128xf32>
    %93 = arith.maximumf %92, %91 : vector<16x16x128xf32>
    %94 = vector.broadcast %cst_59 : f32 to vector<16x16x128xf32>
    %95 = arith.minimumf %94, %93 : vector<16x16x128xf32>
    %96 = arith.mulf %89, %95 : vector<16x16x128xf32>
    %cst_60 = arith.constant 6.000000e+00 : f32
    %97 = vector.broadcast %cst_60 : f32 to vector<16x16x128xf32>
    %98 = arith.divf %96, %97 : vector<16x16x128xf32>
    %99 = vector.shape_cast %98 : vector<16x16x128xf32> to vector<256x128xf32>
    %cst_61 = arith.constant dense<0.000000e+00> : vector<128xf32>
    %100 = vector.multi_reduction <add>, %99, %cst_61 [0] : vector<256x128xf32> to vector<128xf32>
    %101 = vector.shape_cast %100 : vector<128xf32> to vector<1x128xf32>
    %cst_62 = arith.constant 2.560000e+02 : f32
    %102 = vector.broadcast %cst_62 : f32 to vector<1x128xf32>
    %103 = arith.divf %101, %102 : vector<1x128xf32>
    %c0_63 = arith.constant 0 : index
    %c0_64 = arith.constant 0 : index
    %104 = vector.load %arg6[%c0_63, %c0_64] : memref<128x128xf32, #tpu.memory_space<vmem>>, vector<128x128xf32>
    %cst_65 = arith.constant dense<0.000000e+00> : vector<1x128xf32>
    %105 = tpu.matmul %103, %104, %cst_65 {dimension_numbers = #tpu.dot_dimension_numbers<[1], [0], [0], [1], [0, 0, 1, 1], [], []>} : vector<1x128xf32>, vector<128x128xf32>, vector<1x128xf32> -> vector<1x128xf32>
    %c0_66 = arith.constant 0 : index
    %c0_67 = arith.constant 0 : index
    %106 = vector.load %arg7[%c0_66, %c0_67] : memref<1x128xf32, #tpu.memory_space<vmem>>, vector<1x128xf32>
    %107 = arith.addf %105, %106 : vector<1x128xf32>
    %cst_68 = arith.constant 0.000000e+00 : f32
    %108 = vector.broadcast %cst_68 : f32 to vector<1x128xf32>
    %109 = arith.maximumf %107, %108 : vector<1x128xf32>
    %c0_69 = arith.constant 0 : index
    %c0_70 = arith.constant 0 : index
    %110 = vector.load %arg8[%c0_69, %c0_70] : memref<128x128xf32, #tpu.memory_space<vmem>>, vector<128x128xf32>
    %cst_71 = arith.constant dense<0.000000e+00> : vector<1x128xf32>
    %111 = tpu.matmul %109, %110, %cst_71 {dimension_numbers = #tpu.dot_dimension_numbers<[1], [0], [0], [1], [0, 0, 1, 1], [], []>} : vector<1x128xf32>, vector<128x128xf32>, vector<1x128xf32> -> vector<1x128xf32>
    %c0_72 = arith.constant 0 : index
    %c0_73 = arith.constant 0 : index
    %112 = vector.load %arg9[%c0_72, %c0_73] : memref<1x128xf32, #tpu.memory_space<vmem>>, vector<1x128xf32>
    %113 = arith.addf %111, %112 : vector<1x128xf32>
    %cst_74 = arith.constant 1.200000e+00 : f32
    %114 = vector.broadcast %cst_74 : f32 to vector<1x128xf32>
    %115 = arith.mulf %114, %113 : vector<1x128xf32>
    %cst_75 = arith.constant 3.000000e+00 : f32
    %116 = vector.broadcast %cst_75 : f32 to vector<1x128xf32>
    %117 = arith.addf %115, %116 : vector<1x128xf32>
    %cst_76 = arith.constant 0.000000e+00 : f32
    %cst_77 = arith.constant 6.000000e+00 : f32
    %118 = vector.broadcast %cst_76 : f32 to vector<1x128xf32>
    %119 = arith.maximumf %118, %117 : vector<1x128xf32>
    %120 = vector.broadcast %cst_77 : f32 to vector<1x128xf32>
    %121 = arith.minimumf %120, %119 : vector<1x128xf32>
    %cst_78 = arith.constant 6.000000e+00 : f32
    %122 = vector.broadcast %cst_78 : f32 to vector<1x128xf32>
    %123 = arith.divf %121, %122 : vector<1x128xf32>
    %124 = vector.shape_cast %123 : vector<1x128xf32> to vector<128xf32>
    %125 = vector.shape_cast %124 : vector<128xf32> to vector<1x1x128xf32>
    %126 = vector.broadcast %125 : vector<1x1x128xf32> to vector<16x16x128xf32>
    %127 = arith.mulf %98, %126 : vector<16x16x128xf32>
    %128 = vector.shape_cast %127 : vector<16x16x128xf32> to vector<256x128xf32>
    %c0_79 = arith.constant 0 : index
    %c0_80 = arith.constant 0 : index
    %129 = vector.load %arg10[%c0_79, %c0_80] : memref<128x128xf32, #tpu.memory_space<vmem>>, vector<128x128xf32>
    %cst_81 = arith.constant dense<0.000000e+00> : vector<256x128xf32>
    %130 = tpu.matmul %128, %129, %cst_81 {dimension_numbers = #tpu.dot_dimension_numbers<[1], [0], [0], [1], [0, 0, 1, 1], [], []>} : vector<256x128xf32>, vector<128x128xf32>, vector<256x128xf32> -> vector<256x128xf32>
    %c0_82 = arith.constant 0 : index
    %c0_83 = arith.constant 0 : index
    %131 = vector.load %arg11[%c0_82, %c0_83] : memref<1x128xf32, #tpu.memory_space<vmem>>, vector<1x128xf32>
    %132 = vector.broadcast %131 : vector<1x128xf32> to vector<256x128xf32>
    %133 = arith.addf %130, %132 : vector<256x128xf32>
    %134 = vector.shape_cast %133 : vector<256x128xf32> to vector<16x16x128xf32>
    %c0_84 = arith.constant 0 : index
    %c0_85 = arith.constant 0 : index
    %c0_86 = arith.constant 0 : index
    %c0_87 = arith.constant 0 : index
    %135 = vector.load %arg1[%c0_84, %c0_85, %c0_86, %c0_87] : memref<1x16x16x128xf32, #tpu.memory_space<vmem>>, vector<1x16x16x128xf32>
    %136 = vector.shape_cast %135 : vector<1x16x16x128xf32> to vector<16x16x128xf32>
    %137 = arith.addf %134, %136 : vector<16x16x128xf32>
    %c0_88 = arith.constant 0 : index
    %c0_89 = arith.constant 0 : index
    %c0_90 = arith.constant 0 : index
    %c0_91 = arith.constant 0 : index
    %138 = vector.load %arg12[%c0_88, %c0_89, %c0_90, %c0_91] : memref<1x16x16x128xf32, #tpu.memory_space<vmem>>, vector<1x16x16x128xf32>
    %139 = vector.shape_cast %138 : vector<1x16x16x128xf32> to vector<16x16x128xf32>
    %140 = vector.shape_cast %137 : vector<16x16x128xf32> to vector<1x16x16x128xf32>
    tpu.vector_store %arg12[%c0_88, %c0_89, %c0_90, %c0_91], %140 {strides = array<i32>} : memref<1x16x16x128xf32, #tpu.memory_space<vmem>>, vector<1x16x16x128xf32>,
    return
  }
  func.func @transform_0(%arg0: i32) -> (i32, i32, i32, i32) {
    %c0_i32 = arith.constant 0 : i32
    %c0_i32_0 = arith.constant 0 : i32
    %c0_i32_1 = arith.constant 0 : i32
    %c0_i32_2 = arith.constant 0 : i32
    return %arg0, %c0_i32, %c0_i32_0, %c0_i32_1 : i32, i32, i32, i32
  }
  func.func @transform_1(%arg0: i32) -> (i32, i32) {
    %c0_i32 = arith.constant 0 : i32
    %c0_i32_0 = arith.constant 0 : i32
    %c0_i32_1 = arith.constant 0 : i32
    return %c0_i32, %c0_i32_0 : i32, i32
  }
  func.func @transform_2(%arg0: i32) -> (i32, i32) {
    %c0_i32 = arith.constant 0 : i32
    %c0_i32_0 = arith.constant 0 : i32
    %c0_i32_1 = arith.constant 0 : i32
    return %c0_i32, %c0_i32_0 : i32, i32
  }
  func.func @transform_3(%arg0: i32) -> (i32, i32) {
    %c0_i32 = arith.constant 0 : i32
    %c0_i32_0 = arith.constant 0 : i32
    %c0_i32_1 = arith.constant 0 : i32
    return %c0_i32, %c0_i32_0 : i32, i32
  }
  func.func @transform_4(%arg0: i32) -> (i32, i32) {
    %c0_i32 = arith.constant 0 : i32
    %c0_i32_0 = arith.constant 0 : i32
    %c0_i32_1 = arith.constant 0 : i32
    return %c0_i32, %c0_i32_0 : i32, i32
  }
  func.func @transform_5(%arg0: i32) -> (i32, i32) {
    %c0_i32 = arith.constant 0 : i32
    %c0_i32_0 = arith.constant 0 : i32
    %c0_i32_1 = arith.constant 0 : i32
    return %c0_i32, %c0_i32_0 : i32, i32
  }
  func.func @transform_6(%arg0: i32) -> (i32, i32) {
    %c0_i32 = arith.constant 0 : i32
    %c0_i32_0 = arith.constant 0 : i32
    %c0_i32_1 = arith.constant 0 : i32
    return %c0_i32, %c0_i32_0 : i32, i32
  }
  func.func @transform_7(%arg0: i32) -> (i32, i32) {
    %c0_i32 = arith.constant 0 : i32
    %c0_i32_0 = arith.constant 0 : i32
    %c0_i32_1 = arith.constant 0 : i32
    return %c0_i32, %c0_i32_0 : i32, i32
  }
  func.func @transform_8(%arg0: i32) -> (i32, i32) {
    %c0_i32 = arith.constant 0 : i32
    %c0_i32_0 = arith.constant 0 : i32
    %c0_i32_1 = arith.constant 0 : i32
    return %c0_i32, %c0_i32_0 : i32, i32
  }
  func.func @transform_9(%arg0: i32) -> (i32, i32) {
    %c0_i32 = arith.constant 0 : i32
    %c0_i32_0 = arith.constant 0 : i32
    %c0_i32_1 = arith.constant 0 : i32
    return %c0_i32, %c0_i32_0 : i32, i32
  }
  func.func @transform_10(%arg0: i32) -> (i32, i32) {
    %c0_i32 = arith.constant 0 : i32
    %c0_i32_0 = arith.constant 0 : i32
    %c0_i32_1 = arith.constant 0 : i32
    return %c0_i32, %c0_i32_0 : i32, i32
  }
  func.func @transform_11(%arg0: i32) -> (i32, i32, i32, i32) {
    %c0_i32 = arith.constant 0 : i32
    %c0_i32_0 = arith.constant 0 : i32
    %c0_i32_1 = arith.constant 0 : i32
    %c0_i32_2 = arith.constant 0 : i32
    return %arg0, %c0_i32, %c0_i32_0, %c0_i32_1 : i32, i32, i32, i32
  }
}

</mosaic_0001>

<llo_original>
// kernel: residual_unit_forward.1
$region0: #{residual_unit_forward.1}
  #allocation0 [shape = 'u32[]', space=smem, size = 0x4, offset = 0x4, fixed_abs, tag = 'smem constant byte address 0x4 - core index']
  #allocation1 [shape = 'u32[144,128]{1,0:T(1,128)}', space=vmem, size = 0x12000, scoped, tag = 'internal scratch']
  #allocation2 [shape = 'f32[18,32,128]{2,1,0:T(8,128)}', space=vmem, size = 0x48000, scoped, tag = 'scratch operand']
  %s0 = inlined_call_operand.vmem [shape: f32[2,16,16,128], index: 0, kind: input, shape index: {}]
  %s1 = inlined_call_operand.vmem [shape: f32[128,128], index: 1, kind: input, shape index: {}]
  %s2 = inlined_call_operand.vmem [shape: f32[1,128], index: 2, kind: input, shape index: {}]
  %s3 = inlined_call_operand.vmem [shape: f32[9,128], index: 3, kind: input, shape index: {}]
  %s4 = inlined_call_operand.vmem [shape: f32[1,128], index: 4, kind: input, shape index: {}]
  %s5 = inlined_call_operand.vmem [shape: f32[128,128], index: 5, kind: input, shape index: {}]
  %s6 = inlined_call_operand.vmem [shape: f32[1,128], index: 6, kind: input, shape index: {}]
  %s7 = inlined_call_operand.vmem [shape: f32[128,128], index: 7, kind: input, shape index: {}]
  %s8 = inlined_call_operand.vmem [shape: f32[1,128], index: 8, kind: input, shape index: {}]
  %s9 = inlined_call_operand.vmem [shape: f32[128,128], index: 9, kind: input, shape index: {}]
  %s10 = inlined_call_operand.vmem [shape: f32[1,128], index: 10, kind: input, shape index: {}]
  %s11 = inlined_call_operand.vmem [shape: f32[2,16,16,128], index: 11, kind: output, shape index: {}]
  %s12 = sld [smem:[#allocation0]]
  $region77: #{residual_unit_forward.1} parent=0
    _
  %s14 = ssub.s32 1, %s12
  %s15 = scalar_select 0, %s14, %s12
  loop: start=0, step=1, limit=4
  $region2: #{residual_unit_forward.1} parent=0 // loop_pre_header
    _
  $region3: #{residual_unit_forward.1} parent=0 // loop_header
    %s17 = sphi 0, %s21
    %p18 = scmp.ge.s32.totalorder %s17, 4
    %s27 = sphi 0, %s29
    %s30 = sphi 0, %s27
    %s31 = sphi 0, %s30
    %s47 = sphi 0, %s31
    %s51 = sphi 0, %s51
    %s53 = sphi 0, %s51
    %s54 = sphi 0, %s53
    %s68 = sphi 0, %s54
    %s72 = sphi 0, %s72
    %s74 = sphi 0, %s72
    %s75 = sphi 0, %s74
    %s89 = sphi 0, %s75
    %s93 = sphi 0, %s93
    %s95 = sphi 0, %s93
    %s96 = sphi 0, %s95
    %s110 = sphi 0, %s96
    %s114 = sphi 0, %s114
    %s116 = sphi 0, %s114
    %s117 = sphi 0, %s116
    %s131 = sphi 0, %s117
    %s135 = sphi 0, %s135
    %s137 = sphi 0, %s135
    %s138 = sphi 0, %s137
    %s152 = sphi 0, %s138
    %s156 = sphi 0, %s156
    %s158 = sphi 0, %s156
    %s159 = sphi 0, %s158
    %s173 = sphi 0, %s159
    %s177 = sphi 0, %s177
    %s179 = sphi 0, %s177
    %s180 = sphi 0, %s179
    %s194 = sphi 0, %s180
    %s198 = sphi 0, %s198
    %s200 = sphi 0, %s198
    %s201 = sphi 0, %s200
    %s215 = sphi 0, %s201
    %s219 = sphi 0, %s219
    %s221 = sphi 0, %s219
    %s222 = sphi 0, %s221
    %s236 = sphi 0, %s222
    %s240 = sphi 0, %s240
    %s242 = sphi 0, %s240
    %s243 = sphi 0, %s242
    %s257 = sphi 0, %s243
    %s263 = sphi 0, %s265
    %s266 = sphi 0, %s263
    %s267 = sphi 0, %s266
    %s283 = sphi 0, %s267
  $region4: #{residual_unit_forward.1} parent=0 // loop_header_branch
    %20 = sbr.rel (%p18) target = $region8
  $region5: #{residual_unit_forward.1} parent=0 // loop_body
    %s22 = ssub.s32 %s17, 1
    %s23 = ssub.s32 %s17, 2
    %s24 = sadd.s32 %s17, 1
    %s25 = ssub.s32 %s17, %s24
    %p26 = scmp.eq.s32.totalorder %s25, 0
    %s28 = sadd.s32 %s27, 1
    %s29 = scalar_select %p26, %s27, %s28
    %p32 = pneg %p26
    %p33 = scmp.eq.s32.totalorder %s17, 1
    %p34 = por %p32, %p33
    %p35 = scmp.ne.s32.totalorder %s27, %s30
    %p36 = scmp.eq.s32.totalorder %s17, 0
    %p37 = por %p35, %p36
    %p38 = scmp.ne.s32.totalorder %s27, %s30
    %p39 = scmp.eq.s32.totalorder %s22, 1
    %p40 = por %p38, %p39
    %p41 = scmp.ne.s32.totalorder %s30, %s31
    %p42 = scmp.eq.s32.totalorder %s22, 0
    %p43 = por %p41, %p42
    %p44 = scmp.ne.s32.totalorder %s30, %s31
    %p45 = scmp.eq.s32.totalorder %s23, 1
    %p46 = por %p44, %p45
    %p48 = scmp.ne.s32.totalorder %s31, %s47
    %p49 = scmp.eq.s32.totalorder %s23, 0
    %p50 = por %p48, %p49
    %s52 = sadd.s32 %s51, 1
    %p55 = scmp.eq.s32.totalorder %s17, 1
    %p56 = scmp.ne.s32.totalorder %s51, %s53
    %p57 = scmp.eq.s32.totalorder %s17, 0
    %p58 = por %p56, %p57
    %p59 = scmp.ne.s32.totalorder %s51, %s53
    %p60 = scmp.eq.s32.totalorder %s22, 1
    %p61 = por %p59, %p60
    %p62 = scmp.ne.s32.totalorder %s53, %s54
    %p63 = scmp.eq.s32.totalorder %s22, 0
    %p64 = por %p62, %p63
    %p65 = scmp.ne.s32.totalorder %s53, %s54
    %p66 = scmp.eq.s32.totalorder %s23, 1
    %p67 = por %p65, %p66
    %p69 = scmp.ne.s32.totalorder %s54, %s68
    %p70 = scmp.eq.s32.totalorder %s23, 0
    %p71 = por %p69, %p70
    %s73 = sadd.s32 %s72, 1
    %p76 = scmp.eq.s32.totalorder %s17, 1
    %p77 = scmp.ne.s32.totalorder %s72, %s74
    %p78 = scmp.eq.s32.totalorder %s17, 0
    %p79 = por %p77, %p78
    %p80 = scmp.ne.s32.totalorder %s72, %s74
    %p81 = scmp.eq.s32.totalorder %s22, 1
    %p82 = por %p80, %p81
    %p83 = scmp.ne.s32.totalorder %s74, %s75
    %p84 = scmp.eq.s32.totalorder %s22, 0
    %p85 = por %p83, %p84
    %p86 = scmp.ne.s32.totalorder %s74, %s75
    %p87 = scmp.eq.s32.totalorder %s23, 1
    %p88 = por %p86, %p87
    %p90 = scmp.ne.s32.totalorder %s75, %s89
    %p91 = scmp.eq.s32.totalorder %s23, 0
    %p92 = por %p90, %p91
    %s94 = sadd.s32 %s93, 1
    %p97 = scmp.eq.s32.totalorder %s17, 1
    %p98 = scmp.ne.s32.totalorder %s93, %s95
    %p99 = scmp.eq.s32.totalorder %s17, 0
    %p100 = por %p98, %p99
    %p101 = scmp.ne.s32.totalorder %s93, %s95
    %p102 = scmp.eq.s32.totalorder %s22, 1
    %p103 = por %p101, %p102
    %p104 = scmp.ne.s32.totalorder %s95, %s96
    %p105 = scmp.eq.s32.totalorder %s22, 0
    %p106 = por %p104, %p105
    %p107 = scmp.ne.s32.totalorder %s95, %s96
    %p108 = scmp.eq.s32.totalorder %s23, 1
    %p109 = por %p107, %p108
    %p111 = scmp.ne.s32.totalorder %s96, %s110
    %p112 = scmp.eq.s32.totalorder %s23, 0
    %p113 = por %p111, %p112
    %s115 = sadd.s32 %s114, 1
    %p118 = scmp.eq.s32.totalorder %s17, 1
    %p119 = scmp.ne.s32.totalorder %s114, %s116
    %p120 = scmp.eq.s32.totalorder %s17, 0
    %p121 = por %p119, %p120
    %p122 = scmp.ne.s32.totalorder %s114, %s116
    %p123 = scmp.eq.s32.totalorder %s22, 1
    %p124 = por %p122, %p123
    %p125 = scmp.ne.s32.totalorder %s116, %s117
    %p126 = scmp.eq.s32.totalorder %s22, 0
    %p127 = por %p125, %p126
    %p128 = scmp.ne.s32.totalorder %s116, %s117
    %p129 = scmp.eq.s32.totalorder %s23, 1
    %p130 = por %p128, %p129
    %p132 = scmp.ne.s32.totalorder %s117, %s131
    %p133 = scmp.eq.s32.totalorder %s23, 0
    %p134 = por %p132, %p133
    %s136 = sadd.s32 %s135, 1
    %p139 = scmp.eq.s32.totalorder %s17, 1
    %p140 = scmp.ne.s32.totalorder %s135, %s137
    %p141 = scmp.eq.s32.totalorder %s17, 0
    %p142 = por %p140, %p141
    %p143 = scmp.ne.s32.totalorder %s135, %s137
    %p144 = scmp.eq.s32.totalorder %s22, 1
    %p145 = por %p143, %p144
    %p146 = scmp.ne.s32.totalorder %s137, %s138
    %p147 = scmp.eq.s32.totalorder %s22, 0
    %p148 = por %p146, %p147
    %p149 = scmp.ne.s32.totalorder %s137, %s138
    %p150 = scmp.eq.s32.totalorder %s23, 1
    %p151 = por %p149, %p150
    %p153 = scmp.ne.s32.totalorder %s138, %s152
    %p154 = scmp.eq.s32.totalorder %s23, 0
    %p155 = por %p153, %p154
    %s157 = sadd.s32 %s156, 1
    %p160 = scmp.eq.s32.totalorder %s17, 1
    %p161 = scmp.ne.s32.totalorder %s156, %s158
    %p162 = scmp.eq.s32.totalorder %s17, 0
    %p163 = por %p161, %p162
    %p164 = scmp.ne.s32.totalorder %s156, %s158
    %p165 = scmp.eq.s32.totalorder %s22, 1
    %p166 = por %p164, %p165
    %p167 = scmp.ne.s32.totalorder %s158, %s159
    %p168 = scmp.eq.s32.totalorder %s22, 0
    %p169 = por %p167, %p168
    %p170 = scmp.ne.s32.totalorder %s158, %s159
    %p171 = scmp.eq.s32.totalorder %s23, 1
    %p172 = por %p170, %p171
    %p174 = scmp.ne.s32.totalorder %s159, %s173
    %p175 = scmp.eq.s32.totalorder %s23, 0
    %p176 = por %p174, %p175
    %s178 = sadd.s32 %s177, 1
    %p181 = scmp.eq.s32.totalorder %s17, 1
    %p182 = scmp.ne.s32.totalorder %s177, %s179
    %p183 = scmp.eq.s32.totalorder %s17, 0
    %p184 = por %p182, %p183
    %p185 = scmp.ne.s32.totalorder %s177, %s179
    %p186 = scmp.eq.s32.totalorder %s22, 1
    %p187 = por %p185, %p186
    %p188 = scmp.ne.s32.totalorder %s179, %s180
    %p189 = scmp.eq.s32.totalorder %s22, 0
    %p190 = por %p188, %p189
    %p191 = scmp.ne.s32.totalorder %s179, %s180
    %p192 = scmp.eq.s32.totalorder %s23, 1
    %p193 = por %p191, %p192
    %p195 = scmp.ne.s32.totalorder %s180, %s194
    %p196 = scmp.eq.s32.totalorder %s23, 0
    %p197 = por %p195, %p196
    %s199 = sadd.s32 %s198, 1
    %p202 = scmp.eq.s32.totalorder %s17, 1
    %p203 = scmp.ne.s32.totalorder %s198, %s200
    %p204 = scmp.eq.s32.totalorder %s17, 0
    %p205 = por %p203, %p204
    %p206 = scmp.ne.s32.totalorder %s198, %s200
    %p207 = scmp.eq.s32.totalorder %s22, 1
    %p208 = por %p206, %p207
    %p209 = scmp.ne.s32.totalorder %s200, %s201
    %p210 = scmp.eq.s32.totalorder %s22, 0
    %p211 = por %p209, %p210
    %p212 = scmp.ne.s32.totalorder %s200, %s201
    %p213 = scmp.eq.s32.totalorder %s23, 1
    %p214 = por %p212, %p213
    %p216 = scmp.ne.s32.totalorder %s201, %s215
    %p217 = scmp.eq.s32.totalorder %s23, 0
    %p218 = por %p216, %p217
    %s220 = sadd.s32 %s219, 1
    %p223 = scmp.eq.s32.totalorder %s17, 1
    %p224 = scmp.ne.s32.totalorder %s219, %s221
    %p225 = scmp.eq.s32.totalorder %s17, 0
    %p226 = por %p224, %p225
    %p227 = scmp.ne.s32.totalorder %s219, %s221
    %p228 = scmp.eq.s32.totalorder %s22, 1
    %p229 = por %p227, %p228
    %p230 = scmp.ne.s32.totalorder %s221, %s222
    %p231 = scmp.eq.s32.totalorder %s22, 0
    %p232 = por %p230, %p231
    %p233 = scmp.ne.s32.totalorder %s221, %s222
    %p234 = scmp.eq.s32.totalorder %s23, 1
    %p235 = por %p233, %p234
    %p237 = scmp.ne.s32.totalorder %s222, %s236
    %p238 = scmp.eq.s32.totalorder %s23, 0
    %p239 = por %p237, %p238
    %s241 = sadd.s32 %s240, 1
    %p244 = scmp.eq.s32.totalorder %s17, 1
    %p245 = scmp.ne.s32.totalorder %s240, %s242
    %p246 = scmp.eq.s32.totalorder %s17, 0
    %p247 = por %p245, %p246
    %p248 = scmp.ne.s32.totalorder %s240, %s242
    %p249 = scmp.eq.s32.totalorder %s22, 1
    %p250 = por %p248, %p249
    %p251 = scmp.ne.s32.totalorder %s242, %s243
    %p252 = scmp.eq.s32.totalorder %s22, 0
    %p253 = por %p251, %p252
    %p254 = scmp.ne.s32.totalorder %s242, %s243
    %p255 = scmp.eq.s32.totalorder %s23, 1
    %p256 = por %p254, %p255
    %p258 = scmp.ne.s32.totalorder %s243, %s257
    %p259 = scmp.eq.s32.totalorder %s23, 0
    %p260 = por %p258, %p259
    %s261 = ssub.s32 %s17, %s24
    %p262 = scmp.eq.s32.totalorder %s261, 0
    %s264 = sadd.s32 %s263, 1
    %s265 = scalar_select %p262, %s263, %s264
    %p268 = pneg %p262
    %p269 = scmp.eq.s32.totalorder %s17, 1
    %p270 = por %p268, %p269
    %p271 = scmp.ne.s32.totalorder %s263, %s266
    %p272 = scmp.eq.s32.totalorder %s17, 0
    %p273 = por %p271, %p272
    %p274 = scmp.ne.s32.totalorder %s263, %s266
    %p275 = scmp.eq.s32.totalorder %s22, 1
    %p276 = por %p274, %p275
    %p277 = scmp.ne.s32.totalorder %s266, %s267
    %p278 = scmp.eq.s32.totalorder %s22, 0
    %p279 = por %p277, %p278
    %p280 = scmp.ne.s32.totalorder %s266, %s267
    %p281 = scmp.eq.s32.totalorder %s23, 1
    %p282 = por %p280, %p281
    %p284 = scmp.ne.s32.totalorder %s267, %s283
    %p285 = scmp.eq.s32.totalorder %s23, 0
    %p286 = por %p284, %p285
    %p287 = scmp.le.s32.totalorder 1, %s17
    %p288 = scmp.lt.s32.totalorder %s17, 3
    %p289 = pnand %p287, %p288
    %p290 = pneg %p289
    // Predicated region
    $region9: #{residual_unit_forward.1} parent=5 // pred_check
      _
    $region10: #{residual_unit_forward.1} parent=5 // pred_check_branch
      %292 = sbr.rel (%p289) target = $region12
    $region11: #{residual_unit_forward.1} parent=5 // pred_region
      %s293 = ssub.s32 %s17, 1
      // Predicated region
      $region13: #{residual_unit_forward.1} parent=11 // pred_check
        %p294 = pneg %p64
      $region14: #{residual_unit_forward.1} parent=11 // pred_check_branch
        %296 = sbr.rel (%p294) target = $region16
      $region15: #{residual_unit_forward.1} parent=11 // pred_region
        _
      $region16: #{residual_unit_forward.1} parent=11 // pred_fallthru
        _
      // Predicated region
      $region17: #{residual_unit_forward.1} parent=11 // pred_check
        %p297 = pneg %p85
      $region18: #{residual_unit_forward.1} parent=11 // pred_check_branch
        %299 = sbr.rel (%p297) target = $region20
      $region19: #{residual_unit_forward.1} parent=11 // pred_region
        _
      $region20: #{residual_unit_forward.1} parent=11 // pred_fallthru
        _
      // Predicated region
      $region21: #{residual_unit_forward.1} parent=11 // pred_check
        %p300 = pneg %p106
      $region22: #{residual_unit_forward.1} parent=11 // pred_check_branch
        %302 = sbr.rel (%p300) target = $region24
      $region23: #{residual_unit_forward.1} parent=11 // pred_region
        _
      $region24: #{residual_unit_forward.1} parent=11 // pred_fallthru
        _
      // Predicated region
      $region25: #{residual_unit_forward.1} parent=11 // pred_check
        %p303 = pneg %p127
      $region26: #{residual_unit_forward.1} parent=11 // pred_check_branch
        %305 = sbr.rel (%p303) target = $region28
      $region27: #{residual_unit_forward.1} parent=11 // pred_region
        _
      $region28: #{residual_unit_forward.1} parent=11 // pred_fallthru
        _
      // Predicated region
      $region29: #{residual_unit_forward.1} parent=11 // pred_check
        %p306 = pneg %p148
      $region30: #{residual_unit_forward.1} parent=11 // pred_check_branch
        %308 = sbr.rel (%p306) target = $region32
      $region31: #{residual_unit_forward.1} parent=11 // pred_region
        _
      $region32: #{residual_unit_forward.1} parent=11 // pred_fallthru
        _
      // Predicated region
      $region33: #{residual_unit_forward.1} parent=11 // pred_check
        %p309 = pneg %p169
      $region34: #{residual_unit_forward.1} parent=11 // pred_check_branch
        %311 = sbr.rel (%p309) target = $region36
      $region35: #{residual_unit_forward.1} parent=11 // pred_region
        _
      $region36: #{residual_unit_forward.1} parent=11 // pred_fallthru
        _
      // Predicated region
      $region37: #{residual_unit_forward.1} parent=11 // pred_check
        %p312 = pneg %p190
      $region38: #{residual_unit_forward.1} parent=11 // pred_check_branch
        %314 = sbr.rel (%p312) target = $region40
      $region39: #{residual_unit_forward.1} parent=11 // pred_region
        _
      $region40: #{residual_unit_forward.1} parent=11 // pred_fallthru
        _
      // Predicated region
      $region41: #{residual_unit_forward.1} parent=11 // pred_check
        %p315 = pneg %p211
      $region42: #{residual_unit_forward.1} parent=11 // pred_check_branch
        %317 = sbr.rel (%p315) target = $region44
      $region43: #{residual_unit_forward.1} parent=11 // pred_region
        _
      $region44: #{residual_unit_forward.1} parent=11 // pred_fallthru
        _
      // Predicated region
      $region45: #{residual_unit_forward.1} parent=11 // pred_check
        %p318 = pneg %p232
      $region46: #{residual_unit_forward.1} parent=11 // pred_check_branch
        %320 = sbr.rel (%p318) target = $region48
      $region47: #{residual_unit_forward.1} parent=11 // pred_region
        _
      $region48: #{residual_unit_forward.1} parent=11 // pred_fallthru
        _
      // Predicated region
      $region49: #{residual_unit_forward.1} parent=11 // pred_check
        %p321 = pneg %p253
      $region50: #{residual_unit_forward.1} parent=11 // pred_check_branch
        %323 = sbr.rel (%p321) target = $region52
      $region51: #{residual_unit_forward.1} parent=11 // pred_region
        _
      $region52: #{residual_unit_forward.1} parent=11 // pred_fallthru
        _
    $region12: #{residual_unit_forward.1} parent=5 // pred_fallthru
      _
    %p324 = scmp.lt.s32.totalorder %s17, 2
    // Predicated region
    $region53: #{residual_unit_forward.1} parent=5 // pred_check
      %p325 = pneg %p324
    $region54: #{residual_unit_forward.1} parent=5 // pred_check_branch
      %327 = sbr.rel (%p325) target = $region56
    $region55: #{residual_unit_forward.1} parent=5 // pred_region
      // Predicated region
      $region57: #{residual_unit_forward.1} parent=55 // pred_check
        %p328 = pneg %p37
      $region58: #{residual_unit_forward.1} parent=55 // pred_check_branch
        %330 = sbr.rel (%p328) target = $region60
      $region59: #{residual_unit_forward.1} parent=55 // pred_region
        %p331 = scmp.lt.s32.totalorder %s17, 1
        %s332 = scalar_select %p331, %s17, 1
        %s333 = smul.addr %s332, 32
        %s334 = smul.addr %s333, 8
        %s335 = scalar_lea.vmem %s0, %s334
      $region60: #{residual_unit_forward.1} parent=55 // pred_fallthru
        _
    $region56: #{residual_unit_forward.1} parent=5 // pred_fallthru
      _
    %p336 = scmp.le.s32.totalorder 1, %s17
    %p337 = scmp.lt.s32.totalorder %s17, 3
    %p338 = pnand %p336, %p337
    %p339 = pneg %p338
    // Predicated region
    $region61: #{residual_unit_forward.1} parent=5 // pred_check
      _
    $region62: #{residual_unit_forward.1} parent=5 // pred_check_branch
      %341 = sbr.rel (%p338) target = $region64
    $region63: #{residual_unit_forward.1} parent=5 // pred_region
      %s342 = ssub.s32 %s17, 1
      %p343 = scmp.lt.s32.totalorder %s22, 1
      %s344 = scalar_select %p343, %s22, 1
      %s345 = smul.addr %s344, 32
      %s346 = smul.addr %s345, 8
      %s347 = scalar_lea.vmem %s0, %s346
      %p348 = pneg %p43
      %p349 = pneg %p40
      %p350 = pneg %p64
      %p351 = pneg %p61
      %p352 = pneg %p85
      %p353 = pneg %p82
      %p354 = pneg %p106
      %p355 = pneg %p103
      %p356 = pneg %p127
      %p357 = pneg %p124
      %p358 = pneg %p148
      %p359 = pneg %p145
      %p360 = pneg %p169
      %p361 = pneg %p166
      %p362 = pneg %p190
      %p363 = pneg %p187
      %p364 = pneg %p211
      %p365 = pneg %p208
      %p366 = pneg %p232
      %p367 = pneg %p229
      %p368 = pneg %p253
      %p369 = pneg %p250
      %p370 = pneg %p279
      %p371 = pneg %p276
      %p372 = scmp.lt.s32.totalorder %s22, 1
      %s373 = scalar_select %p372, %s22, 1
      %s374 = smul.addr %s373, 32
      %s375 = smul.addr %s374, 8
      %s376 = scalar_lea.vmem %s11, %s375
      %p377 = scmp.lt.s32.totalorder %s22, 1
      %s378 = scalar_select %p377, %s22, 1
      %s379 = smul.addr %s378, 32
      %s380 = smul.addr %s379, 8
      %s381 = scalar_lea.vmem %s0, %s380
      %p382 = scmp.lt.s32.totalorder %s22, 1
      %s383 = scalar_select %p382, %s22, 1
      %s384 = smul.addr %s383, 32
      %s385 = smul.addr %s384, 8
      %s386 = scalar_lea.vmem %s11, %s385
      %v387 = vld [vmem:[%s381] sm:$0xff]
      %v388 = vld [vmem:[%s381 + $0x8] sm:$0xff]
      %v389 = vld [vmem:[%s381 + $0x10] sm:$0xff]
      %v390 = vld [vmem:[%s381 + $0x18] sm:$0xff]
      %v391 = vld [vmem:[%s381 + $0x20] sm:$0xff]
      %v392 = vld [vmem:[%s381 + $0x28] sm:$0xff]
      %v393 = vld [vmem:[%s381 + $0x30] sm:$0xff]
      %v394 = vld [vmem:[%s381 + $0x38] sm:$0xff]
      %v395 = vld [vmem:[%s381 + $0x40] sm:$0xff]
      %v396 = vld [vmem:[%s381 + $0x48] sm:$0xff]
      %v397 = vld [vmem:[%s381 + $0x50] sm:$0xff]
      %v398 = vld [vmem:[%s381 + $0x58] sm:$0xff]
      %v399 = vld [vmem:[%s381 + $0x60] sm:$0xff]
      %v400 = vld [vmem:[%s381 + $0x68] sm:$0xff]
      %v401 = vld [vmem:[%s381 + $0x70] sm:$0xff]
      %v402 = vld [vmem:[%s381 + $0x78] sm:$0xff]
      %v403 = vld [vmem:[%s381 + $0x80] sm:$0xff]
      %v404 = vld [vmem:[%s381 + $0x88] sm:$0xff]
      %v405 = vld [vmem:[%s381 + $0x90] sm:$0xff]
      %v406 = vld [vmem:[%s381 + $0x98] sm:$0xff]
      %v407 = vld [vmem:[%s381 + $0xa0] sm:$0xff]
      %v408 = vld [vmem:[%s381 + $0xa8] sm:$0xff]
      %v409 = vld [vmem:[%s381 + $0xb0] sm:$0xff]
      %v410 = vld [vmem:[%s381 + $0xb8] sm:$0xff]
      %v411 = vld [vmem:[%s381 + $0xc0] sm:$0xff]
      %v412 = vld [vmem:[%s381 + $0xc8] sm:$0xff]
      %v413 = vld [vmem:[%s381 + $0xd0] sm:$0xff]
      %v414 = vld [vmem:[%s381 + $0xd8] sm:$0xff]
      %v415 = vld [vmem:[%s381 + $0xe0] sm:$0xff]
      %v416 = vld [vmem:[%s381 + $0xe8] sm:$0xff]
      %v417 = vld [vmem:[%s381 + $0xf0] sm:$0xff]
      %v418 = vld [vmem:[%s381 + $0xf8] sm:$0xff]
      %v419 = vld [vmem:[%s1] sm:$0xff]
      %v420 = vld [vmem:[%s1 + $0x8] sm:$0xff]
      %v421 = vld [vmem:[%s1 + $0x10] sm:$0xff]
      %v422 = vld [vmem:[%s1 + $0x18] sm:$0xff]
      %v423 = vld [vmem:[%s1 + $0x20] sm:$0xff]
      %v424 = vld [vmem:[%s1 + $0x28] sm:$0xff]
      %v425 = vld [vmem:[%s1 + $0x30] sm:$0xff]
      %v426 = vld [vmem:[%s1 + $0x38] sm:$0xff]
      %v427 = vld [vmem:[%s1 + $0x40] sm:$0xff]
      %v428 = vld [vmem:[%s1 + $0x48] sm:$0xff]
      %v429 = vld [vmem:[%s1 + $0x50] sm:$0xff]
      %v430 = vld [vmem:[%s1 + $0x58] sm:$0xff]
      %v431 = vld [vmem:[%s1 + $0x60] sm:$0xff]
      %v432 = vld [vmem:[%s1 + $0x68] sm:$0xff]
      %v433 = vld [vmem:[%s1 + $0x70] sm:$0xff]
      %v434 = vld [vmem:[%s1 + $0x78] sm:$0xff]
      %v435 = vld [vmem:[%s2] sm:$0x1]
      %v437 = vlaneseq
      %v438 = vshrl.u32 %v437, 7
      %v439 = vsub.s32 0, %v438
      %v440 = vrot.slane %v435, %v439
      %442 = vmatprep.subr.mxu0 0.0
      %443 = vmatpush1.msra.mxu0 %v434
      %444 = vmatprep.subr.mxu0 0.0
      %445 = vmatpush1.msra.mxu0 %v433
      %446 = vmatprep.subr.mxu0 0.0
      %447 = vmatpush1.msra.mxu0 %v432
      %448 = vmatprep.subr.mxu0 0.0
      %449 = vmatpush1.msra.mxu0 %v431
      %450 = vmatprep.subr.mxu0 0.0
      %451 = vmatpush1.msra.mxu0 %v430
      %452 = vmatprep.subr.mxu0 0.0
      %453 = vmatpush1.msra.mxu0 %v429
      %454 = vmatprep.subr.mxu0 0.0
      %455 = vmatpush1.msra.mxu0 %v428
      %456 = vmatprep.subr.mxu0 0.0
      %457 = vmatpush1.msra.mxu0 %v427
      %458 = vmatprep.subr.mxu0 0.0
      %459 = vmatpush1.msra.mxu0 %v426
      %460 = vmatprep.subr.mxu0 0.0
      %461 = vmatpush1.msra.mxu0 %v425
      %462 = vmatprep.subr.mxu0 0.0
      %463 = vmatpush1.msra.mxu0 %v424
      %464 = vmatprep.subr.mxu0 0.0
      %465 = vmatpush1.msra.mxu0 %v423
      %466 = vmatprep.subr.mxu0 0.0
      %467 = vmatpush1.msra.mxu0 %v422
      %468 = vmatprep.subr.mxu0 0.0
      %469 = vmatpush1.msra.mxu0 %v421
      %470 = vmatprep.subr.mxu0 0.0
      %471 = vmatpush1.msra.mxu0 %v420
      %472 = vmatprep.subr.mxu0 0.0
      %473 = vmatpush1.msra.mxu0 %v419
      %474 = vmatprep.subr.mxu0 0.0
      %475 = vmatpush2.msra.mxu0 0.0
      %476 = vmatprep.subr.mxu0 0.0
      %477 = vmatpush2.msra.mxu0 0.0
      %478 = vmatprep.subr.mxu0 0.0
      %479 = vmatpush2.msra.mxu0 0.0
      %480 = vmatprep.subr.mxu0 0.0
      %481 = vmatpush2.msra.mxu0 0.0
      %482 = vmatprep.subr.mxu0 0.0
      %483 = vmatpush2.msra.mxu0 0.0
      %484 = vmatprep.subr.mxu0 0.0
      %485 = vmatpush2.msra.mxu0 0.0
      %486 = vmatprep.subr.mxu0 0.0
      %487 = vmatpush2.msra.mxu0 0.0
      %488 = vmatprep.subr.mxu0 0.0
      %489 = vmatpush2.msra.mxu0 0.0
      %490 = vmatprep.subr.mxu0 0.0
      %491 = vmatpush2.msra.mxu0 0.0
      %492 = vmatprep.subr.mxu0 0.0
      %493 = vmatpush2.msra.mxu0 0.0
      %494 = vmatprep.subr.mxu0 0.0
      %495 = vmatpush2.msra.mxu0 0.0
      %496 = vmatprep.subr.mxu0 0.0
      %497 = vmatpush2.msra.mxu0 0.0
      %498 = vmatprep.subr.mxu0 0.0
      %499 = vmatpush2.msra.mxu0 0.0
      %500 = vmatprep.subr.mxu0 0.0
      %501 = vmatpush2.msra.mxu0 0.0
      %502 = vmatprep.subr.mxu0 0.0
      %503 = vmatpush2.msra.mxu0 0.0
      %504 = vmatprep.subr.mxu0 0.0
      %505 = vmatpush2.msra.mxu0 0.0
      %506 = vmatprep.mubr.f32.mxu0 0.0
      %507 = vmatmul.mubr.f32.gmra.mxu0 %v387
      %v508 = vpop.f32.mrf.mxu0
      %v509 = vadd.f32 %v440, %v508
      %v510 = vpop.f32.mrf.mxu0
      %511 = vmatprep.mubr.f32.mxu0 0.0
      %512 = vmatmul.mubr.f32.gmra.mxu0 %v388
      %v513 = vpop.f32.mrf.mxu0
      %v514 = vadd.f32 %v440, %v513
      %v515 = vpop.f32.mrf.mxu0
      %516 = vmatprep.mubr.f32.mxu0 0.0
      %517 = vmatmul.mubr.f32.gmra.mxu0 %v389
      %v518 = vpop.f32.mrf.mxu0
      %v519 = vadd.f32 %v440, %v518
      %v520 = vpop.f32.mrf.mxu0
      %521 = vmatprep.mubr.f32.mxu0 0.0
      %522 = vmatmul.mubr.f32.gmra.mxu0 %v390
      %v523 = vpop.f32.mrf.mxu0
      %v524 = vadd.f32 %v440, %v523
      %v525 = vpop.f32.mrf.mxu0
      %526 = vmatprep.mubr.f32.mxu0 0.0
      %527 = vmatmul.mubr.f32.gmra.mxu0 %v391
      %v528 = vpop.f32.mrf.mxu0
      %v529 = vadd.f32 %v440, %v528
      %v530 = vpop.f32.mrf.mxu0
      %531 = vmatprep.mubr.f32.mxu0 0.0
      %532 = vmatmul.mubr.f32.gmra.mxu0 %v392
      %v533 = vpop.f32.mrf.mxu0
      %v534 = vadd.f32 %v440, %v533
      %v535 = vpop.f32.mrf.mxu0
      %536 = vmatprep.mubr.f32.mxu0 0.0
      %537 = vmatmul.mubr.f32.gmra.mxu0 %v393
      %v538 = vpop.f32.mrf.mxu0
      %v539 = vadd.f32 %v440, %v538
      %v540 = vpop.f32.mrf.mxu0
      %541 = vmatprep.mubr.f32.mxu0 0.0
      %542 = vmatmul.mubr.f32.gmra.mxu0 %v394
      %v543 = vpop.f32.mrf.mxu0
      %v544 = vadd.f32 %v440, %v543
      %v545 = vpop.f32.mrf.mxu0
      %546 = vmatprep.mubr.f32.mxu0 0.0
      %547 = vmatmul.mubr.f32.gmra.mxu0 %v395
      %v548 = vpop.f32.mrf.mxu0
      %v549 = vadd.f32 %v440, %v548
      %v550 = vpop.f32.mrf.mxu0
      %551 = vmatprep.mubr.f32.mxu0 0.0
      %552 = vmatmul.mubr.f32.gmra.mxu0 %v396
      %v553 = vpop.f32.mrf.mxu0
      %v554 = vadd.f32 %v440, %v553
      %v555 = vpop.f32.mrf.mxu0
      %556 = vmatprep.mubr.f32.mxu0 0.0
      %557 = vmatmul.mubr.f32.gmra.mxu0 %v397
      %v558 = vpop.f32.mrf.mxu0
      %v559 = vadd.f32 %v440, %v558
      %v560 = vpop.f32.mrf.mxu0
      %561 = vmatprep.mubr.f32.mxu0 0.0
      %562 = vmatmul.mubr.f32.gmra.mxu0 %v398
      %v563 = vpop.f32.mrf.mxu0
      %v564 = vadd.f32 %v440, %v563
      %v565 = vpop.f32.mrf.mxu0
      %566 = vmatprep.mubr.f32.mxu0 0.0
      %567 = vmatmul.mubr.f32.gmra.mxu0 %v399
      %v568 = vpop.f32.mrf.mxu0
      %v569 = vadd.f32 %v440, %v568
      %v570 = vpop.f32.mrf.mxu0
      %571 = vmatprep.mubr.f32.mxu0 0.0
      %572 = vmatmul.mubr.f32.gmra.mxu0 %v400
      %v573 = vpop.f32.mrf.mxu0
      %v574 = vadd.f32 %v440, %v573
      %v575 = vpop.f32.mrf.mxu0
      %576 = vmatprep.mubr.f32.mxu0 0.0
      %577 = vmatmul.mubr.f32.gmra.mxu0 %v401
      %v578 = vpop.f32.mrf.mxu0
      %v579 = vadd.f32 %v440, %v578
      %v580 = vpop.f32.mrf.mxu0
      %581 = vmatprep.mubr.f32.mxu0 0.0
      %582 = vmatmul.mubr.f32.gmra.mxu0 %v402
      %v583 = vpop.f32.mrf.mxu0
      %v584 = vadd.f32 %v440, %v583
      %v585 = vpop.f32.mrf.mxu0
      %586 = vmatprep.mubr.f32.mxu0 0.0
      %587 = vmatmul.mubr.f32.gmra.mxu0 %v403
      %v588 = vpop.f32.mrf.mxu0
      %v589 = vadd.f32 %v440, %v588
      %v590 = vpop.f32.mrf.mxu0
      %591 = vmatprep.mubr.f32.mxu0 0.0
      %592 = vmatmul.mubr.f32.gmra.mxu0 %v404
      %v593 = vpop.f32.mrf.mxu0
      %v594 = vadd.f32 %v440, %v593
      %v595 = vpop.f32.mrf.mxu0
      %596 = vmatprep.mubr.f32.mxu0 0.0
      %597 = vmatmul.mubr.f32.gmra.mxu0 %v405
      %v598 = vpop.f32.mrf.mxu0
      %v599 = vadd.f32 %v440, %v598
      %v600 = vpop.f32.mrf.mxu0
      %601 = vmatprep.mubr.f32.mxu0 0.0
      %602 = vmatmul.mubr.f32.gmra.mxu0 %v406
      %v603 = vpop.f32.mrf.mxu0
      %v604 = vadd.f32 %v440, %v603
      %v605 = vpop.f32.mrf.mxu0
      %606 = vmatprep.mubr.f32.mxu0 0.0
      %607 = vmatmul.mubr.f32.gmra.mxu0 %v407
      %v608 = vpop.f32.mrf.mxu0
      %v609 = vadd.f32 %v440, %v608
      %v610 = vpop.f32.mrf.mxu0
      %611 = vmatprep.mubr.f32.mxu0 0.0
      %612 = vmatmul.mubr.f32.gmra.mxu0 %v408
      %v613 = vpop.f32.mrf.mxu0
      %v614 = vadd.f32 %v440, %v613
      %v615 = vpop.f32.mrf.mxu0
      %616 = vmatprep.mubr.f32.mxu0 0.0
      %617 = vmatmul.mubr.f32.gmra.mxu0 %v409
      %v618 = vpop.f32.mrf.mxu0
      %v619 = vadd.f32 %v440, %v618
      %v620 = vpop.f32.mrf.mxu0
      %621 = vmatprep.mubr.f32.mxu0 0.0
      %622 = vmatmul.mubr.f32.gmra.mxu0 %v410
      %v623 = vpop.f32.mrf.mxu0
      %v624 = vadd.f32 %v440, %v623
      %v625 = vpop.f32.mrf.mxu0
      %626 = vmatprep.mubr.f32.mxu0 0.0
      %627 = vmatmul.mubr.f32.gmra.mxu0 %v411
      %v628 = vpop.f32.mrf.mxu0
      %v629 = vadd.f32 %v440, %v628
      %v630 = vpop.f32.mrf.mxu0
      %631 = vmatprep.mubr.f32.mxu0 0.0
      %632 = vmatmul.mubr.f32.gmra.mxu0 %v412
      %v633 = vpop.f32.mrf.mxu0
      %v634 = vadd.f32 %v440, %v633
      %v635 = vpop.f32.mrf.mxu0
      %636 = vmatprep.mubr.f32.mxu0 0.0
      %637 = vmatmul.mubr.f32.gmra.mxu0 %v413
      %v638 = vpop.f32.mrf.mxu0
      %v639 = vadd.f32 %v440, %v638
      %v640 = vpop.f32.mrf.mxu0
      %641 = vmatprep.mubr.f32.mxu0 0.0
      %642 = vmatmul.mubr.f32.gmra.mxu0 %v414
      %v643 = vpop.f32.mrf.mxu0
      %v644 = vadd.f32 %v440, %v643
      %v645 = vpop.f32.mrf.mxu0
      %646 = vmatprep.mubr.f32.mxu0 0.0
      %647 = vmatmul.mubr.f32.gmra.mxu0 %v415
      %v648 = vpop.f32.mrf.mxu0
      %v649 = vadd.f32 %v440, %v648
      %v650 = vpop.f32.mrf.mxu0
      %651 = vmatprep.mubr.f32.mxu0 0.0
      %652 = vmatmul.mubr.f32.gmra.mxu0 %v416
      %v653 = vpop.f32.mrf.mxu0
      %v654 = vadd.f32 %v440, %v653
      %v655 = vpop.f32.mrf.mxu0
      %656 = vmatprep.mubr.f32.mxu0 0.0
      %657 = vmatmul.mubr.f32.gmra.mxu0 %v417
      %v658 = vpop.f32.mrf.mxu0
      %v659 = vadd.f32 %v440, %v658
      %v660 = vpop.f32.mrf.mxu0
      %661 = vmatprep.mubr.f32.mxu0 0.0
      %662 = vmatmul.mubr.f32.gmra.mxu0 %v418
      %v663 = vpop.f32.mrf.mxu0
      %v664 = vadd.f32 %v440, %v663
      %v665 = vpop.f32.mrf.mxu0
      %666 = vdwg.mxu0
      %v667 = vadd.f32 %v509, 3.0
      %v668 = vadd.f32 %v514, 3.0
      %v669 = vadd.f32 %v519, 3.0
      %v670 = vadd.f32 %v524, 3.0
      %v671 = vadd.f32 %v529, 3.0
      %v672 = vadd.f32 %v534, 3.0
      %v673 = vadd.f32 %v539, 3.0
      %v674 = vadd.f32 %v544, 3.0
      %v675 = vadd.f32 %v549, 3.0
      %v676 = vadd.f32 %v554, 3.0
      %v677 = vadd.f32 %v559, 3.0
      %v678 = vadd.f32 %v564, 3.0
      %v679 = vadd.f32 %v569, 3.0
      %v680 = vadd.f32 %v574, 3.0
      %v681 = vadd.f32 %v579, 3.0
      %v682 = vadd.f32 %v584, 3.0
      %v683 = vadd.f32 %v589, 3.0
      %v684 = vadd.f32 %v594, 3.0
      %v685 = vadd.f32 %v599, 3.0
      %v686 = vadd.f32 %v604, 3.0
      %v687 = vadd.f32 %v609, 3.0
      %v688 = vadd.f32 %v614, 3.0
      %v689 = vadd.f32 %v619, 3.0
      %v690 = vadd.f32 %v624, 3.0
      %v691 = vadd.f32 %v629, 3.0
      %v692 = vadd.f32 %v634, 3.0
      %v693 = vadd.f32 %v639, 3.0
      %v694 = vadd.f32 %v644, 3.0
      %v695 = vadd.f32 %v649, 3.0
      %v696 = vadd.f32 %v654, 3.0
      %v697 = vadd.f32 %v659, 3.0
      %v698 = vadd.f32 %v664, 3.0
      %v699 = vmax.f32 %v667, 0.0
      %v700 = vmax.f32 %v668, 0.0
      %v701 = vmax.f32 %v669, 0.0
      %v702 = vmax.f32 %v670, 0.0
      %v703 = vmax.f32 %v671, 0.0
      %v704 = vmax.f32 %v672, 0.0
      %v705 = vmax.f32 %v673, 0.0
      %v706 = vmax.f32 %v674, 0.0
      %v707 = vmax.f32 %v675, 0.0
      %v708 = vmax.f32 %v676, 0.0
      %v709 = vmax.f32 %v677, 0.0
      %v710 = vmax.f32 %v678, 0.0
      %v711 = vmax.f32 %v679, 0.0
      %v712 = vmax.f32 %v680, 0.0
      %v713 = vmax.f32 %v681, 0.0
      %v714 = vmax.f32 %v682, 0.0
      %v715 = vmax.f32 %v683, 0.0
      %v716 = vmax.f32 %v684, 0.0
      %v717 = vmax.f32 %v685, 0.0
      %v718 = vmax.f32 %v686, 0.0
      %v719 = vmax.f32 %v687, 0.0
      %v720 = vmax.f32 %v688, 0.0
      %v721 = vmax.f32 %v689, 0.0
      %v722 = vmax.f32 %v690, 0.0
      %v723 = vmax.f32 %v691, 0.0
      %v724 = vmax.f32 %v692, 0.0
      %v725 = vmax.f32 %v693, 0.0
      %v726 = vmax.f32 %v694, 0.0
      %v727 = vmax.f32 %v695, 0.0
      %v728 = vmax.f32 %v696, 0.0
      %v729 = vmax.f32 %v697, 0.0
      %v730 = vmax.f32 %v698, 0.0
      %v731 = vmin.f32 %v699, 6.0
      %v732 = vmin.f32 %v700, 6.0
      %v733 = vmin.f32 %v701, 6.0
      %v734 = vmin.f32 %v702, 6.0
      %v735 = vmin.f32 %v703, 6.0
      %v736 = vmin.f32 %v704, 6.0
      %v737 = vmin.f32 %v705, 6.0
      %v738 = vmin.f32 %v706, 6.0
      %v739 = vmin.f32 %v707, 6.0
      %v740 = vmin.f32 %v708, 6.0
      %v741 = vmin.f32 %v709, 6.0
      %v742 = vmin.f32 %v710, 6.0
      %v743 = vmin.f32 %v711, 6.0
      %v744 = vmin.f32 %v712, 6.0
      %v745 = vmin.f32 %v713, 6.0
      %v746 = vmin.f32 %v714, 6.0
      %v747 = vmin.f32 %v715, 6.0
      %v748 = vmin.f32 %v716, 6.0
      %v749 = vmin.f32 %v717, 6.0
      %v750 = vmin.f32 %v718, 6.0
      %v751 = vmin.f32 %v719, 6.0
      %v752 = vmin.f32 %v720, 6.0
      %v753 = vmin.f32 %v721, 6.0
      %v754 = vmin.f32 %v722, 6.0
      %v755 = vmin.f32 %v723, 6.0
      %v756 = vmin.f32 %v724, 6.0
      %v757 = vmin.f32 %v725, 6.0
      %v758 = vmin.f32 %v726, 6.0
      %v759 = vmin.f32 %v727, 6.0
      %v760 = vmin.f32 %v728, 6.0
      %v761 = vmin.f32 %v729, 6.0
      %v762 = vmin.f32 %v730, 6.0
      %v763 = vmul.f32 %v509, %v731
      %v764 = vmul.f32 %v514, %v732
      %v765 = vmul.f32 %v519, %v733
      %v766 = vmul.f32 %v524, %v734
      %v767 = vmul.f32 %v529, %v735
      %v768 = vmul.f32 %v534, %v736
      %v769 = vmul.f32 %v539, %v737
      %v770 = vmul.f32 %v544, %v738
      %v771 = vmul.f32 %v549, %v739
      %v772 = vmul.f32 %v554, %v740
      %v773 = vmul.f32 %v559, %v741
      %v774 = vmul.f32 %v564, %v742
      %v775 = vmul.f32 %v569, %v743
      %v776 = vmul.f32 %v574, %v744
      %v777 = vmul.f32 %v579, %v745
      %v778 = vmul.f32 %v584, %v746
      %v779 = vmul.f32 %v589, %v747
      %v780 = vmul.f32 %v594, %v748
      %v781 = vmul.f32 %v599, %v749
      %v782 = vmul.f32 %v604, %v750
      %v783 = vmul.f32 %v609, %v751
      %v784 = vmul.f32 %v614, %v752
      %v785 = vmul.f32 %v619, %v753
      %v786 = vmul.f32 %v624, %v754
      %v787 = vmul.f32 %v629, %v755
      %v788 = vmul.f32 %v634, %v756
      %v789 = vmul.f32 %v639, %v757
      %v790 = vmul.f32 %v644, %v758
      %v791 = vmul.f32 %v649, %v759
      %v792 = vmul.f32 %v654, %v760
      %v793 = vmul.f32 %v659, %v761
      %v794 = vmul.f32 %v664, %v762
      %v795 = vrcp.pop 6.0
      %v796 = vmul.f32 %v763, %v795
      %v797 = vmul.f32 %v764, %v795
      %v798 = vmul.f32 %v765, %v795
      %v799 = vmul.f32 %v766, %v795
      %v800 = vmul.f32 %v767, %v795
      %v801 = vmul.f32 %v768, %v795
      %v802 = vmul.f32 %v769, %v795
      %v803 = vmul.f32 %v770, %v795
      %v804 = vmul.f32 %v771, %v795
      %v805 = vmul.f32 %v772, %v795
      %v806 = vmul.f32 %v773, %v795
      %v807 = vmul.f32 %v774, %v795
      %v808 = vmul.f32 %v775, %v795
      %v809 = vmul.f32 %v776, %v795
      %v810 = vmul.f32 %v777, %v795
      %v811 = vmul.f32 %v778, %v795
      %v812 = vmul.f32 %v779, %v795
      %v813 = vmul.f32 %v780, %v795
      %v814 = vmul.f32 %v781, %v795
      %v815 = vmul.f32 %v782, %v795
      %v816 = vmul.f32 %v783, %v795
      %v817 = vmul.f32 %v784, %v795
      %v818 = vmul.f32 %v785, %v795
      %v819 = vmul.f32 %v786, %v795
      %v820 = vmul.f32 %v787, %v795
      %v821 = vmul.f32 %v788, %v795
      %v822 = vmul.f32 %v789, %v795
      %v823 = vmul.f32 %v790, %v795
      %v824 = vmul.f32 %v791, %v795
      %v825 = vmul.f32 %v792, %v795
      %v826 = vmul.f32 %v793, %v795
      %v827 = vmul.f32 %v794, %v795
      %828 = vst [vmem:[#allocation2] sm:$0xff] 0.0
      %829 = vst [vmem:[#allocation2 + $0x8] sm:$0xff] 0.0
      %830 = vst [vmem:[#allocation2 + $0x10] sm:$0xff] 0.0
      %831 = vst [vmem:[#allocation2 + $0x18] sm:$0xff] 0.0
      %832 = vst [vmem:[#allocation2 + $0x20] sm:$0xff] 0.0
      %833 = vst [vmem:[#allocation2 + $0x28] sm:$0xff] 0.0
      %834 = vst [vmem:[#allocation2 + $0x30] sm:$0xff] 0.0
      %835 = vst [vmem:[#allocation2 + $0x38] sm:$0xff] 0.0
      %836 = vst [vmem:[#allocation2 + $0x40] sm:$0xff] 0.0
      %837 = vst [vmem:[#allocation2 + $0x48] sm:$0xff] 0.0
      %838 = vst [vmem:[#allocation2 + $0x50] sm:$0xff] 0.0
      %839 = vst [vmem:[#allocation2 + $0x58] sm:$0xff] 0.0
      %840 = vst [vmem:[#allocation2 + $0x60] sm:$0xff] 0.0
      %841 = vst [vmem:[#allocation2 + $0x68] sm:$0xff] 0.0
      %842 = vst [vmem:[#allocation2 + $0x70] sm:$0xff] 0.0
      %843 = vst [vmem:[#allocation2 + $0x78] sm:$0xff] 0.0
      %844 = vst [vmem:[#allocation2 + $0x80] sm:$0xff] 0.0
      %845 = vst [vmem:[#allocation2 + $0x88] sm:$0xff] 0.0
      %846 = vst [vmem:[#allocation2 + $0x90] sm:$0xff] 0.0
      %847 = vst [vmem:[#allocation2 + $0x98] sm:$0xff] 0.0
      %848 = vst [vmem:[#allocation2 + $0xa0] sm:$0xff] 0.0
      %849 = vst [vmem:[#allocation2 + $0xa8] sm:$0xff] 0.0
      %850 = vst [vmem:[#allocation2 + $0xb0] sm:$0xff] 0.0
      %851 = vst [vmem:[#allocation2 + $0xb8] sm:$0xff] 0.0
      %852 = vst [vmem:[#allocation2 + $0xc0] sm:$0xff] 0.0
      %853 = vst [vmem:[#allocation2 + $0xc8] sm:$0xff] 0.0
      %854 = vst [vmem:[#allocation2 + $0xd0] sm:$0xff] 0.0
      %855 = vst [vmem:[#allocation2 + $0xd8] sm:$0xff] 0.0
      %856 = vst [vmem:[#allocation2 + $0xe0] sm:$0xff] 0.0
      %857 = vst [vmem:[#allocation2 + $0xe8] sm:$0xff] 0.0
      %858 = vst [vmem:[#allocation2 + $0xf0] sm:$0xff] 0.0
      %859 = vst [vmem:[#allocation2 + $0xf8] sm:$0xff] 0.0
      %860 = vst [vmem:[#allocation2 + $0x100] sm:$0xff] 0.0
      %861 = vst [vmem:[#allocation2 + $0x108] sm:$0xff] 0.0
      %862 = vst [vmem:[#allocation2 + $0x110] sm:$0xff] 0.0
      %863 = vst [vmem:[#allocation2 + $0x118] sm:$0xff] 0.0
      %864 = vst [vmem:[#allocation2 + $0x120] sm:$0xff] 0.0
      %865 = vst [vmem:[#allocation2 + $0x128] sm:$0xff] 0.0
      %866 = vst [vmem:[#allocation2 + $0x130] sm:$0xff] 0.0
      %867 = vst [vmem:[#allocation2 + $0x138] sm:$0xff] 0.0
      %868 = vst [vmem:[#allocation2 + $0x140] sm:$0xff] 0.0
      %869 = vst [vmem:[#allocation2 + $0x148] sm:$0xff] 0.0
      %870 = vst [vmem:[#allocation2 + $0x150] sm:$0xff] 0.0
      %871 = vst [vmem:[#allocation2 + $0x158] sm:$0xff] 0.0
      %872 = vst [vmem:[#allocation2 + $0x160] sm:$0xff] 0.0
      %873 = vst [vmem:[#allocation2 + $0x168] sm:$0xff] 0.0
      %874 = vst [vmem:[#allocation2 + $0x170] sm:$0xff] 0.0
      %875 = vst [vmem:[#allocation2 + $0x178] sm:$0xff] 0.0
      %876 = vst [vmem:[#allocation2 + $0x180] sm:$0xff] 0.0
      %877 = vst [vmem:[#allocation2 + $0x188] sm:$0xff] 0.0
      %878 = vst [vmem:[#allocation2 + $0x190] sm:$0xff] 0.0
      %879 = vst [vmem:[#allocation2 + $0x198] sm:$0xff] 0.0
      %880 = vst [vmem:[#allocation2 + $0x1a0] sm:$0xff] 0.0
      %881 = vst [vmem:[#allocation2 + $0x1a8] sm:$0xff] 0.0
      %882 = vst [vmem:[#allocation2 + $0x1b0] sm:$0xff] 0.0
      %883 = vst [vmem:[#allocation2 + $0x1b8] sm:$0xff] 0.0
      %884 = vst [vmem:[#allocation2 + $0x1c0] sm:$0xff] 0.0
      %885 = vst [vmem:[#allocation2 + $0x1c8] sm:$0xff] 0.0
      %886 = vst [vmem:[#allocation2 + $0x1d0] sm:$0xff] 0.0
      %887 = vst [vmem:[#allocation2 + $0x1d8] sm:$0xff] 0.0
      %888 = vst [vmem:[#allocation2 + $0x1e0] sm:$0xff] 0.0
      %889 = vst [vmem:[#allocation2 + $0x1e8] sm:$0xff] 0.0
      %890 = vst [vmem:[#allocation2 + $0x1f0] sm:$0xff] 0.0
      %891 = vst [vmem:[#allocation2 + $0x1f8] sm:$0xff] 0.0
      %892 = vst [vmem:[#allocation2 + $0x200] sm:$0xff] 0.0
      %893 = vst [vmem:[#allocation2 + $0x208] sm:$0xff] 0.0
      %894 = vst [vmem:[#allocation2 + $0x210] sm:$0xff] 0.0
      %895 = vst [vmem:[#allocation2 + $0x218] sm:$0xff] 0.0
      %896 = vst [vmem:[#allocation2 + $0x220] sm:$0xff] 0.0
      %897 = vst [vmem:[#allocation2 + $0x228] sm:$0xff] 0.0
      %898 = vst [vmem:[#allocation2 + $0x230] sm:$0xff] 0.0
      %899 = vst [vmem:[#allocation2 + $0x238] sm:$0xff] 0.0
      %s900 = scalar_lea.vmem [#allocation2], 32
      %901 = vst [vmem:[%s900 + $0x8] sm:$0xff] %v796
      %902 = vst [vmem:[%s900 + $0x10] sm:$0xff] %v797
      %903 = vst [vmem:[%s900 + $0x28] sm:$0xff] %v798
      %904 = vst [vmem:[%s900 + $0x30] sm:$0xff] %v799
      %905 = vst [vmem:[%s900 + $0x48] sm:$0xff] %v800
      %906 = vst [vmem:[%s900 + $0x50] sm:$0xff] %v801
      %907 = vst [vmem:[%s900 + $0x68] sm:$0xff] %v802
      %908 = vst [vmem:[%s900 + $0x70] sm:$0xff] %v803
      %909 = vst [vmem:[%s900 + $0x88] sm:$0xff] %v804
      %910 = vst [vmem:[%s900 + $0x90] sm:$0xff] %v805
      %911 = vst [vmem:[%s900 + $0xa8] sm:$0xff] %v806
      %912 = vst [vmem:[%s900 + $0xb0] sm:$0xff] %v807
      %913 = vst [vmem:[%s900 + $0xc8] sm:$0xff] %v808
      %914 = vst [vmem:[%s900 + $0xd0] sm:$0xff] %v809
      %915 = vst [vmem:[%s900 + $0xe8] sm:$0xff] %v810
      %916 = vst [vmem:[%s900 + $0xf0] sm:$0xff] %v811
      %917 = vst [vmem:[%s900 + $0x108] sm:$0xff] %v812
      %918 = vst [vmem:[%s900 + $0x110] sm:$0xff] %v813
      %919 = vst [vmem:[%s900 + $0x128] sm:$0xff] %v814
      %920 = vst [vmem:[%s900 + $0x130] sm:$0xff] %v815
      %921 = vst [vmem:[%s900 + $0x148] sm:$0xff] %v816
      %922 = vst [vmem:[%s900 + $0x150] sm:$0xff] %v817
      %923 = vst [vmem:[%s900 + $0x168] sm:$0xff] %v818
      %924 = vst [vmem:[%s900 + $0x170] sm:$0xff] %v819
      %925 = vst [vmem:[%s900 + $0x188] sm:$0xff] %v820
      %926 = vst [vmem:[%s900 + $0x190] sm:$0xff] %v821
      %927 = vst [vmem:[%s900 + $0x1a8] sm:$0xff] %v822
      %928 = vst [vmem:[%s900 + $0x1b0] sm:$0xff] %v823
      %929 = vst [vmem:[%s900 + $0x1c8] sm:$0xff] %v824
      %930 = vst [vmem:[%s900 + $0x1d0] sm:$0xff] %v825
      %931 = vst [vmem:[%s900 + $0x1e8] sm:$0xff] %v826
      %932 = vst [vmem:[%s900 + $0x1f0] sm:$0xff] %v827
      %v933 = vld [vmem:[#allocation2 + $0x7] sm:$0xff]
      %v934 = vld [vmem:[#allocation2 + $0xf] sm:$0xff]
      %v935 = vld [vmem:[#allocation2 + $0x27] sm:$0xff]
      %v936 = vld [vmem:[#allocation2 + $0x2f] sm:$0xff]
      %v937 = vld [vmem:[#allocation2 + $0x47] sm:$0xff]
      %v938 = vld [vmem:[#allocation2 + $0x4f] sm:$0xff]
      %v939 = vld [vmem:[#allocation2 + $0x67] sm:$0xff]
      %v940 = vld [vmem:[#allocation2 + $0x6f] sm:$0xff]
      %v941 = vld [vmem:[#allocation2 + $0x87] sm:$0xff]
      %v942 = vld [vmem:[#allocation2 + $0x8f] sm:$0xff]
      %v943 = vld [vmem:[#allocation2 + $0xa7] sm:$0xff]
      %v944 = vld [vmem:[#allocation2 + $0xaf] sm:$0xff]
      %v945 = vld [vmem:[#allocation2 + $0xc7] sm:$0xff]
      %v946 = vld [vmem:[#allocation2 + $0xcf] sm:$0xff]
      %v947 = vld [vmem:[#allocation2 + $0xe7] sm:$0xff]
      %v948 = vld [vmem:[#allocation2 + $0xef] sm:$0xff]
      %v949 = vld [vmem:[#allocation2 + $0x107] sm:$0xff]
      %v950 = vld [vmem:[#allocation2 + $0x10f] sm:$0xff]
      %v951 = vld [vmem:[#allocation2 + $0x127] sm:$0xff]
      %v952 = vld [vmem:[#allocation2 + $0x12f] sm:$0xff]
      %v953 = vld [vmem:[#allocation2 + $0x147] sm:$0xff]
      %v954 = vld [vmem:[#allocation2 + $0x14f] sm:$0xff]
      %v955 = vld [vmem:[#allocation2 + $0x167] sm:$0xff]
      %v956 = vld [vmem:[#allocation2 + $0x16f] sm:$0xff]
      %v957 = vld [vmem:[#allocation2 + $0x187] sm:$0xff]
      %v958 = vld [vmem:[#allocation2 + $0x18f] sm:$0xff]
      %v959 = vld [vmem:[#allocation2 + $0x1a7] sm:$0xff]
      %v960 = vld [vmem:[#allocation2 + $0x1af] sm:$0xff]
      %v961 = vld [vmem:[#allocation2 + $0x1c7] sm:$0xff]
      %v962 = vld [vmem:[#allocation2 + $0x1cf] sm:$0xff]
      %v963 = vld [vmem:[#allocation2 + $0x1e7] sm:$0xff]
      %v964 = vld [vmem:[#allocation2 + $0x1ef] sm:$0xff]
      %v965 = vld [vmem:[%s3] sm:$0x1]
      %v966 = vlaneseq
      %v967 = vshrl.u32 %v966, 7
      %v968 = vsub.s32 0, %v967
      %v969 = vrot.slane %v965, %v968
      %v970 = vmul.f32 %v933, %v969
      %v971 = vmul.f32 %v934, %v969
      %v972 = vmul.f32 %v935, %v969
      %v973 = vmul.f32 %v936, %v969
      %v974 = vmul.f32 %v937, %v969
      %v975 = vmul.f32 %v938, %v969
      %v976 = vmul.f32 %v939, %v969
      %v977 = vmul.f32 %v940, %v969
      %v978 = vmul.f32 %v941, %v969
      %v979 = vmul.f32 %v942, %v969
      %v980 = vmul.f32 %v943, %v969
      %v981 = vmul.f32 %v944, %v969
      %v982 = vmul.f32 %v945, %v969
      %v983 = vmul.f32 %v946, %v969
      %v984 = vmul.f32 %v947, %v969
      %v985 = vmul.f32 %v948, %v969
      %v986 = vmul.f32 %v949, %v969
      %v987 = vmul.f32 %v950, %v969
      %v988 = vmul.f32 %v951, %v969
      %v989 = vmul.f32 %v952, %v969
      %v990 = vmul.f32 %v953, %v969
      %v991 = vmul.f32 %v954, %v969
      %v992 = vmul.f32 %v955, %v969
      %v993 = vmul.f32 %v956, %v969
      %v994 = vmul.f32 %v957, %v969
      %v995 = vmul.f32 %v958, %v969
      %v996 = vmul.f32 %v959, %v969
      %v997 = vmul.f32 %v960, %v969
      %v998 = vmul.f32 %v961, %v969
      %v999 = vmul.f32 %v962, %v969
      %v1000 = vmul.f32 %v963, %v969
      %v1001 = vmul.f32 %v964, %v969
      %v1002 = vadd.f32 %v970, 0.0
      %v1003 = vadd.f32 %v971, 0.0
      %v1004 = vadd.f32 %v972, 0.0
      %v1005 = vadd.f32 %v973, 0.0
      %v1006 = vadd.f32 %v974, 0.0
      %v1007 = vadd.f32 %v975, 0.0
      %v1008 = vadd.f32 %v976, 0.0
      %v1009 = vadd.f32 %v977, 0.0
      %v1010 = vadd.f32 %v978, 0.0
      %v1011 = vadd.f32 %v979, 0.0
      %v1012 = vadd.f32 %v980, 0.0
      %v1013 = vadd.f32 %v981, 0.0
      %v1014 = vadd.f32 %v982, 0.0
      %v1015 = vadd.f32 %v983, 0.0
      %v1016 = vadd.f32 %v984, 0.0
      %v1017 = vadd.f32 %v985, 0.0
      %v1018 = vadd.f32 %v986, 0.0
      %v1019 = vadd.f32 %v987, 0.0
      %v1020 = vadd.f32 %v988, 0.0
      %v1021 = vadd.f32 %v989, 0.0
      %v1022 = vadd.f32 %v990, 0.0
      %v1023 = vadd.f32 %v991, 0.0
      %v1024 = vadd.f32 %v992, 0.0
      %v1025 = vadd.f32 %v993, 0.0
      %v1026 = vadd.f32 %v994, 0.0
      %v1027 = vadd.f32 %v995, 0.0
      %v1028 = vadd.f32 %v996, 0.0
      %v1029 = vadd.f32 %v997, 0.0
      %v1030 = vadd.f32 %v998, 0.0
      %v1031 = vadd.f32 %v999, 0.0
      %v1032 = vadd.f32 %v1000, 0.0
      %v1033 = vadd.f32 %v1001, 0.0
      %v1034 = vld [vmem:[#allocation2 + $0x8] sm:$0xff]
      %v1035 = vld [vmem:[#allocation2 + $0x10] sm:$0xff]
      %v1036 = vld [vmem:[#allocation2 + $0x28] sm:$0xff]
      %v1037 = vld [vmem:[#allocation2 + $0x30] sm:$0xff]
      %v1038 = vld [vmem:[#allocation2 + $0x48] sm:$0xff]
      %v1039 = vld [vmem:[#allocation2 + $0x50] sm:$0xff]
      %v1040 = vld [vmem:[#allocation2 + $0x68] sm:$0xff]
      %v1041 = vld [vmem:[#allocation2 + $0x70] sm:$0xff]
      %v1042 = vld [vmem:[#allocation2 + $0x88] sm:$0xff]
      %v1043 = vld [vmem:[#allocation2 + $0x90] sm:$0xff]
      %v1044 = vld [vmem:[#allocation2 + $0xa8] sm:$0xff]
      %v1045 = vld [vmem:[#allocation2 + $0xb0] sm:$0xff]
      %v1046 = vld [vmem:[#allocation2 + $0xc8] sm:$0xff]
      %v1047 = vld [vmem:[#allocation2 + $0xd0] sm:$0xff]
      %v1048 = vld [vmem:[#allocation2 + $0xe8] sm:$0xff]
      %v1049 = vld [vmem:[#allocation2 + $0xf0] sm:$0xff]
      %v1050 = vld [vmem:[#allocation2 + $0x108] sm:$0xff]
      %v1051 = vld [vmem:[#allocation2 + $0x110] sm:$0xff]
      %v1052 = vld [vmem:[#allocation2 + $0x128] sm:$0xff]
      %v1053 = vld [vmem:[#allocation2 + $0x130] sm:$0xff]
      %v1054 = vld [vmem:[#allocation2 + $0x148] sm:$0xff]
      %v1055 = vld [vmem:[#allocation2 + $0x150] sm:$0xff]
      %v1056 = vld [vmem:[#allocation2 + $0x168] sm:$0xff]
      %v1057 = vld [vmem:[#allocation2 + $0x170] sm:$0xff]
      %v1058 = vld [vmem:[#allocation2 + $0x188] sm:$0xff]
      %v1059 = vld [vmem:[#allocation2 + $0x190] sm:$0xff]
      %v1060 = vld [vmem:[#allocation2 + $0x1a8] sm:$0xff]
      %v1061 = vld [vmem:[#allocation2 + $0x1b0] sm:$0xff]
      %v1062 = vld [vmem:[#allocation2 + $0x1c8] sm:$0xff]
      %v1063 = vld [vmem:[#allocation2 + $0x1d0] sm:$0xff]
      %v1064 = vld [vmem:[#allocation2 + $0x1e8] sm:$0xff]
      %v1065 = vld [vmem:[#allocation2 + $0x1f0] sm:$0xff]
      %v1066 = vld [vmem:[%s3 + $0x1] sm:$0x1]
      %v1067 = vlaneseq
      %v1068 = vshrl.u32 %v1067, 7
      %v1069 = vsub.s32 0, %v1068
      %v1070 = vrot.slane %v1066, %v1069
      %v1071 = vmul.f32 %v1034, %v1070
      %v1072 = vmul.f32 %v1035, %v1070
      %v1073 = vmul.f32 %v1036, %v1070
      %v1074 = vmul.f32 %v1037, %v1070
      %v1075 = vmul.f32 %v1038, %v1070
      %v1076 = vmul.f32 %v1039, %v1070
      %v1077 = vmul.f32 %v1040, %v1070
      %v1078 = vmul.f32 %v1041, %v1070
      %v1079 = vmul.f32 %v1042, %v1070
      %v1080 = vmul.f32 %v1043, %v1070
      %v1081 = vmul.f32 %v1044, %v1070
      %v1082 = vmul.f32 %v1045, %v1070
      %v1083 = vmul.f32 %v1046, %v1070
      %v1084 = vmul.f32 %v1047, %v1070
      %v1085 = vmul.f32 %v1048, %v1070
      %v1086 = vmul.f32 %v1049, %v1070
      %v1087 = vmul.f32 %v1050, %v1070
      %v1088 = vmul.f32 %v1051, %v1070
      %v1089 = vmul.f32 %v1052, %v1070
      %v1090 = vmul.f32 %v1053, %v1070
      %v1091 = vmul.f32 %v1054, %v1070
      %v1092 = vmul.f32 %v1055, %v1070
      %v1093 = vmul.f32 %v1056, %v1070
      %v1094 = vmul.f32 %v1057, %v1070
      %v1095 = vmul.f32 %v1058, %v1070
      %v1096 = vmul.f32 %v1059, %v1070
      %v1097 = vmul.f32 %v1060, %v1070
      %v1098 = vmul.f32 %v1061, %v1070
      %v1099 = vmul.f32 %v1062, %v1070
      %v1100 = vmul.f32 %v1063, %v1070
      %v1101 = vmul.f32 %v1064, %v1070
      %v1102 = vmul.f32 %v1065, %v1070
      %v1103 = vadd.f32 %v1002, %v1071
      %v1104 = vadd.f32 %v1003, %v1072
      %v1105 = vadd.f32 %v1004, %v1073
      %v1106 = vadd.f32 %v1005, %v1074
      %v1107 = vadd.f32 %v1006, %v1075
      %v1108 = vadd.f32 %v1007, %v1076
      %v1109 = vadd.f32 %v1008, %v1077
      %v1110 = vadd.f32 %v1009, %v1078
      %v1111 = vadd.f32 %v1010, %v1079
      %v1112 = vadd.f32 %v1011, %v1080
      %v1113 = vadd.f32 %v1012, %v1081
      %v1114 = vadd.f32 %v1013, %v1082
      %v1115 = vadd.f32 %v1014, %v1083
      %v1116 = vadd.f32 %v1015, %v1084
      %v1117 = vadd.f32 %v1016, %v1085
      %v1118 = vadd.f32 %v1017, %v1086
      %v1119 = vadd.f32 %v1018, %v1087
      %v1120 = vadd.f32 %v1019, %v1088
      %v1121 = vadd.f32 %v1020, %v1089
      %v1122 = vadd.f32 %v1021, %v1090
      %v1123 = vadd.f32 %v1022, %v1091
      %v1124 = vadd.f32 %v1023, %v1092
      %v1125 = vadd.f32 %v1024, %v1093
      %v1126 = vadd.f32 %v1025, %v1094
      %v1127 = vadd.f32 %v1026, %v1095
      %v1128 = vadd.f32 %v1027, %v1096
      %v1129 = vadd.f32 %v1028, %v1097
      %v1130 = vadd.f32 %v1029, %v1098
      %v1131 = vadd.f32 %v1030, %v1099
      %v1132 = vadd.f32 %v1031, %v1100
      %v1133 = vadd.f32 %v1032, %v1101
      %v1134 = vadd.f32 %v1033, %v1102
      %v1135 = vld [vmem:[#allocation2 + $0x9] sm:$0xff]
      %v1136 = vld [vmem:[#allocation2 + $0x11] sm:$0xff]
      %v1137 = vld [vmem:[#allocation2 + $0x29] sm:$0xff]
      %v1138 = vld [vmem:[#allocation2 + $0x31] sm:$0xff]
      %v1139 = vld [vmem:[#allocation2 + $0x49] sm:$0xff]
      %v1140 = vld [vmem:[#allocation2 + $0x51] sm:$0xff]
      %v1141 = vld [vmem:[#allocation2 + $0x69] sm:$0xff]
      %v1142 = vld [vmem:[#allocation2 + $0x71] sm:$0xff]
      %v1143 = vld [vmem:[#allocation2 + $0x89] sm:$0xff]
      %v1144 = vld [vmem:[#allocation2 + $0x91] sm:$0xff]
      %v1145 = vld [vmem:[#allocation2 + $0xa9] sm:$0xff]
      %v1146 = vld [vmem:[#allocation2 + $0xb1] sm:$0xff]
      %v1147 = vld [vmem:[#allocation2 + $0xc9] sm:$0xff]
      %v1148 = vld [vmem:[#allocation2 + $0xd1] sm:$0xff]
      %v1149 = vld [vmem:[#allocation2 + $0xe9] sm:$0xff]
      %v1150 = vld [vmem:[#allocation2 + $0xf1] sm:$0xff]
      %v1151 = vld [vmem:[#allocation2 + $0x109] sm:$0xff]
      %v1152 = vld [vmem:[#allocation2 + $0x111] sm:$0xff]
      %v1153 = vld [vmem:[#allocation2 + $0x129] sm:$0xff]
      %v1154 = vld [vmem:[#allocation2 + $0x131] sm:$0xff]
      %v1155 = vld [vmem:[#allocation2 + $0x149] sm:$0xff]
      %v1156 = vld [vmem:[#allocation2 + $0x151] sm:$0xff]
      %v1157 = vld [vmem:[#allocation2 + $0x169] sm:$0xff]
      %v1158 = vld [vmem:[#allocation2 + $0x171] sm:$0xff]
      %v1159 = vld [vmem:[#allocation2 + $0x189] sm:$0xff]
      %v1160 = vld [vmem:[#allocation2 + $0x191] sm:$0xff]
      %v1161 = vld [vmem:[#allocation2 + $0x1a9] sm:$0xff]
      %v1162 = vld [vmem:[#allocation2 + $0x1b1] sm:$0xff]
      %v1163 = vld [vmem:[#allocation2 + $0x1c9] sm:$0xff]
      %v1164 = vld [vmem:[#allocation2 + $0x1d1] sm:$0xff]
      %v1165 = vld [vmem:[#allocation2 + $0x1e9] sm:$0xff]
      %v1166 = vld [vmem:[#allocation2 + $0x1f1] sm:$0xff]
      %v1167 = vld [vmem:[%s3 + $0x2] sm:$0x1]
      %v1168 = vlaneseq
      %v1169 = vshrl.u32 %v1168, 7
      %v1170 = vsub.s32 0, %v1169
      %v1171 = vrot.slane %v1167, %v1170
      %v1172 = vmul.f32 %v1135, %v1171
      %v1173 = vmul.f32 %v1136, %v1171
      %v1174 = vmul.f32 %v1137, %v1171
      %v1175 = vmul.f32 %v1138, %v1171
      %v1176 = vmul.f32 %v1139, %v1171
      %v1177 = vmul.f32 %v1140, %v1171
      %v1178 = vmul.f32 %v1141, %v1171
      %v1179 = vmul.f32 %v1142, %v1171
      %v1180 = vmul.f32 %v1143, %v1171
      %v1181 = vmul.f32 %v1144, %v1171
      %v1182 = vmul.f32 %v1145, %v1171
      %v1183 = vmul.f32 %v1146, %v1171
      %v1184 = vmul.f32 %v1147, %v1171
      %v1185 = vmul.f32 %v1148, %v1171
      %v1186 = vmul.f32 %v1149, %v1171
      %v1187 = vmul.f32 %v1150, %v1171
      %v1188 = vmul.f32 %v1151, %v1171
      %v1189 = vmul.f32 %v1152, %v1171
      %v1190 = vmul.f32 %v1153, %v1171
      %v1191 = vmul.f32 %v1154, %v1171
      %v1192 = vmul.f32 %v1155, %v1171
      %v1193 = vmul.f32 %v1156, %v1171
      %v1194 = vmul.f32 %v1157, %v1171
      %v1195 = vmul.f32 %v1158, %v1171
      %v1196 = vmul.f32 %v1159, %v1171
      %v1197 = vmul.f32 %v1160, %v1171
      %v1198 = vmul.f32 %v1161, %v1171
      %v1199 = vmul.f32 %v1162, %v1171
      %v1200 = vmul.f32 %v1163, %v1171
      %v1201 = vmul.f32 %v1164, %v1171
      %v1202 = vmul.f32 %v1165, %v1171
      %v1203 = vmul.f32 %v1166, %v1171
      %v1204 = vadd.f32 %v1103, %v1172
      %v1205 = vadd.f32 %v1104, %v1173
      %v1206 = vadd.f32 %v1105, %v1174
      %v1207 = vadd.f32 %v1106, %v1175
      %v1208 = vadd.f32 %v1107, %v1176
      %v1209 = vadd.f32 %v1108, %v1177
      %v1210 = vadd.f32 %v1109, %v1178
      %v1211 = vadd.f32 %v1110, %v1179
      %v1212 = vadd.f32 %v1111, %v1180
      %v1213 = vadd.f32 %v1112, %v1181
      %v1214 = vadd.f32 %v1113, %v1182
      %v1215 = vadd.f32 %v1114, %v1183
      %v1216 = vadd.f32 %v1115, %v1184
      %v1217 = vadd.f32 %v1116, %v1185
      %v1218 = vadd.f32 %v1117, %v1186
      %v1219 = vadd.f32 %v1118, %v1187
      %v1220 = vadd.f32 %v1119, %v1188
      %v1221 = vadd.f32 %v1120, %v1189
      %v1222 = vadd.f32 %v1121, %v1190
      %v1223 = vadd.f32 %v1122, %v1191
      %v1224 = vadd.f32 %v1123, %v1192
      %v1225 = vadd.f32 %v1124, %v1193
      %v1226 = vadd.f32 %v1125, %v1194
      %v1227 = vadd.f32 %v1126, %v1195
      %v1228 = vadd.f32 %v1127, %v1196
      %v1229 = vadd.f32 %v1128, %v1197
      %v1230 = vadd.f32 %v1129, %v1198
      %v1231 = vadd.f32 %v1130, %v1199
      %v1232 = vadd.f32 %v1131, %v1200
      %v1233 = vadd.f32 %v1132, %v1201
      %v1234 = vadd.f32 %v1133, %v1202
      %v1235 = vadd.f32 %v1134, %v1203
      %v1236 = vld [vmem:[%s900 + $0x7] sm:$0xff]
      %v1237 = vld [vmem:[%s900 + $0xf] sm:$0xff]
      %v1238 = vld [vmem:[%s900 + $0x27] sm:$0xff]
      %v1239 = vld [vmem:[%s900 + $0x2f] sm:$0xff]
      %v1240 = vld [vmem:[%s900 + $0x47] sm:$0xff]
      %v1241 = vld [vmem:[%s900 + $0x4f] sm:$0xff]
      %v1242 = vld [vmem:[%s900 + $0x67] sm:$0xff]
      %v1243 = vld [vmem:[%s900 + $0x6f] sm:$0xff]
      %v1244 = vld [vmem:[%s900 + $0x87] sm:$0xff]
      %v1245 = vld [vmem:[%s900 + $0x8f] sm:$0xff]
      %v1246 = vld [vmem:[%s900 + $0xa7] sm:$0xff]
      %v1247 = vld [vmem:[%s900 + $0xaf] sm:$0xff]
      %v1248 = vld [vmem:[%s900 + $0xc7] sm:$0xff]
      %v1249 = vld [vmem:[%s900 + $0xcf] sm:$0xff]
      %v1250 = vld [vmem:[%s900 + $0xe7] sm:$0xff]
      %v1251 = vld [vmem:[%s900 + $0xef] sm:$0xff]
      %v1252 = vld [vmem:[%s900 + $0x107] sm:$0xff]
      %v1253 = vld [vmem:[%s900 + $0x10f] sm:$0xff]
      %v1254 = vld [vmem:[%s900 + $0x127] sm:$0xff]
      %v1255 = vld [vmem:[%s900 + $0x12f] sm:$0xff]
      %v1256 = vld [vmem:[%s900 + $0x147] sm:$0xff]
      %v1257 = vld [vmem:[%s900 + $0x14f] sm:$0xff]
      %v1258 = vld [vmem:[%s900 + $0x167] sm:$0xff]
      %v1259 = vld [vmem:[%s900 + $0x16f] sm:$0xff]
      %v1260 = vld [vmem:[%s900 + $0x187] sm:$0xff]
      %v1261 = vld [vmem:[%s900 + $0x18f] sm:$0xff]
      %v1262 = vld [vmem:[%s900 + $0x1a7] sm:$0xff]
      %v1263 = vld [vmem:[%s900 + $0x1af] sm:$0xff]
      %v1264 = vld [vmem:[%s900 + $0x1c7] sm:$0xff]
      %v1265 = vld [vmem:[%s900 + $0x1cf] sm:$0xff]
      %v1266 = vld [vmem:[%s900 + $0x1e7] sm:$0xff]
      %v1267 = vld [vmem:[%s900 + $0x1ef] sm:$0xff]
      %v1268 = vld [vmem:[%s3 + $0x3] sm:$0x1]
      %v1269 = vlaneseq
      %v1270 = vshrl.u32 %v1269, 7
      %v1271 = vsub.s32 0, %v1270
      %v1272 = vrot.slane %v1268, %v1271
      %v1273 = vmul.f32 %v1236, %v1272
      %v1274 = vmul.f32 %v1237, %v1272
      %v1275 = vmul.f32 %v1238, %v1272
      %v1276 = vmul.f32 %v1239, %v1272
      %v1277 = vmul.f32 %v1240, %v1272
      %v1278 = vmul.f32 %v1241, %v1272
      %v1279 = vmul.f32 %v1242, %v1272
      %v1280 = vmul.f32 %v1243, %v1272
      %v1281 = vmul.f32 %v1244, %v1272
      %v1282 = vmul.f32 %v1245, %v1272
      %v1283 = vmul.f32 %v1246, %v1272
      %v1284 = vmul.f32 %v1247, %v1272
      %v1285 = vmul.f32 %v1248, %v1272
      %v1286 = vmul.f32 %v1249, %v1272
      %v1287 = vmul.f32 %v1250, %v1272
      %v1288 = vmul.f32 %v1251, %v1272
      %v1289 = vmul.f32 %v1252, %v1272
      %v1290 = vmul.f32 %v1253, %v1272
      %v1291 = vmul.f32 %v1254, %v1272
      %v1292 = vmul.f32 %v1255, %v1272
      %v1293 = vmul.f32 %v1256, %v1272
      %v1294 = vmul.f32 %v1257, %v1272
      %v1295 = vmul.f32 %v1258, %v1272
      %v1296 = vmul.f32 %v1259, %v1272
      %v1297 = vmul.f32 %v1260, %v1272
      %v1298 = vmul.f32 %v1261, %v1272
      %v1299 = vmul.f32 %v1262, %v1272
      %v1300 = vmul.f32 %v1263, %v1272
      %v1301 = vmul.f32 %v1264, %v1272
      %v1302 = vmul.f32 %v1265, %v1272
      %v1303 = vmul.f32 %v1266, %v1272
      %v1304 = vmul.f32 %v1267, %v1272
      %v1305 = vadd.f32 %v1204, %v1273
      %v1306 = vadd.f32 %v1205, %v1274
      %v1307 = vadd.f32 %v1206, %v1275
      %v1308 = vadd.f32 %v1207, %v1276
      %v1309 = vadd.f32 %v1208, %v1277
      %v1310 = vadd.f32 %v1209, %v1278
      %v1311 = vadd.f32 %v1210, %v1279
      %v1312 = vadd.f32 %v1211, %v1280
      %v1313 = vadd.f32 %v1212, %v1281
      %v1314 = vadd.f32 %v1213, %v1282
      %v1315 = vadd.f32 %v1214, %v1283
      %v1316 = vadd.f32 %v1215, %v1284
      %v1317 = vadd.f32 %v1216, %v1285
      %v1318 = vadd.f32 %v1217, %v1286
      %v1319 = vadd.f32 %v1218, %v1287
      %v1320 = vadd.f32 %v1219, %v1288
      %v1321 = vadd.f32 %v1220, %v1289
      %v1322 = vadd.f32 %v1221, %v1290
      %v1323 = vadd.f32 %v1222, %v1291
      %v1324 = vadd.f32 %v1223, %v1292
      %v1325 = vadd.f32 %v1224, %v1293
      %v1326 = vadd.f32 %v1225, %v1294
      %v1327 = vadd.f32 %v1226, %v1295
      %v1328 = vadd.f32 %v1227, %v1296
      %v1329 = vadd.f32 %v1228, %v1297
      %v1330 = vadd.f32 %v1229, %v1298
      %v1331 = vadd.f32 %v1230, %v1299
      %v1332 = vadd.f32 %v1231, %v1300
      %v1333 = vadd.f32 %v1232, %v1301
      %v1334 = vadd.f32 %v1233, %v1302
      %v1335 = vadd.f32 %v1234, %v1303
      %v1336 = vadd.f32 %v1235, %v1304
      %v1337 = vld [vmem:[%s900 + $0x8] sm:$0xff]
      %v1338 = vld [vmem:[%s900 + $0x10] sm:$0xff]
      %v1339 = vld [vmem:[%s900 + $0x28] sm:$0xff]
      %v1340 = vld [vmem:[%s900 + $0x30] sm:$0xff]
      %v1341 = vld [vmem:[%s900 + $0x48] sm:$0xff]
      %v1342 = vld [vmem:[%s900 + $0x50] sm:$0xff]
      %v1343 = vld [vmem:[%s900 + $0x68] sm:$0xff]
      %v1344 = vld [vmem:[%s900 + $0x70] sm:$0xff]
      %v1345 = vld [vmem:[%s900 + $0x88] sm:$0xff]
      %v1346 = vld [vmem:[%s900 + $0x90] sm:$0xff]
      %v1347 = vld [vmem:[%s900 + $0xa8] sm:$0xff]
      %v1348 = vld [vmem:[%s900 + $0xb0] sm:$0xff]
      %v1349 = vld [vmem:[%s900 + $0xc8] sm:$0xff]
      %v1350 = vld [vmem:[%s900 + $0xd0] sm:$0xff]
      %v1351 = vld [vmem:[%s900 + $0xe8] sm:$0xff]
      %v1352 = vld [vmem:[%s900 + $0xf0] sm:$0xff]
      %v1353 = vld [vmem:[%s900 + $0x108] sm:$0xff]
      %v1354 = vld [vmem:[%s900 + $0x110] sm:$0xff]
      %v1355 = vld [vmem:[%s900 + $0x128] sm:$0xff]
      %v1356 = vld [vmem:[%s900 + $0x130] sm:$0xff]
      %v1357 = vld [vmem:[%s900 + $0x148] sm:$0xff]
      %v1358 = vld [vmem:[%s900 + $0x150] sm:$0xff]
      %v1359 = vld [vmem:[%s900 + $0x168] sm:$0xff]
      %v1360 = vld [vmem:[%s900 + $0x170] sm:$0xff]
      %v1361 = vld [vmem:[%s900 + $0x188] sm:$0xff]
      %v1362 = vld [vmem:[%s900 + $0x190] sm:$0xff]
      %v1363 = vld [vmem:[%s900 + $0x1a8] sm:$0xff]
      %v1364 = vld [vmem:[%s900 + $0x1b0] sm:$0xff]
      %v1365 = vld [vmem:[%s900 + $0x1c8] sm:$0xff]
      %v1366 = vld [vmem:[%s900 + $0x1d0] sm:$0xff]
      %v1367 = vld [vmem:[%s900 + $0x1e8] sm:$0xff]
      %v1368 = vld [vmem:[%s900 + $0x1f0] sm:$0xff]
      %v1369 = vld [vmem:[%s3 + $0x4] sm:$0x1]
      %v1370 = vlaneseq
      %v1371 = vshrl.u32 %v1370, 7
      %v1372 = vsub.s32 0, %v1371
      %v1373 = vrot.slane %v1369, %v1372
      %v1374 = vmul.f32 %v1337, %v1373
      %v1375 = vmul.f32 %v1338, %v1373
      %v1376 = vmul.f32 %v1339, %v1373
      %v1377 = vmul.f32 %v1340, %v1373
      %v1378 = vmul.f32 %v1341, %v1373
      %v1379 = vmul.f32 %v1342, %v1373
      %v1380 = vmul.f32 %v1343, %v1373
      %v1381 = vmul.f32 %v1344, %v1373
      %v1382 = vmul.f32 %v1345, %v1373
      %v1383 = vmul.f32 %v1346, %v1373
      %v1384 = vmul.f32 %v1347, %v1373
      %v1385 = vmul.f32 %v1348, %v1373
      %v1386 = vmul.f32 %v1349, %v1373
      %v1387 = vmul.f32 %v1350, %v1373
      %v1388 = vmul.f32 %v1351, %v1373
      %v1389 = vmul.f32 %v1352, %v1373
      %v1390 = vmul.f32 %v1353, %v1373
      %v1391 = vmul.f32 %v1354, %v1373
      %v1392 = vmul.f32 %v1355, %v1373
      %v1393 = vmul.f32 %v1356, %v1373
      %v1394 = vmul.f32 %v1357, %v1373
      %v1395 = vmul.f32 %v1358, %v1373
      %v1396 = vmul.f32 %v1359, %v1373
      %v1397 = vmul.f32 %v1360, %v1373
      %v1398 = vmul.f32 %v1361, %v1373
      %v1399 = vmul.f32 %v1362, %v1373
      %v1400 = vmul.f32 %v1363, %v1373
      %v1401 = vmul.f32 %v1364, %v1373
      %v1402 = vmul.f32 %v1365, %v1373
      %v1403 = vmul.f32 %v1366, %v1373
      %v1404 = vmul.f32 %v1367, %v1373
      %v1405 = vmul.f32 %v1368, %v1373
      %v1406 = vadd.f32 %v1305, %v1374
      %v1407 = vadd.f32 %v1306, %v1375
      %v1408 = vadd.f32 %v1307, %v1376
      %v1409 = vadd.f32 %v1308, %v1377
      %v1410 = vadd.f32 %v1309, %v1378
      %v1411 = vadd.f32 %v1310, %v1379
      %v1412 = vadd.f32 %v1311, %v1380
      %v1413 = vadd.f32 %v1312, %v1381
      %v1414 = vadd.f32 %v1313, %v1382
      %v1415 = vadd.f32 %v1314, %v1383
      %v1416 = vadd.f32 %v1315, %v1384
      %v1417 = vadd.f32 %v1316, %v1385
      %v1418 = vadd.f32 %v1317, %v1386
      %v1419 = vadd.f32 %v1318, %v1387
      %v1420 = vadd.f32 %v1319, %v1388
      %v1421 = vadd.f32 %v1320, %v1389
      %v1422 = vadd.f32 %v1321, %v1390
      %v1423 = vadd.f32 %v1322, %v1391
      %v1424 = vadd.f32 %v1323, %v1392
      %v1425 = vadd.f32 %v1324, %v1393
      %v1426 = vadd.f32 %v1325, %v1394
      %v1427 = vadd.f32 %v1326, %v1395
      %v1428 = vadd.f32 %v1327, %v1396
      %v1429 = vadd.f32 %v1328, %v1397
      %v1430 = vadd.f32 %v1329, %v1398
      %v1431 = vadd.f32 %v1330, %v1399
      %v1432 = vadd.f32 %v1331, %v1400
      %v1433 = vadd.f32 %v1332, %v1401
      %v1434 = vadd.f32 %v1333, %v1402
      %v1435 = vadd.f32 %v1334, %v1403
      %v1436 = vadd.f32 %v1335, %v1404
      %v1437 = vadd.f32 %v1336, %v1405
      %v1438 = vld [vmem:[%s900 + $0x9] sm:$0xff]
      %v1439 = vld [vmem:[%s900 + $0x11] sm:$0xff]
      %v1440 = vld [vmem:[%s900 + $0x29] sm:$0xff]
      %v1441 = vld [vmem:[%s900 + $0x31] sm:$0xff]
      %v1442 = vld [vmem:[%s900 + $0x49] sm:$0xff]
      %v1443 = vld [vmem:[%s900 + $0x51] sm:$0xff]
      %v1444 = vld [vmem:[%s900 + $0x69] sm:$0xff]
      %v1445 = vld [vmem:[%s900 + $0x71] sm:$0xff]
      %v1446 = vld [vmem:[%s900 + $0x89] sm:$0xff]
      %v1447 = vld [vmem:[%s900 + $0x91] sm:$0xff]
      %v1448 = vld [vmem:[%s900 + $0xa9] sm:$0xff]
      %v1449 = vld [vmem:[%s900 + $0xb1] sm:$0xff]
      %v1450 = vld [vmem:[%s900 + $0xc9] sm:$0xff]
      %v1451 = vld [vmem:[%s900 + $0xd1] sm:$0xff]
      %v1452 = vld [vmem:[%s900 + $0xe9] sm:$0xff]
      %v1453 = vld [vmem:[%s900 + $0xf1] sm:$0xff]
      %v1454 = vld [vmem:[%s900 + $0x109] sm:$0xff]
      %v1455 = vld [vmem:[%s900 + $0x111] sm:$0xff]
      %v1456 = vld [vmem:[%s900 + $0x129] sm:$0xff]
      %v1457 = vld [vmem:[%s900 + $0x131] sm:$0xff]
      %v1458 = vld [vmem:[%s900 + $0x149] sm:$0xff]
      %v1459 = vld [vmem:[%s900 + $0x151] sm:$0xff]
      %v1460 = vld [vmem:[%s900 + $0x169] sm:$0xff]
      %v1461 = vld [vmem:[%s900 + $0x171] sm:$0xff]
      %v1462 = vld [vmem:[%s900 + $0x189] sm:$0xff]
      %v1463 = vld [vmem:[%s900 + $0x191] sm:$0xff]
      %v1464 = vld [vmem:[%s900 + $0x1a9] sm:$0xff]
      %v1465 = vld [vmem:[%s900 + $0x1b1] sm:$0xff]
      %v1466 = vld [vmem:[%s900 + $0x1c9] sm:$0xff]
      %v1467 = vld [vmem:[%s900 + $0x1d1] sm:$0xff]
      %v1468 = vld [vmem:[%s900 + $0x1e9] sm:$0xff]
      %v1469 = vld [vmem:[%s900 + $0x1f1] sm:$0xff]
      %v1470 = vld [vmem:[%s3 + $0x5] sm:$0x1]
      %v1471 = vlaneseq
      %v1472 = vshrl.u32 %v1471, 7
      %v1473 = vsub.s32 0, %v1472
      %v1474 = vrot.slane %v1470, %v1473
      %v1475 = vmul.f32 %v1438, %v1474
      %v1476 = vmul.f32 %v1439, %v1474
      %v1477 = vmul.f32 %v1440, %v1474
      %v1478 = vmul.f32 %v1441, %v1474
      %v1479 = vmul.f32 %v1442, %v1474
      %v1480 = vmul.f32 %v1443, %v1474
      %v1481 = vmul.f32 %v1444, %v1474
      %v1482 = vmul.f32 %v1445, %v1474
      %v1483 = vmul.f32 %v1446, %v1474
      %v1484 = vmul.f32 %v1447, %v1474
      %v1485 = vmul.f32 %v1448, %v1474
      %v1486 = vmul.f32 %v1449, %v1474
      %v1487 = vmul.f32 %v1450, %v1474
      %v1488 = vmul.f32 %v1451, %v1474
      %v1489 = vmul.f32 %v1452, %v1474
      %v1490 = vmul.f32 %v1453, %v1474
      %v1491 = vmul.f32 %v1454, %v1474
      %v1492 = vmul.f32 %v1455, %v1474
      %v1493 = vmul.f32 %v1456, %v1474
      %v1494 = vmul.f32 %v1457, %v1474
      %v1495 = vmul.f32 %v1458, %v1474
      %v1496 = vmul.f32 %v1459, %v1474
      %v1497 = vmul.f32 %v1460, %v1474
      %v1498 = vmul.f32 %v1461, %v1474
      %v1499 = vmul.f32 %v1462, %v1474
      %v1500 = vmul.f32 %v1463, %v1474
      %v1501 = vmul.f32 %v1464, %v1474
      %v1502 = vmul.f32 %v1465, %v1474
      %v1503 = vmul.f32 %v1466, %v1474
      %v1504 = vmul.f32 %v1467, %v1474
      %v1505 = vmul.f32 %v1468, %v1474
      %v1506 = vmul.f32 %v1469, %v1474
      %v1507 = vadd.f32 %v1406, %v1475
      %v1508 = vadd.f32 %v1407, %v1476
      %v1509 = vadd.f32 %v1408, %v1477
      %v1510 = vadd.f32 %v1409, %v1478
      %v1511 = vadd.f32 %v1410, %v1479
      %v1512 = vadd.f32 %v1411, %v1480
      %v1513 = vadd.f32 %v1412, %v1481
      %v1514 = vadd.f32 %v1413, %v1482
      %v1515 = vadd.f32 %v1414, %v1483
      %v1516 = vadd.f32 %v1415, %v1484
      %v1517 = vadd.f32 %v1416, %v1485
      %v1518 = vadd.f32 %v1417, %v1486
      %v1519 = vadd.f32 %v1418, %v1487
      %v1520 = vadd.f32 %v1419, %v1488
      %v1521 = vadd.f32 %v1420, %v1489
      %v1522 = vadd.f32 %v1421, %v1490
      %v1523 = vadd.f32 %v1422, %v1491
      %v1524 = vadd.f32 %v1423, %v1492
      %v1525 = vadd.f32 %v1424, %v1493
      %v1526 = vadd.f32 %v1425, %v1494
      %v1527 = vadd.f32 %v1426, %v1495
      %v1528 = vadd.f32 %v1427, %v1496
      %v1529 = vadd.f32 %v1428, %v1497
      %v1530 = vadd.f32 %v1429, %v1498
      %v1531 = vadd.f32 %v1430, %v1499
      %v1532 = vadd.f32 %v1431, %v1500
      %v1533 = vadd.f32 %v1432, %v1501
      %v1534 = vadd.f32 %v1433, %v1502
      %v1535 = vadd.f32 %v1434, %v1503
      %v1536 = vadd.f32 %v1435, %v1504
      %v1537 = vadd.f32 %v1436, %v1505
      %v1538 = vadd.f32 %v1437, %v1506
      %s1539 = scalar_lea.vmem [#allocation2], 64
      %v1540 = vld [vmem:[%s1539 + $0x7] sm:$0xff]
      %v1541 = vld [vmem:[%s1539 + $0xf] sm:$0xff]
      %v1542 = vld [vmem:[%s1539 + $0x27] sm:$0xff]
      %v1543 = vld [vmem:[%s1539 + $0x2f] sm:$0xff]
      %v1544 = vld [vmem:[%s1539 + $0x47] sm:$0xff]
      %v1545 = vld [vmem:[%s1539 + $0x4f] sm:$0xff]
      %v1546 = vld [vmem:[%s1539 + $0x67] sm:$0xff]
      %v1547 = vld [vmem:[%s1539 + $0x6f] sm:$0xff]
      %v1548 = vld [vmem:[%s1539 + $0x87] sm:$0xff]
      %v1549 = vld [vmem:[%s1539 + $0x8f] sm:$0xff]
      %v1550 = vld [vmem:[%s1539 + $0xa7] sm:$0xff]
      %v1551 = vld [vmem:[%s1539 + $0xaf] sm:$0xff]
      %v1552 = vld [vmem:[%s1539 + $0xc7] sm:$0xff]
      %v1553 = vld [vmem:[%s1539 + $0xcf] sm:$0xff]
      %v1554 = vld [vmem:[%s1539 + $0xe7] sm:$0xff]
      %v1555 = vld [vmem:[%s1539 + $0xef] sm:$0xff]
      %v1556 = vld [vmem:[%s1539 + $0x107] sm:$0xff]
      %v1557 = vld [vmem:[%s1539 + $0x10f] sm:$0xff]
      %v1558 = vld [vmem:[%s1539 + $0x127] sm:$0xff]
      %v1559 = vld [vmem:[%s1539 + $0x12f] sm:$0xff]
      %v1560 = vld [vmem:[%s1539 + $0x147] sm:$0xff]
      %v1561 = vld [vmem:[%s1539 + $0x14f] sm:$0xff]
      %v1562 = vld [vmem:[%s1539 + $0x167] sm:$0xff]
      %v1563 = vld [vmem:[%s1539 + $0x16f] sm:$0xff]
      %v1564 = vld [vmem:[%s1539 + $0x187] sm:$0xff]
      %v1565 = vld [vmem:[%s1539 + $0x18f] sm:$0xff]
      %v1566 = vld [vmem:[%s1539 + $0x1a7] sm:$0xff]
      %v1567 = vld [vmem:[%s1539 + $0x1af] sm:$0xff]
      %v1568 = vld [vmem:[%s1539 + $0x1c7] sm:$0xff]
      %v1569 = vld [vmem:[%s1539 + $0x1cf] sm:$0xff]
      %v1570 = vld [vmem:[%s1539 + $0x1e7] sm:$0xff]
      %v1571 = vld [vmem:[%s1539 + $0x1ef] sm:$0xff]
      %v1572 = vld [vmem:[%s3 + $0x6] sm:$0x1]
      %v1573 = vlaneseq
      %v1574 = vshrl.u32 %v1573, 7
      %v1575 = vsub.s32 0, %v1574
      %v1576 = vrot.slane %v1572, %v1575
      %v1577 = vmul.f32 %v1540, %v1576
      %v1578 = vmul.f32 %v1541, %v1576
      %v1579 = vmul.f32 %v1542, %v1576
      %v1580 = vmul.f32 %v1543, %v1576
      %v1581 = vmul.f32 %v1544, %v1576
      %v1582 = vmul.f32 %v1545, %v1576
      %v1583 = vmul.f32 %v1546, %v1576
      %v1584 = vmul.f32 %v1547, %v1576
      %v1585 = vmul.f32 %v1548, %v1576
      %v1586 = vmul.f32 %v1549, %v1576
      %v1587 = vmul.f32 %v1550, %v1576
      %v1588 = vmul.f32 %v1551, %v1576
      %v1589 = vmul.f32 %v1552, %v1576
      %v1590 = vmul.f32 %v1553, %v1576
      %v1591 = vmul.f32 %v1554, %v1576
      %v1592 = vmul.f32 %v1555, %v1576
      %v1593 = vmul.f32 %v1556, %v1576
      %v1594 = vmul.f32 %v1557, %v1576
      %v1595 = vmul.f32 %v1558, %v1576
      %v1596 = vmul.f32 %v1559, %v1576
      %v1597 = vmul.f32 %v1560, %v1576
      %v1598 = vmul.f32 %v1561, %v1576
      %v1599 = vmul.f32 %v1562, %v1576
      %v1600 = vmul.f32 %v1563, %v1576
      %v1601 = vmul.f32 %v1564, %v1576
      %v1602 = vmul.f32 %v1565, %v1576
      %v1603 = vmul.f32 %v1566, %v1576
      %v1604 = vmul.f32 %v1567, %v1576
      %v1605 = vmul.f32 %v1568, %v1576
      %v1606 = vmul.f32 %v1569, %v1576
      %v1607 = vmul.f32 %v1570, %v1576
      %v1608 = vmul.f32 %v1571, %v1576
      %v1609 = vadd.f32 %v1507, %v1577
      %v1610 = vadd.f32 %v1508, %v1578
      %v1611 = vadd.f32 %v1509, %v1579
      %v1612 = vadd.f32 %v1510, %v1580
      %v1613 = vadd.f32 %v1511, %v1581
      %v1614 = vadd.f32 %v1512, %v1582
      %v1615 = vadd.f32 %v1513, %v1583
      %v1616 = vadd.f32 %v1514, %v1584
      %v1617 = vadd.f32 %v1515, %v1585
      %v1618 = vadd.f32 %v1516, %v1586
      %v1619 = vadd.f32 %v1517, %v1587
      %v1620 = vadd.f32 %v1518, %v1588
      %v1621 = vadd.f32 %v1519, %v1589
      %v1622 = vadd.f32 %v1520, %v1590
      %v1623 = vadd.f32 %v1521, %v1591
      %v1624 = vadd.f32 %v1522, %v1592
      %v1625 = vadd.f32 %v1523, %v1593
      %v1626 = vadd.f32 %v1524, %v1594
      %v1627 = vadd.f32 %v1525, %v1595
      %v1628 = vadd.f32 %v1526, %v1596
      %v1629 = vadd.f32 %v1527, %v1597
      %v1630 = vadd.f32 %v1528, %v1598
      %v1631 = vadd.f32 %v1529, %v1599
      %v1632 = vadd.f32 %v1530, %v1600
      %v1633 = vadd.f32 %v1531, %v1601
      %v1634 = vadd.f32 %v1532, %v1602
      %v1635 = vadd.f32 %v1533, %v1603
      %v1636 = vadd.f32 %v1534, %v1604
      %v1637 = vadd.f32 %v1535, %v1605
      %v1638 = vadd.f32 %v1536, %v1606
      %v1639 = vadd.f32 %v1537, %v1607
      %v1640 = vadd.f32 %v1538, %v1608
      %v1641 = vld [vmem:[%s1539 + $0x8] sm:$0xff]
      %v1642 = vld [vmem:[%s1539 + $0x10] sm:$0xff]
      %v1643 = vld [vmem:[%s1539 + $0x28] sm:$0xff]
      %v1644 = vld [vmem:[%s1539 + $0x30] sm:$0xff]
      %v1645 = vld [vmem:[%s1539 + $0x48] sm:$0xff]
      %v1646 = vld [vmem:[%s1539 + $0x50] sm:$0xff]
      %v1647 = vld [vmem:[%s1539 + $0x68] sm:$0xff]
      %v1648 = vld [vmem:[%s1539 + $0x70] sm:$0xff]
      %v1649 = vld [vmem:[%s1539 + $0x88] sm:$0xff]
      %v1650 = vld [vmem:[%s1539 + $0x90] sm:$0xff]
      %v1651 = vld [vmem:[%s1539 + $0xa8] sm:$0xff]
      %v1652 = vld [vmem:[%s1539 + $0xb0] sm:$0xff]
      %v1653 = vld [vmem:[%s1539 + $0xc8] sm:$0xff]
      %v1654 = vld [vmem:[%s1539 + $0xd0] sm:$0xff]
      %v1655 = vld [vmem:[%s1539 + $0xe8] sm:$0xff]
      %v1656 = vld [vmem:[%s1539 + $0xf0] sm:$0xff]
      %v1657 = vld [vmem:[%s1539 + $0x108] sm:$0xff]
      %v1658 = vld [vmem:[%s1539 + $0x110] sm:$0xff]
      %v1659 = vld [vmem:[%s1539 + $0x128] sm:$0xff]
      %v1660 = vld [vmem:[%s1539 + $0x130] sm:$0xff]
      %v1661 = vld [vmem:[%s1539 + $0x148] sm:$0xff]
      %v1662 = vld [vmem:[%s1539 + $0x150] sm:$0xff]
      %v1663 = vld [vmem:[%s1539 + $0x168] sm:$0xff]
      %v1664 = vld [vmem:[%s1539 + $0x170] sm:$0xff]
      %v1665 = vld [vmem:[%s1539 + $0x188] sm:$0xff]
      %v1666 = vld [vmem:[%s1539 + $0x190] sm:$0xff]
      %v1667 = vld [vmem:[%s1539 + $0x1a8] sm:$0xff]
      %v1668 = vld [vmem:[%s1539 + $0x1b0] sm:$0xff]
      %v1669 = vld [vmem:[%s1539 + $0x1c8] sm:$0xff]
      %v1670 = vld [vmem:[%s1539 + $0x1d0] sm:$0xff]
      %v1671 = vld [vmem:[%s1539 + $0x1e8] sm:$0xff]
      %v1672 = vld [vmem:[%s1539 + $0x1f0] sm:$0xff]
      %v1673 = vld [vmem:[%s3 + $0x7] sm:$0x1]
      %v1674 = vlaneseq
      %v1675 = vshrl.u32 %v1674, 7
      %v1676 = vsub.s32 0, %v1675
      %v1677 = vrot.slane %v1673, %v1676
      %v1678 = vmul.f32 %v1641, %v1677
      %v1679 = vmul.f32 %v1642, %v1677
      %v1680 = vmul.f32 %v1643, %v1677
      %v1681 = vmul.f32 %v1644, %v1677
      %v1682 = vmul.f32 %v1645, %v1677
      %v1683 = vmul.f32 %v1646, %v1677
      %v1684 = vmul.f32 %v1647, %v1677
      %v1685 = vmul.f32 %v1648, %v1677
      %v1686 = vmul.f32 %v1649, %v1677
      %v1687 = vmul.f32 %v1650, %v1677
      %v1688 = vmul.f32 %v1651, %v1677
      %v1689 = vmul.f32 %v1652, %v1677
      %v1690 = vmul.f32 %v1653, %v1677
      %v1691 = vmul.f32 %v1654, %v1677
      %v1692 = vmul.f32 %v1655, %v1677
      %v1693 = vmul.f32 %v1656, %v1677
      %v1694 = vmul.f32 %v1657, %v1677
      %v1695 = vmul.f32 %v1658, %v1677
      %v1696 = vmul.f32 %v1659, %v1677
      %v1697 = vmul.f32 %v1660, %v1677
      %v1698 = vmul.f32 %v1661, %v1677
      %v1699 = vmul.f32 %v1662, %v1677
      %v1700 = vmul.f32 %v1663, %v1677
      %v1701 = vmul.f32 %v1664, %v1677
      %v1702 = vmul.f32 %v1665, %v1677
      %v1703 = vmul.f32 %v1666, %v1677
      %v1704 = vmul.f32 %v1667, %v1677
      %v1705 = vmul.f32 %v1668, %v1677
      %v1706 = vmul.f32 %v1669, %v1677
      %v1707 = vmul.f32 %v1670, %v1677
      %v1708 = vmul.f32 %v1671, %v1677
      %v1709 = vmul.f32 %v1672, %v1677
      %v1710 = vadd.f32 %v1609, %v1678
      %v1711 = vadd.f32 %v1610, %v1679
      %v1712 = vadd.f32 %v1611, %v1680
      %v1713 = vadd.f32 %v1612, %v1681
      %v1714 = vadd.f32 %v1613, %v1682
      %v1715 = vadd.f32 %v1614, %v1683
      %v1716 = vadd.f32 %v1615, %v1684
      %v1717 = vadd.f32 %v1616, %v1685
      %v1718 = vadd.f32 %v1617, %v1686
      %v1719 = vadd.f32 %v1618, %v1687
      %v1720 = vadd.f32 %v1619, %v1688
      %v1721 = vadd.f32 %v1620, %v1689
      %v1722 = vadd.f32 %v1621, %v1690
      %v1723 = vadd.f32 %v1622, %v1691
      %v1724 = vadd.f32 %v1623, %v1692
      %v1725 = vadd.f32 %v1624, %v1693
      %v1726 = vadd.f32 %v1625, %v1694
      %v1727 = vadd.f32 %v1626, %v1695
      %v1728 = vadd.f32 %v1627, %v1696
      %v1729 = vadd.f32 %v1628, %v1697
      %v1730 = vadd.f32 %v1629, %v1698
      %v1731 = vadd.f32 %v1630, %v1699
      %v1732 = vadd.f32 %v1631, %v1700
      %v1733 = vadd.f32 %v1632, %v1701
      %v1734 = vadd.f32 %v1633, %v1702
      %v1735 = vadd.f32 %v1634, %v1703
      %v1736 = vadd.f32 %v1635, %v1704
      %v1737 = vadd.f32 %v1636, %v1705
      %v1738 = vadd.f32 %v1637, %v1706
      %v1739 = vadd.f32 %v1638, %v1707
      %v1740 = vadd.f32 %v1639, %v1708
      %v1741 = vadd.f32 %v1640, %v1709
      %v1742 = vld [vmem:[%s1539 + $0x9] sm:$0xff]
      %v1743 = vld [vmem:[%s1539 + $0x11] sm:$0xff]
      %v1744 = vld [vmem:[%s1539 + $0x29] sm:$0xff]
      %v1745 = vld [vmem:[%s1539 + $0x31] sm:$0xff]
      %v1746 = vld [vmem:[%s1539 + $0x49] sm:$0xff]
      %v1747 = vld [vmem:[%s1539 + $0x51] sm:$0xff]
      %v1748 = vld [vmem:[%s1539 + $0x69] sm:$0xff]
      %v1749 = vld [vmem:[%s1539 + $0x71] sm:$0xff]
      %v1750 = vld [vmem:[%s1539 + $0x89] sm:$0xff]
      %v1751 = vld [vmem:[%s1539 + $0x91] sm:$0xff]
      %v1752 = vld [vmem:[%s1539 + $0xa9] sm:$0xff]
      %v1753 = vld [vmem:[%s1539 + $0xb1] sm:$0xff]
      %v1754 = vld [vmem:[%s1539 + $0xc9] sm:$0xff]
      %v1755 = vld [vmem:[%s1539 + $0xd1] sm:$0xff]
      %v1756 = vld [vmem:[%s1539 + $0xe9] sm:$0xff]
      %v1757 = vld [vmem:[%s1539 + $0xf1] sm:$0xff]
      %v1758 = vld [vmem:[%s1539 + $0x109] sm:$0xff]
      %v1759 = vld [vmem:[%s1539 + $0x111] sm:$0xff]
      %v1760 = vld [vmem:[%s1539 + $0x129] sm:$0xff]
      %v1761 = vld [vmem:[%s1539 + $0x131] sm:$0xff]
      %v1762 = vld [vmem:[%s1539 + $0x149] sm:$0xff]
      %v1763 = vld [vmem:[%s1539 + $0x151] sm:$0xff]
      %v1764 = vld [vmem:[%s1539 + $0x169] sm:$0xff]
      %v1765 = vld [vmem:[%s1539 + $0x171] sm:$0xff]
      %v1766 = vld [vmem:[%s1539 + $0x189] sm:$0xff]
      %v1767 = vld [vmem:[%s1539 + $0x191] sm:$0xff]
      %v1768 = vld [vmem:[%s1539 + $0x1a9] sm:$0xff]
      %v1769 = vld [vmem:[%s1539 + $0x1b1] sm:$0xff]
      %v1770 = vld [vmem:[%s1539 + $0x1c9] sm:$0xff]
      %v1771 = vld [vmem:[%s1539 + $0x1d1] sm:$0xff]
      %v1772 = vld [vmem:[%s1539 + $0x1e9] sm:$0xff]
      %v1773 = vld [vmem:[%s1539 + $0x1f1] sm:$0xff]
      %v1774 = vld [vmem:[%s3 + $0x8] sm:$0x1]
      %v1775 = vlaneseq
      %v1776 = vshrl.u32 %v1775, 7
      %v1777 = vsub.s32 0, %v1776
      %v1778 = vrot.slane %v1774, %v1777
      %v1779 = vmul.f32 %v1742, %v1778
      %v1780 = vmul.f32 %v1743, %v1778
      %v1781 = vmul.f32 %v1744, %v1778
      %v1782 = vmul.f32 %v1745, %v1778
      %v1783 = vmul.f32 %v1746, %v1778
      %v1784 = vmul.f32 %v1747, %v1778
      %v1785 = vmul.f32 %v1748, %v1778
      %v1786 = vmul.f32 %v1749, %v1778
      %v1787 = vmul.f32 %v1750, %v1778
      %v1788 = vmul.f32 %v1751, %v1778
      %v1789 = vmul.f32 %v1752, %v1778
      %v1790 = vmul.f32 %v1753, %v1778
      %v1791 = vmul.f32 %v1754, %v1778
      %v1792 = vmul.f32 %v1755, %v1778
      %v1793 = vmul.f32 %v1756, %v1778
      %v1794 = vmul.f32 %v1757, %v1778
      %v1795 = vmul.f32 %v1758, %v1778
      %v1796 = vmul.f32 %v1759, %v1778
      %v1797 = vmul.f32 %v1760, %v1778
      %v1798 = vmul.f32 %v1761, %v1778
      %v1799 = vmul.f32 %v1762, %v1778
      %v1800 = vmul.f32 %v1763, %v1778
      %v1801 = vmul.f32 %v1764, %v1778
      %v1802 = vmul.f32 %v1765, %v1778
      %v1803 = vmul.f32 %v1766, %v1778
      %v1804 = vmul.f32 %v1767, %v1778
      %v1805 = vmul.f32 %v1768, %v1778
      %v1806 = vmul.f32 %v1769, %v1778
      %v1807 = vmul.f32 %v1770, %v1778
      %v1808 = vmul.f32 %v1771, %v1778
      %v1809 = vmul.f32 %v1772, %v1778
      %v1810 = vmul.f32 %v1773, %v1778
      %v1811 = vadd.f32 %v1710, %v1779
      %v1812 = vadd.f32 %v1711, %v1780
      %v1813 = vadd.f32 %v1712, %v1781
      %v1814 = vadd.f32 %v1713, %v1782
      %v1815 = vadd.f32 %v1714, %v1783
      %v1816 = vadd.f32 %v1715, %v1784
      %v1817 = vadd.f32 %v1716, %v1785
      %v1818 = vadd.f32 %v1717, %v1786
      %v1819 = vadd.f32 %v1718, %v1787
      %v1820 = vadd.f32 %v1719, %v1788
      %v1821 = vadd.f32 %v1720, %v1789
      %v1822 = vadd.f32 %v1721, %v1790
      %v1823 = vadd.f32 %v1722, %v1791
      %v1824 = vadd.f32 %v1723, %v1792
      %v1825 = vadd.f32 %v1724, %v1793
      %v1826 = vadd.f32 %v1725, %v1794
      %v1827 = vadd.f32 %v1726, %v1795
      %v1828 = vadd.f32 %v1727, %v1796
      %v1829 = vadd.f32 %v1728, %v1797
      %v1830 = vadd.f32 %v1729, %v1798
      %v1831 = vadd.f32 %v1730, %v1799
      %v1832 = vadd.f32 %v1731, %v1800
      %v1833 = vadd.f32 %v1732, %v1801
      %v1834 = vadd.f32 %v1733, %v1802
      %v1835 = vadd.f32 %v1734, %v1803
      %v1836 = vadd.f32 %v1735, %v1804
      %v1837 = vadd.f32 %v1736, %v1805
      %v1838 = vadd.f32 %v1737, %v1806
      %v1839 = vadd.f32 %v1738, %v1807
      %v1840 = vadd.f32 %v1739, %v1808
      %v1841 = vadd.f32 %v1740, %v1809
      %v1842 = vadd.f32 %v1741, %v1810
      %v1843 = vld [vmem:[%s4] sm:$0x1]
      %v1845 = vlaneseq
      %v1846 = vshrl.u32 %v1845, 7
      %v1847 = vsub.s32 0, %v1846
      %v1848 = vrot.slane %v1843, %v1847
      %v1850 = vadd.f32 %v1811, %v1848
      %v1851 = vadd.f32 %v1812, %v1848
      %v1852 = vadd.f32 %v1813, %v1848
      %v1853 = vadd.f32 %v1814, %v1848
      %v1854 = vadd.f32 %v1815, %v1848
      %v1855 = vadd.f32 %v1816, %v1848
      %v1856 = vadd.f32 %v1817, %v1848
      %v1857 = vadd.f32 %v1818, %v1848
      %v1858 = vadd.f32 %v1819, %v1848
      %v1859 = vadd.f32 %v1820, %v1848
      %v1860 = vadd.f32 %v1821, %v1848
      %v1861 = vadd.f32 %v1822, %v1848
      %v1862 = vadd.f32 %v1823, %v1848
      %v1863 = vadd.f32 %v1824, %v1848
      %v1864 = vadd.f32 %v1825, %v1848
      %v1865 = vadd.f32 %v1826, %v1848
      %v1866 = vadd.f32 %v1827, %v1848
      %v1867 = vadd.f32 %v1828, %v1848
      %v1868 = vadd.f32 %v1829, %v1848
      %v1869 = vadd.f32 %v1830, %v1848
      %v1870 = vadd.f32 %v1831, %v1848
      %v1871 = vadd.f32 %v1832, %v1848
      %v1872 = vadd.f32 %v1833, %v1848
      %v1873 = vadd.f32 %v1834, %v1848
      %v1874 = vadd.f32 %v1835, %v1848
      %v1875 = vadd.f32 %v1836, %v1848
      %v1876 = vadd.f32 %v1837, %v1848
      %v1877 = vadd.f32 %v1838, %v1848
      %v1878 = vadd.f32 %v1839, %v1848
      %v1879 = vadd.f32 %v1840, %v1848
      %v1880 = vadd.f32 %v1841, %v1848
      %v1881 = vadd.f32 %v1842, %v1848
      %v1882 = vadd.f32 %v1850, 3.0
      %v1883 = vadd.f32 %v1851, 3.0
      %v1884 = vadd.f32 %v1852, 3.0
      %v1885 = vadd.f32 %v1853, 3.0
      %v1886 = vadd.f32 %v1854, 3.0
      %v1887 = vadd.f32 %v1855, 3.0
      %v1888 = vadd.f32 %v1856, 3.0
      %v1889 = vadd.f32 %v1857, 3.0
      %v1890 = vadd.f32 %v1858, 3.0
      %v1891 = vadd.f32 %v1859, 3.0
      %v1892 = vadd.f32 %v1860, 3.0
      %v1893 = vadd.f32 %v1861, 3.0
      %v1894 = vadd.f32 %v1862, 3.0
      %v1895 = vadd.f32 %v1863, 3.0
      %v1896 = vadd.f32 %v1864, 3.0
      %v1897 = vadd.f32 %v1865, 3.0
      %v1898 = vadd.f32 %v1866, 3.0
      %v1899 = vadd.f32 %v1867, 3.0
      %v1900 = vadd.f32 %v1868, 3.0
      %v1901 = vadd.f32 %v1869, 3.0
      %v1902 = vadd.f32 %v1870, 3.0
      %v1903 = vadd.f32 %v1871, 3.0
      %v1904 = vadd.f32 %v1872, 3.0
      %v1905 = vadd.f32 %v1873, 3.0
      %v1906 = vadd.f32 %v1874, 3.0
      %v1907 = vadd.f32 %v1875, 3.0
      %v1908 = vadd.f32 %v1876, 3.0
      %v1909 = vadd.f32 %v1877, 3.0
      %v1910 = vadd.f32 %v1878, 3.0
      %v1911 = vadd.f32 %v1879, 3.0
      %v1912 = vadd.f32 %v1880, 3.0
      %v1913 = vadd.f32 %v1881, 3.0
      %v1914 = vmax.f32 %v1882, 0.0
      %v1915 = vmax.f32 %v1883, 0.0
      %v1916 = vmax.f32 %v1884, 0.0
      %v1917 = vmax.f32 %v1885, 0.0
      %v1918 = vmax.f32 %v1886, 0.0
      %v1919 = vmax.f32 %v1887, 0.0
      %v1920 = vmax.f32 %v1888, 0.0
      %v1921 = vmax.f32 %v1889, 0.0
      %v1922 = vmax.f32 %v1890, 0.0
      %v1923 = vmax.f32 %v1891, 0.0
      %v1924 = vmax.f32 %v1892, 0.0
      %v1925 = vmax.f32 %v1893, 0.0
      %v1926 = vmax.f32 %v1894, 0.0
      %v1927 = vmax.f32 %v1895, 0.0
      %v1928 = vmax.f32 %v1896, 0.0
      %v1929 = vmax.f32 %v1897, 0.0
      %v1930 = vmax.f32 %v1898, 0.0
      %v1931 = vmax.f32 %v1899, 0.0
      %v1932 = vmax.f32 %v1900, 0.0
      %v1933 = vmax.f32 %v1901, 0.0
      %v1934 = vmax.f32 %v1902, 0.0
      %v1935 = vmax.f32 %v1903, 0.0
      %v1936 = vmax.f32 %v1904, 0.0
      %v1937 = vmax.f32 %v1905, 0.0
      %v1938 = vmax.f32 %v1906, 0.0
      %v1939 = vmax.f32 %v1907, 0.0
      %v1940 = vmax.f32 %v1908, 0.0
      %v1941 = vmax.f32 %v1909, 0.0
      %v1942 = vmax.f32 %v1910, 0.0
      %v1943 = vmax.f32 %v1911, 0.0
      %v1944 = vmax.f32 %v1912, 0.0
      %v1945 = vmax.f32 %v1913, 0.0
      %v1946 = vmin.f32 %v1914, 6.0
      %v1947 = vmin.f32 %v1915, 6.0
      %v1948 = vmin.f32 %v1916, 6.0
      %v1949 = vmin.f32 %v1917, 6.0
      %v1950 = vmin.f32 %v1918, 6.0
      %v1951 = vmin.f32 %v1919, 6.0
      %v1952 = vmin.f32 %v1920, 6.0
      %v1953 = vmin.f32 %v1921, 6.0
      %v1954 = vmin.f32 %v1922, 6.0
      %v1955 = vmin.f32 %v1923, 6.0
      %v1956 = vmin.f32 %v1924, 6.0
      %v1957 = vmin.f32 %v1925, 6.0
      %v1958 = vmin.f32 %v1926, 6.0
      %v1959 = vmin.f32 %v1927, 6.0
      %v1960 = vmin.f32 %v1928, 6.0
      %v1961 = vmin.f32 %v1929, 6.0
      %v1962 = vmin.f32 %v1930, 6.0
      %v1963 = vmin.f32 %v1931, 6.0
      %v1964 = vmin.f32 %v1932, 6.0
      %v1965 = vmin.f32 %v1933, 6.0
      %v1966 = vmin.f32 %v1934, 6.0
      %v1967 = vmin.f32 %v1935, 6.0
      %v1968 = vmin.f32 %v1936, 6.0
      %v1969 = vmin.f32 %v1937, 6.0
      %v1970 = vmin.f32 %v1938, 6.0
      %v1971 = vmin.f32 %v1939, 6.0
      %v1972 = vmin.f32 %v1940, 6.0
      %v1973 = vmin.f32 %v1941, 6.0
      %v1974 = vmin.f32 %v1942, 6.0
      %v1975 = vmin.f32 %v1943, 6.0
      %v1976 = vmin.f32 %v1944, 6.0
      %v1977 = vmin.f32 %v1945, 6.0
      %v1978 = vmul.f32 %v1850, %v1946
      %v1979 = vmul.f32 %v1851, %v1947
      %v1980 = vmul.f32 %v1852, %v1948
      %v1981 = vmul.f32 %v1853, %v1949
      %v1982 = vmul.f32 %v1854, %v1950
      %v1983 = vmul.f32 %v1855, %v1951
      %v1984 = vmul.f32 %v1856, %v1952
      %v1985 = vmul.f32 %v1857, %v1953
      %v1986 = vmul.f32 %v1858, %v1954
      %v1987 = vmul.f32 %v1859, %v1955
      %v1988 = vmul.f32 %v1860, %v1956
      %v1989 = vmul.f32 %v1861, %v1957
      %v1990 = vmul.f32 %v1862, %v1958
      %v1991 = vmul.f32 %v1863, %v1959
      %v1992 = vmul.f32 %v1864, %v1960
      %v1993 = vmul.f32 %v1865, %v1961
      %v1994 = vmul.f32 %v1866, %v1962
      %v1995 = vmul.f32 %v1867, %v1963
      %v1996 = vmul.f32 %v1868, %v1964
      %v1997 = vmul.f32 %v1869, %v1965
      %v1998 = vmul.f32 %v1870, %v1966
      %v1999 = vmul.f32 %v1871, %v1967
      %v2000 = vmul.f32 %v1872, %v1968
      %v2001 = vmul.f32 %v1873, %v1969
      %v2002 = vmul.f32 %v1874, %v1970
      %v2003 = vmul.f32 %v1875, %v1971
      %v2004 = vmul.f32 %v1876, %v1972
      %v2005 = vmul.f32 %v1877, %v1973
      %v2006 = vmul.f32 %v1878, %v1974
      %v2007 = vmul.f32 %v1879, %v1975
      %v2008 = vmul.f32 %v1880, %v1976
      %v2009 = vmul.f32 %v1881, %v1977
      %v2010 = vmul.f32 %v1978, %v795
      %v2011 = vmul.f32 %v1979, %v795
      %v2012 = vmul.f32 %v1980, %v795
      %v2013 = vmul.f32 %v1981, %v795
      %v2014 = vmul.f32 %v1982, %v795
      %v2015 = vmul.f32 %v1983, %v795
      %v2016 = vmul.f32 %v1984, %v795
      %v2017 = vmul.f32 %v1985, %v795
      %v2018 = vmul.f32 %v1986, %v795
      %v2019 = vmul.f32 %v1987, %v795
      %v2020 = vmul.f32 %v1988, %v795
      %v2021 = vmul.f32 %v1989, %v795
      %v2022 = vmul.f32 %v1990, %v795
      %v2023 = vmul.f32 %v1991, %v795
      %v2024 = vmul.f32 %v1992, %v795
      %v2025 = vmul.f32 %v1993, %v795
      %v2026 = vmul.f32 %v1994, %v795
      %v2027 = vmul.f32 %v1995, %v795
      %v2028 = vmul.f32 %v1996, %v795
      %v2029 = vmul.f32 %v1997, %v795
      %v2030 = vmul.f32 %v1998, %v795
      %v2031 = vmul.f32 %v1999, %v795
      %v2032 = vmul.f32 %v2000, %v795
      %v2033 = vmul.f32 %v2001, %v795
      %v2034 = vmul.f32 %v2002, %v795
      %v2035 = vmul.f32 %v2003, %v795
      %v2036 = vmul.f32 %v2004, %v795
      %v2037 = vmul.f32 %v2005, %v795
      %v2038 = vmul.f32 %v2006, %v795
      %v2039 = vmul.f32 %v2007, %v795
      %v2040 = vmul.f32 %v2008, %v795
      %v2041 = vmul.f32 %v2009, %v795
      %v2042 = vadd.f32 %v2010, %v2011
      %v2043 = vadd.f32 %v2042, %v2012
      %v2044 = vadd.f32 %v2043, %v2013
      %v2045 = vadd.f32 %v2044, %v2014
      %v2046 = vadd.f32 %v2045, %v2015
      %v2047 = vadd.f32 %v2046, %v2016
      %v2048 = vadd.f32 %v2047, %v2017
      %v2049 = vadd.f32 %v2048, %v2018
      %v2050 = vadd.f32 %v2049, %v2019
      %v2051 = vadd.f32 %v2050, %v2020
      %v2052 = vadd.f32 %v2051, %v2021
      %v2053 = vadd.f32 %v2052, %v2022
      %v2054 = vadd.f32 %v2053, %v2023
      %v2055 = vadd.f32 %v2054, %v2024
      %v2056 = vadd.f32 %v2055, %v2025
      %v2057 = vadd.f32 %v2056, %v2026
      %v2058 = vadd.f32 %v2057, %v2027
      %v2059 = vadd.f32 %v2058, %v2028
      %v2060 = vadd.f32 %v2059, %v2029
      %v2061 = vadd.f32 %v2060, %v2030
      %v2062 = vadd.f32 %v2061, %v2031
      %v2063 = vadd.f32 %v2062, %v2032
      %v2064 = vadd.f32 %v2063, %v2033
      %v2065 = vadd.f32 %v2064, %v2034
      %v2066 = vadd.f32 %v2065, %v2035
      %v2067 = vadd.f32 %v2066, %v2036
      %v2068 = vadd.f32 %v2067, %v2037
      %v2069 = vadd.f32 %v2068, %v2038
      %v2070 = vadd.f32 %v2069, %v2039
      %v2071 = vadd.f32 %v2070, %v2040
      %v2072 = vadd.f32 %v2071, %v2041
      %v2073 = vrot.slane %v2072, 4
      %v2074 = vadd.f32 %v2072, %v2073
      %v2075 = vrot.slane %v2074, 2
      %v2076 = vadd.f32 %v2074, %v2075
      %v2077 = vrot.slane %v2076, 1
      %v2078 = vadd.f32 %v2076, %v2077
      %v2079 = vrcp.pop 256.0
      %v2080 = vmul.f32 %v2078, %v2079
      %v2081 = vld [vmem:[%s5] sm:$0xff]
      %v2082 = vld [vmem:[%s5 + $0x8] sm:$0xff]
      %v2083 = vld [vmem:[%s5 + $0x10] sm:$0xff]
      %v2084 = vld [vmem:[%s5 + $0x18] sm:$0xff]
      %v2085 = vld [vmem:[%s5 + $0x20] sm:$0xff]
      %v2086 = vld [vmem:[%s5 + $0x28] sm:$0xff]
      %v2087 = vld [vmem:[%s5 + $0x30] sm:$0xff]
      %v2088 = vld [vmem:[%s5 + $0x38] sm:$0xff]
      %v2089 = vld [vmem:[%s5 + $0x40] sm:$0xff]
      %v2090 = vld [vmem:[%s5 + $0x48] sm:$0xff]
      %v2091 = vld [vmem:[%s5 + $0x50] sm:$0xff]
      %v2092 = vld [vmem:[%s5 + $0x58] sm:$0xff]
      %v2093 = vld [vmem:[%s5 + $0x60] sm:$0xff]
      %v2094 = vld [vmem:[%s5 + $0x68] sm:$0xff]
      %v2095 = vld [vmem:[%s5 + $0x70] sm:$0xff]
      %v2096 = vld [vmem:[%s5 + $0x78] sm:$0xff]
      %v2097 = vld [vmem:[%s6] sm:$0x1]
      %2098 = vmatprep.subr.mxu0 0.0
      %2099 = vmatpush1.msra.mxu0 %v2096
      %2100 = vmatprep.subr.mxu0 0.0
      %2101 = vmatpush1.msra.mxu0 %v2095
      %2102 = vmatprep.subr.mxu0 0.0
      %2103 = vmatpush1.msra.mxu0 %v2094
      %2104 = vmatprep.subr.mxu0 0.0
      %2105 = vmatpush1.msra.mxu0 %v2093
      %2106 = vmatprep.subr.mxu0 0.0
      %2107 = vmatpush1.msra.mxu0 %v2092
      %2108 = vmatprep.subr.mxu0 0.0
      %2109 = vmatpush1.msra.mxu0 %v2091
      %2110 = vmatprep.subr.mxu0 0.0
      %2111 = vmatpush1.msra.mxu0 %v2090
      %2112 = vmatprep.subr.mxu0 0.0
      %2113 = vmatpush1.msra.mxu0 %v2089
      %2114 = vmatprep.subr.mxu0 0.0
      %2115 = vmatpush1.msra.mxu0 %v2088
      %2116 = vmatprep.subr.mxu0 0.0
      %2117 = vmatpush1.msra.mxu0 %v2087
      %2118 = vmatprep.subr.mxu0 0.0
      %2119 = vmatpush1.msra.mxu0 %v2086
      %2120 = vmatprep.subr.mxu0 0.0
      %2121 = vmatpush1.msra.mxu0 %v2085
      %2122 = vmatprep.subr.mxu0 0.0
      %2123 = vmatpush1.msra.mxu0 %v2084
      %2124 = vmatprep.subr.mxu0 0.0
      %2125 = vmatpush1.msra.mxu0 %v2083
      %2126 = vmatprep.subr.mxu0 0.0
      %2127 = vmatpush1.msra.mxu0 %v2082
      %2128 = vmatprep.subr.mxu0 0.0
      %2129 = vmatpush1.msra.mxu0 %v2081
      %2130 = vmatprep.subr.mxu0 0.0
      %2131 = vmatpush2.msra.mxu0 0.0
      %2132 = vmatprep.subr.mxu0 0.0
      %2133 = vmatpush2.msra.mxu0 0.0
      %2134 = vmatprep.subr.mxu0 0.0
      %2135 = vmatpush2.msra.mxu0 0.0
      %2136 = vmatprep.subr.mxu0 0.0
      %2137 = vmatpush2.msra.mxu0 0.0
      %2138 = vmatprep.subr.mxu0 0.0
      %2139 = vmatpush2.msra.mxu0 0.0
      %2140 = vmatprep.subr.mxu0 0.0
      %2141 = vmatpush2.msra.mxu0 0.0
      %2142 = vmatprep.subr.mxu0 0.0
      %2143 = vmatpush2.msra.mxu0 0.0
      %2144 = vmatprep.subr.mxu0 0.0
      %2145 = vmatpush2.msra.mxu0 0.0
      %2146 = vmatprep.subr.mxu0 0.0
      %2147 = vmatpush2.msra.mxu0 0.0
      %2148 = vmatprep.subr.mxu0 0.0
      %2149 = vmatpush2.msra.mxu0 0.0
      %2150 = vmatprep.subr.mxu0 0.0
      %2151 = vmatpush2.msra.mxu0 0.0
      %2152 = vmatprep.subr.mxu0 0.0
      %2153 = vmatpush2.msra.mxu0 0.0
      %2154 = vmatprep.subr.mxu0 0.0
      %2155 = vmatpush2.msra.mxu0 0.0
      %2156 = vmatprep.subr.mxu0 0.0
      %2157 = vmatpush2.msra.mxu0 0.0
      %2158 = vmatprep.subr.mxu0 0.0
      %2159 = vmatpush2.msra.mxu0 0.0
      %2160 = vmatprep.subr.mxu0 0.0
      %2161 = vmatpush2.msra.mxu0 0.0
      %2162 = vmatprep.mubr.f32.mxu0 0.0
      %2163 = vmatmul.mubr.f32.gmra.mxu0 %v2080
      %v2164 = vpop.f32.mrf.mxu0
      %v2165 = vadd.f32 %v2097, %v2164
      %v2166 = vpop.f32.mrf.mxu0
      %2167 = vdwg.mxu0
      %v2168 = vmax.f32 %v2165, 0.0
      %v2169 = vld [vmem:[%s7] sm:$0xff]
      %v2170 = vld [vmem:[%s7 + $0x8] sm:$0xff]
      %v2171 = vld [vmem:[%s7 + $0x10] sm:$0xff]
      %v2172 = vld [vmem:[%s7 + $0x18] sm:$0xff]
      %v2173 = vld [vmem:[%s7 + $0x20] sm:$0xff]
      %v2174 = vld [vmem:[%s7 + $0x28] sm:$0xff]
      %v2175 = vld [vmem:[%s7 + $0x30] sm:$0xff]
      %v2176 = vld [vmem:[%s7 + $0x38] sm:$0xff]
      %v2177 = vld [vmem:[%s7 + $0x40] sm:$0xff]
      %v2178 = vld [vmem:[%s7 + $0x48] sm:$0xff]
      %v2179 = vld [vmem:[%s7 + $0x50] sm:$0xff]
      %v2180 = vld [vmem:[%s7 + $0x58] sm:$0xff]
      %v2181 = vld [vmem:[%s7 + $0x60] sm:$0xff]
      %v2182 = vld [vmem:[%s7 + $0x68] sm:$0xff]
      %v2183 = vld [vmem:[%s7 + $0x70] sm:$0xff]
      %v2184 = vld [vmem:[%s7 + $0x78] sm:$0xff]
      %v2185 = vld [vmem:[%s8] sm:$0x1]
      %2186 = vmatprep.subr.mxu0 0.0
      %2187 = vmatpush1.msra.mxu0 %v2184
      %2188 = vmatprep.subr.mxu0 0.0
      %2189 = vmatpush1.msra.mxu0 %v2183
      %2190 = vmatprep.subr.mxu0 0.0
      %2191 = vmatpush1.msra.mxu0 %v2182
      %2192 = vmatprep.subr.mxu0 0.0
      %2193 = vmatpush1.msra.mxu0 %v2181
      %2194 = vmatprep.subr.mxu0 0.0
      %2195 = vmatpush1.msra.mxu0 %v2180
      %2196 = vmatprep.subr.mxu0 0.0
      %2197 = vmatpush1.msra.mxu0 %v2179
      %2198 = vmatprep.subr.mxu0 0.0
      %2199 = vmatpush1.msra.mxu0 %v2178
      %2200 = vmatprep.subr.mxu0 0.0
      %2201 = vmatpush1.msra.mxu0 %v2177
      %2202 = vmatprep.subr.mxu0 0.0
      %2203 = vmatpush1.msra.mxu0 %v2176
      %2204 = vmatprep.subr.mxu0 0.0
      %2205 = vmatpush1.msra.mxu0 %v2175
      %2206 = vmatprep.subr.mxu0 0.0
      %2207 = vmatpush1.msra.mxu0 %v2174
      %2208 = vmatprep.subr.mxu0 0.0
      %2209 = vmatpush1.msra.mxu0 %v2173
      %2210 = vmatprep.subr.mxu0 0.0
      %2211 = vmatpush1.msra.mxu0 %v2172
      %2212 = vmatprep.subr.mxu0 0.0
      %2213 = vmatpush1.msra.mxu0 %v2171
      %2214 = vmatprep.subr.mxu0 0.0
      %2215 = vmatpush1.msra.mxu0 %v2170
      %2216 = vmatprep.subr.mxu0 0.0
      %2217 = vmatpush1.msra.mxu0 %v2169
      %2218 = vmatprep.subr.mxu0 0.0
      %2219 = vmatpush2.msra.mxu0 0.0
      %2220 = vmatprep.subr.mxu0 0.0
      %2221 = vmatpush2.msra.mxu0 0.0
      %2222 = vmatprep.subr.mxu0 0.0
      %2223 = vmatpush2.msra.mxu0 0.0
      %2224 = vmatprep.subr.mxu0 0.0
      %2225 = vmatpush2.msra.mxu0 0.0
      %2226 = vmatprep.subr.mxu0 0.0
      %2227 = vmatpush2.msra.mxu0 0.0
      %2228 = vmatprep.subr.mxu0 0.0
      %2229 = vmatpush2.msra.mxu0 0.0
      %2230 = vmatprep.subr.mxu0 0.0
      %2231 = vmatpush2.msra.mxu0 0.0
      %2232 = vmatprep.subr.mxu0 0.0
      %2233 = vmatpush2.msra.mxu0 0.0
      %2234 = vmatprep.subr.mxu0 0.0
      %2235 = vmatpush2.msra.mxu0 0.0
      %2236 = vmatprep.subr.mxu0 0.0
      %2237 = vmatpush2.msra.mxu0 0.0
      %2238 = vmatprep.subr.mxu0 0.0
      %2239 = vmatpush2.msra.mxu0 0.0
      %2240 = vmatprep.subr.mxu0 0.0
      %2241 = vmatpush2.msra.mxu0 0.0
      %2242 = vmatprep.subr.mxu0 0.0
      %2243 = vmatpush2.msra.mxu0 0.0
      %2244 = vmatprep.subr.mxu0 0.0
      %2245 = vmatpush2.msra.mxu0 0.0
      %2246 = vmatprep.subr.mxu0 0.0
      %2247 = vmatpush2.msra.mxu0 0.0
      %2248 = vmatprep.subr.mxu0 0.0
      %2249 = vmatpush2.msra.mxu0 0.0
      %2250 = vmatprep.mubr.f32.mxu0 0.0
      %2251 = vmatmul.mubr.f32.gmra.mxu0 %v2168
      %v2252 = vpop.f32.mrf.mxu0
      %v2253 = vadd.f32 %v2185, %v2252
      %v2254 = vpop.f32.mrf.mxu0
      %2255 = vdwg.mxu0
      %v2256 = vmul.f32 %v2253, 1.2
      %v2257 = vadd.f32 %v2256, 3.0
      %v2258 = vmax.f32 %v2257, 0.0
      %v2259 = vmin.f32 %v2258, 6.0
      %v2260 = vmul.f32 %v2259, %v795
      %v2261 = vlaneseq
      %v2262 = vshrl.u32 %v2261, 7
      %v2263 = vsub.s32 0, %v2262
      %v2264 = vrot.slane %v2260, %v2263
      %v2265 = vmul.f32 %v2010, %v2264
      %v2266 = vmul.f32 %v2011, %v2264
      %v2267 = vmul.f32 %v2012, %v2264
      %v2268 = vmul.f32 %v2013, %v2264
      %v2269 = vmul.f32 %v2014, %v2264
      %v2270 = vmul.f32 %v2015, %v2264
      %v2271 = vmul.f32 %v2016, %v2264
      %v2272 = vmul.f32 %v2017, %v2264
      %v2273 = vmul.f32 %v2018, %v2264
      %v2274 = vmul.f32 %v2019, %v2264
      %v2275 = vmul.f32 %v2020, %v2264
      %v2276 = vmul.f32 %v2021, %v2264
      %v2277 = vmul.f32 %v2022, %v2264
      %v2278 = vmul.f32 %v2023, %v2264
      %v2279 = vmul.f32 %v2024, %v2264
      %v2280 = vmul.f32 %v2025, %v2264
      %v2281 = vmul.f32 %v2026, %v2264
      %v2282 = vmul.f32 %v2027, %v2264
      %v2283 = vmul.f32 %v2028, %v2264
      %v2284 = vmul.f32 %v2029, %v2264
      %v2285 = vmul.f32 %v2030, %v2264
      %v2286 = vmul.f32 %v2031, %v2264
      %v2287 = vmul.f32 %v2032, %v2264
      %v2288 = vmul.f32 %v2033, %v2264
      %v2289 = vmul.f32 %v2034, %v2264
      %v2290 = vmul.f32 %v2035, %v2264
      %v2291 = vmul.f32 %v2036, %v2264
      %v2292 = vmul.f32 %v2037, %v2264
      %v2293 = vmul.f32 %v2038, %v2264
      %v2294 = vmul.f32 %v2039, %v2264
      %v2295 = vmul.f32 %v2040, %v2264
      %v2296 = vmul.f32 %v2041, %v2264
      %v2297 = vld [vmem:[%s9] sm:$0xff]
      %v2298 = vld [vmem:[%s9 + $0x8] sm:$0xff]
      %v2299 = vld [vmem:[%s9 + $0x10] sm:$0xff]
      %v2300 = vld [vmem:[%s9 + $0x18] sm:$0xff]
      %v2301 = vld [vmem:[%s9 + $0x20] sm:$0xff]
      %v2302 = vld [vmem:[%s9 + $0x28] sm:$0xff]
      %v2303 = vld [vmem:[%s9 + $0x30] sm:$0xff]
      %v2304 = vld [vmem:[%s9 + $0x38] sm:$0xff]
      %v2305 = vld [vmem:[%s9 + $0x40] sm:$0xff]
      %v2306 = vld [vmem:[%s9 + $0x48] sm:$0xff]
      %v2307 = vld [vmem:[%s9 + $0x50] sm:$0xff]
      %v2308 = vld [vmem:[%s9 + $0x58] sm:$0xff]
      %v2309 = vld [vmem:[%s9 + $0x60] sm:$0xff]
      %v2310 = vld [vmem:[%s9 + $0x68] sm:$0xff]
      %v2311 = vld [vmem:[%s9 + $0x70] sm:$0xff]
      %v2312 = vld [vmem:[%s9 + $0x78] sm:$0xff]
      %v2313 = vld [vmem:[%s10] sm:$0x1]
      %v2315 = vlaneseq
      %v2316 = vshrl.u32 %v2315, 7
      %v2317 = vsub.s32 0, %v2316
      %v2318 = vrot.slane %v2313, %v2317
      %2320 = vmatprep.subr.mxu0 0.0
      %2321 = vmatpush1.msra.mxu0 %v2312
      %2322 = vmatprep.subr.mxu0 0.0
      %2323 = vmatpush1.msra.mxu0 %v2311
      %2324 = vmatprep.subr.mxu0 0.0
      %2325 = vmatpush1.msra.mxu0 %v2310
      %2326 = vmatprep.subr.mxu0 0.0
      %2327 = vmatpush1.msra.mxu0 %v2309
      %2328 = vmatprep.subr.mxu0 0.0
      %2329 = vmatpush1.msra.mxu0 %v2308
      %2330 = vmatprep.subr.mxu0 0.0
      %2331 = vmatpush1.msra.mxu0 %v2307
      %2332 = vmatprep.subr.mxu0 0.0
      %2333 = vmatpush1.msra.mxu0 %v2306
      %2334 = vmatprep.subr.mxu0 0.0
      %2335 = vmatpush1.msra.mxu0 %v2305
      %2336 = vmatprep.subr.mxu0 0.0
      %2337 = vmatpush1.msra.mxu0 %v2304
      %2338 = vmatprep.subr.mxu0 0.0
      %2339 = vmatpush1.msra.mxu0 %v2303
      %2340 = vmatprep.subr.mxu0 0.0
      %2341 = vmatpush1.msra.mxu0 %v2302
      %2342 = vmatprep.subr.mxu0 0.0
      %2343 = vmatpush1.msra.mxu0 %v2301
      %2344 = vmatprep.subr.mxu0 0.0
      %2345 = vmatpush1.msra.mxu0 %v2300
      %2346 = vmatprep.subr.mxu0 0.0
      %2347 = vmatpush1.msra.mxu0 %v2299
      %2348 = vmatprep.subr.mxu0 0.0
      %2349 = vmatpush1.msra.mxu0 %v2298
      %2350 = vmatprep.subr.mxu0 0.0
      %2351 = vmatpush1.msra.mxu0 %v2297
      %2352 = vmatprep.subr.mxu0 0.0
      %2353 = vmatpush2.msra.mxu0 0.0
      %2354 = vmatprep.subr.mxu0 0.0
      %2355 = vmatpush2.msra.mxu0 0.0
      %2356 = vmatprep.subr.mxu0 0.0
      %2357 = vmatpush2.msra.mxu0 0.0
      %2358 = vmatprep.subr.mxu0 0.0
      %2359 = vmatpush2.msra.mxu0 0.0
      %2360 = vmatprep.subr.mxu0 0.0
      %2361 = vmatpush2.msra.mxu0 0.0
      %2362 = vmatprep.subr.mxu0 0.0
      %2363 = vmatpush2.msra.mxu0 0.0
      %2364 = vmatprep.subr.mxu0 0.0
      %2365 = vmatpush2.msra.mxu0 0.0
      %2366 = vmatprep.subr.mxu0 0.0
      %2367 = vmatpush2.msra.mxu0 0.0
      %2368 = vmatprep.subr.mxu0 0.0
      %2369 = vmatpush2.msra.mxu0 0.0
      %2370 = vmatprep.subr.mxu0 0.0
      %2371 = vmatpush2.msra.mxu0 0.0
      %2372 = vmatprep.subr.mxu0 0.0
      %2373 = vmatpush2.msra.mxu0 0.0
      %2374 = vmatprep.subr.mxu0 0.0
      %2375 = vmatpush2.msra.mxu0 0.0
      %2376 = vmatprep.subr.mxu0 0.0
      %2377 = vmatpush2.msra.mxu0 0.0
      %2378 = vmatprep.subr.mxu0 0.0
      %2379 = vmatpush2.msra.mxu0 0.0
      %2380 = vmatprep.subr.mxu0 0.0
      %2381 = vmatpush2.msra.mxu0 0.0
      %2382 = vmatprep.subr.mxu0 0.0
      %2383 = vmatpush2.msra.mxu0 0.0
      %2384 = vmatprep.mubr.f32.mxu0 0.0
      %2385 = vmatmul.mubr.f32.gmra.mxu0 %v2265
      %v2386 = vpop.f32.mrf.mxu0
      %v2387 = vadd.f32 %v2318, %v2386
      %v2388 = vpop.f32.mrf.mxu0
      %2389 = vmatprep.mubr.f32.mxu0 0.0
      %2390 = vmatmul.mubr.f32.gmra.mxu0 %v2266
      %v2391 = vpop.f32.mrf.mxu0
      %v2392 = vadd.f32 %v2318, %v2391
      %v2393 = vpop.f32.mrf.mxu0
      %2394 = vmatprep.mubr.f32.mxu0 0.0
      %2395 = vmatmul.mubr.f32.gmra.mxu0 %v2267
      %v2396 = vpop.f32.mrf.mxu0
      %v2397 = vadd.f32 %v2318, %v2396
      %v2398 = vpop.f32.mrf.mxu0
      %2399 = vmatprep.mubr.f32.mxu0 0.0
      %2400 = vmatmul.mubr.f32.gmra.mxu0 %v2268
      %v2401 = vpop.f32.mrf.mxu0
      %v2402 = vadd.f32 %v2318, %v2401
      %v2403 = vpop.f32.mrf.mxu0
      %2404 = vmatprep.mubr.f32.mxu0 0.0
      %2405 = vmatmul.mubr.f32.gmra.mxu0 %v2269
      %v2406 = vpop.f32.mrf.mxu0
      %v2407 = vadd.f32 %v2318, %v2406
      %v2408 = vpop.f32.mrf.mxu0
      %2409 = vmatprep.mubr.f32.mxu0 0.0
      %2410 = vmatmul.mubr.f32.gmra.mxu0 %v2270
      %v2411 = vpop.f32.mrf.mxu0
      %v2412 = vadd.f32 %v2318, %v2411
      %v2413 = vpop.f32.mrf.mxu0
      %2414 = vmatprep.mubr.f32.mxu0 0.0
      %2415 = vmatmul.mubr.f32.gmra.mxu0 %v2271
      %v2416 = vpop.f32.mrf.mxu0
      %v2417 = vadd.f32 %v2318, %v2416
      %v2418 = vpop.f32.mrf.mxu0
      %2419 = vmatprep.mubr.f32.mxu0 0.0
      %2420 = vmatmul.mubr.f32.gmra.mxu0 %v2272
      %v2421 = vpop.f32.mrf.mxu0
      %v2422 = vadd.f32 %v2318, %v2421
      %v2423 = vpop.f32.mrf.mxu0
      %2424 = vmatprep.mubr.f32.mxu0 0.0
      %2425 = vmatmul.mubr.f32.gmra.mxu0 %v2273
      %v2426 = vpop.f32.mrf.mxu0
      %v2427 = vadd.f32 %v2318, %v2426
      %v2428 = vpop.f32.mrf.mxu0
      %2429 = vmatprep.mubr.f32.mxu0 0.0
      %2430 = vmatmul.mubr.f32.gmra.mxu0 %v2274
      %v2431 = vpop.f32.mrf.mxu0
      %v2432 = vadd.f32 %v2318, %v2431
      %v2433 = vpop.f32.mrf.mxu0
      %2434 = vmatprep.mubr.f32.mxu0 0.0
      %2435 = vmatmul.mubr.f32.gmra.mxu0 %v2275
      %v2436 = vpop.f32.mrf.mxu0
      %v2437 = vadd.f32 %v2318, %v2436
      %v2438 = vpop.f32.mrf.mxu0
      %2439 = vmatprep.mubr.f32.mxu0 0.0
      %2440 = vmatmul.mubr.f32.gmra.mxu0 %v2276
      %v2441 = vpop.f32.mrf.mxu0
      %v2442 = vadd.f32 %v2318, %v2441
      %v2443 = vpop.f32.mrf.mxu0
      %2444 = vmatprep.mubr.f32.mxu0 0.0
      %2445 = vmatmul.mubr.f32.gmra.mxu0 %v2277
      %v2446 = vpop.f32.mrf.mxu0
      %v2447 = vadd.f32 %v2318, %v2446
      %v2448 = vpop.f32.mrf.mxu0
      %2449 = vmatprep.mubr.f32.mxu0 0.0
      %2450 = vmatmul.mubr.f32.gmra.mxu0 %v2278
      %v2451 = vpop.f32.mrf.mxu0
      %v2452 = vadd.f32 %v2318, %v2451
      %v2453 = vpop.f32.mrf.mxu0
      %2454 = vmatprep.mubr.f32.mxu0 0.0
      %2455 = vmatmul.mubr.f32.gmra.mxu0 %v2279
      %v2456 = vpop.f32.mrf.mxu0
      %v2457 = vadd.f32 %v2318, %v2456
      %v2458 = vpop.f32.mrf.mxu0
      %2459 = vmatprep.mubr.f32.mxu0 0.0
      %2460 = vmatmul.mubr.f32.gmra.mxu0 %v2280
      %v2461 = vpop.f32.mrf.mxu0
      %v2462 = vadd.f32 %v2318, %v2461
      %v2463 = vpop.f32.mrf.mxu0
      %2464 = vmatprep.mubr.f32.mxu0 0.0
      %2465 = vmatmul.mubr.f32.gmra.mxu0 %v2281
      %v2466 = vpop.f32.mrf.mxu0
      %v2467 = vadd.f32 %v2318, %v2466
      %v2468 = vpop.f32.mrf.mxu0
      %2469 = vmatprep.mubr.f32.mxu0 0.0
      %2470 = vmatmul.mubr.f32.gmra.mxu0 %v2282
      %v2471 = vpop.f32.mrf.mxu0
      %v2472 = vadd.f32 %v2318, %v2471
      %v2473 = vpop.f32.mrf.mxu0
      %2474 = vmatprep.mubr.f32.mxu0 0.0
      %2475 = vmatmul.mubr.f32.gmra.mxu0 %v2283
      %v2476 = vpop.f32.mrf.mxu0
      %v2477 = vadd.f32 %v2318, %v2476
      %v2478 = vpop.f32.mrf.mxu0
      %2479 = vmatprep.mubr.f32.mxu0 0.0
      %2480 = vmatmul.mubr.f32.gmra.mxu0 %v2284
      %v2481 = vpop.f32.mrf.mxu0
      %v2482 = vadd.f32 %v2318, %v2481
      %v2483 = vpop.f32.mrf.mxu0
      %2484 = vmatprep.mubr.f32.mxu0 0.0
      %2485 = vmatmul.mubr.f32.gmra.mxu0 %v2285
      %v2486 = vpop.f32.mrf.mxu0
      %v2487 = vadd.f32 %v2318, %v2486
      %v2488 = vpop.f32.mrf.mxu0
      %2489 = vmatprep.mubr.f32.mxu0 0.0
      %2490 = vmatmul.mubr.f32.gmra.mxu0 %v2286
      %v2491 = vpop.f32.mrf.mxu0
      %v2492 = vadd.f32 %v2318, %v2491
      %v2493 = vpop.f32.mrf.mxu0
      %2494 = vmatprep.mubr.f32.mxu0 0.0
      %2495 = vmatmul.mubr.f32.gmra.mxu0 %v2287
      %v2496 = vpop.f32.mrf.mxu0
      %v2497 = vadd.f32 %v2318, %v2496
      %v2498 = vpop.f32.mrf.mxu0
      %2499 = vmatprep.mubr.f32.mxu0 0.0
      %2500 = vmatmul.mubr.f32.gmra.mxu0 %v2288
      %v2501 = vpop.f32.mrf.mxu0
      %v2502 = vadd.f32 %v2318, %v2501
      %v2503 = vpop.f32.mrf.mxu0
      %2504 = vmatprep.mubr.f32.mxu0 0.0
      %2505 = vmatmul.mubr.f32.gmra.mxu0 %v2289
      %v2506 = vpop.f32.mrf.mxu0
      %v2507 = vadd.f32 %v2318, %v2506
      %v2508 = vpop.f32.mrf.mxu0
      %2509 = vmatprep.mubr.f32.mxu0 0.0
      %2510 = vmatmul.mubr.f32.gmra.mxu0 %v2290
      %v2511 = vpop.f32.mrf.mxu0
      %v2512 = vadd.f32 %v2318, %v2511
      %v2513 = vpop.f32.mrf.mxu0
      %2514 = vmatprep.mubr.f32.mxu0 0.0
      %2515 = vmatmul.mubr.f32.gmra.mxu0 %v2291
      %v2516 = vpop.f32.mrf.mxu0
      %v2517 = vadd.f32 %v2318, %v2516
      %v2518 = vpop.f32.mrf.mxu0
      %2519 = vmatprep.mubr.f32.mxu0 0.0
      %2520 = vmatmul.mubr.f32.gmra.mxu0 %v2292
      %v2521 = vpop.f32.mrf.mxu0
      %v2522 = vadd.f32 %v2318, %v2521
      %v2523 = vpop.f32.mrf.mxu0
      %2524 = vmatprep.mubr.f32.mxu0 0.0
      %2525 = vmatmul.mubr.f32.gmra.mxu0 %v2293
      %v2526 = vpop.f32.mrf.mxu0
      %v2527 = vadd.f32 %v2318, %v2526
      %v2528 = vpop.f32.mrf.mxu0
      %2529 = vmatprep.mubr.f32.mxu0 0.0
      %2530 = vmatmul.mubr.f32.gmra.mxu0 %v2294
      %v2531 = vpop.f32.mrf.mxu0
      %v2532 = vadd.f32 %v2318, %v2531
      %v2533 = vpop.f32.mrf.mxu0
      %2534 = vmatprep.mubr.f32.mxu0 0.0
      %2535 = vmatmul.mubr.f32.gmra.mxu0 %v2295
      %v2536 = vpop.f32.mrf.mxu0
      %v2537 = vadd.f32 %v2318, %v2536
      %v2538 = vpop.f32.mrf.mxu0
      %2539 = vmatprep.mubr.f32.mxu0 0.0
      %2540 = vmatmul.mubr.f32.gmra.mxu0 %v2296
      %v2541 = vpop.f32.mrf.mxu0
      %v2542 = vadd.f32 %v2318, %v2541
      %v2543 = vpop.f32.mrf.mxu0
      %2544 = vdwg.mxu0
      %v2545 = vld [vmem:[%s381] sm:$0xff]
      %v2546 = vld [vmem:[%s381 + $0x8] sm:$0xff]
      %v2547 = vld [vmem:[%s381 + $0x10] sm:$0xff]
      %v2548 = vld [vmem:[%s381 + $0x18] sm:$0xff]
      %v2549 = vld [vmem:[%s381 + $0x20] sm:$0xff]
      %v2550 = vld [vmem:[%s381 + $0x28] sm:$0xff]
      %v2551 = vld [vmem:[%s381 + $0x30] sm:$0xff]
      %v2552 = vld [vmem:[%s381 + $0x38] sm:$0xff]
      %v2553 = vld [vmem:[%s381 + $0x40] sm:$0xff]
      %v2554 = vld [vmem:[%s381 + $0x48] sm:$0xff]
      %v2555 = vld [vmem:[%s381 + $0x50] sm:$0xff]
      %v2556 = vld [vmem:[%s381 + $0x58] sm:$0xff]
      %v2557 = vld [vmem:[%s381 + $0x60] sm:$0xff]
      %v2558 = vld [vmem:[%s381 + $0x68] sm:$0xff]
      %v2559 = vld [vmem:[%s381 + $0x70] sm:$0xff]
      %v2560 = vld [vmem:[%s381 + $0x78] sm:$0xff]
      %v2561 = vld [vmem:[%s381 + $0x80] sm:$0xff]
      %v2562 = vld [vmem:[%s381 + $0x88] sm:$0xff]
      %v2563 = vld [vmem:[%s381 + $0x90] sm:$0xff]
      %v2564 = vld [vmem:[%s381 + $0x98] sm:$0xff]
      %v2565 = vld [vmem:[%s381 + $0xa0] sm:$0xff]
      %v2566 = vld [vmem:[%s381 + $0xa8] sm:$0xff]
      %v2567 = vld [vmem:[%s381 + $0xb0] sm:$0xff]
      %v2568 = vld [vmem:[%s381 + $0xb8] sm:$0xff]
      %v2569 = vld [vmem:[%s381 + $0xc0] sm:$0xff]
      %v2570 = vld [vmem:[%s381 + $0xc8] sm:$0xff]
      %v2571 = vld [vmem:[%s381 + $0xd0] sm:$0xff]
      %v2572 = vld [vmem:[%s381 + $0xd8] sm:$0xff]
      %v2573 = vld [vmem:[%s381 + $0xe0] sm:$0xff]
      %v2574 = vld [vmem:[%s381 + $0xe8] sm:$0xff]
      %v2575 = vld [vmem:[%s381 + $0xf0] sm:$0xff]
      %v2576 = vld [vmem:[%s381 + $0xf8] sm:$0xff]
      %v2577 = vadd.f32 %v2387, %v2545
      %v2578 = vadd.f32 %v2392, %v2546
      %v2579 = vadd.f32 %v2397, %v2547
      %v2580 = vadd.f32 %v2402, %v2548
      %v2581 = vadd.f32 %v2407, %v2549
      %v2582 = vadd.f32 %v2412, %v2550
      %v2583 = vadd.f32 %v2417, %v2551
      %v2584 = vadd.f32 %v2422, %v2552
      %v2585 = vadd.f32 %v2427, %v2553
      %v2586 = vadd.f32 %v2432, %v2554
      %v2587 = vadd.f32 %v2437, %v2555
      %v2588 = vadd.f32 %v2442, %v2556
      %v2589 = vadd.f32 %v2447, %v2557
      %v2590 = vadd.f32 %v2452, %v2558
      %v2591 = vadd.f32 %v2457, %v2559
      %v2592 = vadd.f32 %v2462, %v2560
      %v2593 = vadd.f32 %v2467, %v2561
      %v2594 = vadd.f32 %v2472, %v2562
      %v2595 = vadd.f32 %v2477, %v2563
      %v2596 = vadd.f32 %v2482, %v2564
      %v2597 = vadd.f32 %v2487, %v2565
      %v2598 = vadd.f32 %v2492, %v2566
      %v2599 = vadd.f32 %v2497, %v2567
      %v2600 = vadd.f32 %v2502, %v2568
      %v2601 = vadd.f32 %v2507, %v2569
      %v2602 = vadd.f32 %v2512, %v2570
      %v2603 = vadd.f32 %v2517, %v2571
      %v2604 = vadd.f32 %v2522, %v2572
      %v2605 = vadd.f32 %v2527, %v2573
      %v2606 = vadd.f32 %v2532, %v2574
      %v2607 = vadd.f32 %v2537, %v2575
      %v2608 = vadd.f32 %v2542, %v2576
      %2609 = vst [vmem:[%s386] sm:$0xff] %v2577
      %2610 = vst [vmem:[%s386 + $0x8] sm:$0xff] %v2578
      %2611 = vst [vmem:[%s386 + $0x10] sm:$0xff] %v2579
      %2612 = vst [vmem:[%s386 + $0x18] sm:$0xff] %v2580
      %2613 = vst [vmem:[%s386 + $0x20] sm:$0xff] %v2581
      %2614 = vst [vmem:[%s386 + $0x28] sm:$0xff] %v2582
      %2615 = vst [vmem:[%s386 + $0x30] sm:$0xff] %v2583
      %2616 = vst [vmem:[%s386 + $0x38] sm:$0xff] %v2584
      %2617 = vst [vmem:[%s386 + $0x40] sm:$0xff] %v2585
      %2618 = vst [vmem:[%s386 + $0x48] sm:$0xff] %v2586
      %2619 = vst [vmem:[%s386 + $0x50] sm:$0xff] %v2587
      %2620 = vst [vmem:[%s386 + $0x58] sm:$0xff] %v2588
      %2621 = vst [vmem:[%s386 + $0x60] sm:$0xff] %v2589
      %2622 = vst [vmem:[%s386 + $0x68] sm:$0xff] %v2590
      %2623 = vst [vmem:[%s386 + $0x70] sm:$0xff] %v2591
      %2624 = vst [vmem:[%s386 + $0x78] sm:$0xff] %v2592
      %2625 = vst [vmem:[%s386 + $0x80] sm:$0xff] %v2593
      %2626 = vst [vmem:[%s386 + $0x88] sm:$0xff] %v2594
      %2627 = vst [vmem:[%s386 + $0x90] sm:$0xff] %v2595
      %2628 = vst [vmem:[%s386 + $0x98] sm:$0xff] %v2596
      %2629 = vst [vmem:[%s386 + $0xa0] sm:$0xff] %v2597
      %2630 = vst [vmem:[%s386 + $0xa8] sm:$0xff] %v2598
      %2631 = vst [vmem:[%s386 + $0xb0] sm:$0xff] %v2599
      %2632 = vst [vmem:[%s386 + $0xb8] sm:$0xff] %v2600
      %2633 = vst [vmem:[%s386 + $0xc0] sm:$0xff] %v2601
      %2634 = vst [vmem:[%s386 + $0xc8] sm:$0xff] %v2602
      %2635 = vst [vmem:[%s386 + $0xd0] sm:$0xff] %v2603
      %2636 = vst [vmem:[%s386 + $0xd8] sm:$0xff] %v2604
      %2637 = vst [vmem:[%s386 + $0xe0] sm:$0xff] %v2605
      %2638 = vst [vmem:[%s386 + $0xe8] sm:$0xff] %v2606
      %2639 = vst [vmem:[%s386 + $0xf0] sm:$0xff] %v2607
      %2640 = vst [vmem:[%s386 + $0xf8] sm:$0xff] %v2608
      %p2641 = scmp.lt.s32.totalorder %s22, 1
      %s2642 = scalar_select %p2641, %s22, 1
      %s2643 = smul.addr %s2642, 32
      %s2644 = smul.addr %s2643, 8
      %s2645 = scalar_lea.vmem %s11, %s2644
      // Predicated region
      $region65: #{residual_unit_forward.1} parent=63 // pred_check
        %p2646 = pneg %p276
      $region66: #{residual_unit_forward.1} parent=63 // pred_check_branch
        %2648 = sbr.rel (%p2646) target = $region68
      $region67: #{residual_unit_forward.1} parent=63 // pred_region
        _
      $region68: #{residual_unit_forward.1} parent=63 // pred_fallthru
        _
    $region64: #{residual_unit_forward.1} parent=5 // pred_fallthru
      _
    %p2649 = scmp.le.s32.totalorder 2, %s17
    // Predicated region
    $region69: #{residual_unit_forward.1} parent=5 // pred_check
      %p2650 = pneg %p2649
    $region70: #{residual_unit_forward.1} parent=5 // pred_check_branch
      %2652 = sbr.rel (%p2650) target = $region72
    $region71: #{residual_unit_forward.1} parent=5 // pred_region
      %s2653 = ssub.s32 %s17, 2
      // Predicated region
      $region73: #{residual_unit_forward.1} parent=71 // pred_check
        %p2654 = pneg %p282
      $region74: #{residual_unit_forward.1} parent=71 // pred_check_branch
        %2656 = sbr.rel (%p2654) target = $region76
      $region75: #{residual_unit_forward.1} parent=71 // pred_region
        %p2657 = scmp.lt.s32.totalorder %s23, 1
        %s2658 = scalar_select %p2657, %s23, 1
        %s2659 = smul.addr %s2658, 32
        %s2660 = smul.addr %s2659, 8
        %s2661 = scalar_lea.vmem %s11, %s2660
      $region76: #{residual_unit_forward.1} parent=71 // pred_fallthru
        _
    $region72: #{residual_unit_forward.1} parent=5 // pred_fallthru
      _
  $region6: #{residual_unit_forward.1} parent=0 // loop_footer
    %s21 = sadd.s32 1, %s17
  $region7: #{residual_unit_forward.1} parent=0 // loop_footer_branch
    %16 = sbr.rel target = $region3
  $region8: #{residual_unit_forward.1} parent=0 // loop_exit
    _

</llo_original>
